<compile_context>
chip_gen: v6e
topology: v6e:2x2x1
jax: 0.10.0
libtpu: 0.0.40
codegen_flags: <defaults>
</compile_context>

<pallas_src>
import math
from functools import partial

import jax
import jax.numpy as jnp
from jax import lax
from jax.experimental import pallas as pl
from jax.experimental.pallas import tpu as pltpu


# ----------------------------- config ---------------------------------------
class Cfg:
    sparsity = 0.5
    num_heads = 2
    D = 4            # output_node_size (M)
    frequency = 8    # kern_length = frequency // 2 = 4
    num_kernels = 4  # F
    node_size = 16   # N
    p1 = 4           # avg-pool width


# --------------------------- Pallas kernel ----------------------------------
def _dca_attention_kernel(x_ref, k_ref, v_ref, wq_ref, bq_ref, o_ref,
                          *, k_keep, scale):
    # One batch element per grid step; all kernels/heads batched along G = F*H.
    x = x_ref[0]        # (G, N, Eh)  head-split hidden state
    key = k_ref[0]      # (G, N, Eh)
    val = v_ref[0]      # (G, N, Eh)
    wq = wq_ref[...]    # (G, D, N)   sub_graph_query_conv weight (repeated per head)
    bq = bq_ref[...]    # (G, D, 1)

    G, D, _ = wq.shape
    Eh = x.shape[-1]

    # sub_graph_query_conv: kernel spans the whole node axis -> batched matmul over G
    q = lax.dot_general(wq, x, (((2,), (1,)), ((0,), (0,))),
                        preferred_element_type=jnp.float32) + bq       # (G, D, Eh)

    # scores (G, D, N) = q . k^T per (f, h), scaled by 1/sqrt(E)
    s = lax.dot_general(q, key, (((2,), (2,)), ((0,), (0,))),
                        preferred_element_type=jnp.float32) * scale

    # top-k along N: keep element iff (# strictly greater) < k
    # (matches torch.topk-threshold + masked_fill, including ties)
    rank = jnp.sum((s[:, :, :, None] > s[:, :, None, :]).astype(jnp.float32),
                   axis=2)                                              # (G, D, N)
    neg = jnp.finfo(jnp.float32).min
    s = jnp.where(rank < float(k_keep), s, neg)

    # softmax over N with the divide folded into the attn.V epilogue
    s = s - jnp.max(s, axis=-1, keepdims=True)
    p = jnp.exp(s)
    inv_l = pl.reciprocal(jnp.sum(p, axis=-1, keepdims=True),
                          approx=False)                                 # (G, D, 1)

    # attention output + residual query                                  (G, D, Eh)
    o = lax.dot_general(p, val, (((2,), (1,)), ((0,), (0,))),
                        preferred_element_type=jnp.float32) * inv_l + q

    # single lane-dense store: (D, G*Eh) = (D, F*E); lane order (f, h, e) matches
    # the torch rearrange 'b f m h e -> b f m (h e)' after the wrapper reshape.
    o_ref[0] = jnp.transpose(o, (1, 0, 2)).reshape(D, G * Eh).astype(o_ref.dtype)


def dca_attention(hidden, key, value, wq, bq, num_heads, sparsity):
    """hidden/key/value: (B, F, N, E); wq: (F, D, N); bq: (F, D, 1) -> (B, F, D, E)."""
    B, F, N, E = hidden.shape
    D = wq.shape[1]
    H = num_heads
    Eh = E // H
    G = F * H
    k_keep = int(sparsity * N)
    scale = 1.0 / math.sqrt(E)

    def head_split(t):   # (B, F, N, E) -> (B, G, N, Eh), g = f*H + h
        return (t.reshape(B, F, N, H, Eh)
                 .transpose(0, 1, 3, 2, 4)
                 .reshape(B, G, N, Eh))

    x_hs = head_split(hidden)
    k_hs = head_split(key)
    v_hs = head_split(value)
    wq_g = jnp.repeat(wq, H, axis=0)     # (G, D, N)  one copy per head
    bq_g = jnp.repeat(bq, H, axis=0)     # (G, D, 1)

    kernel = partial(_dca_attention_kernel, k_keep=k_keep, scale=scale)
    out = pl.pallas_call(
        kernel,
        out_shape=jax.ShapeDtypeStruct((B, D, F * E), jnp.float32),
        grid=(B,),
        in_specs=[
            pl.BlockSpec((1, G, N, Eh), lambda b: (b, 0, 0, 0)),
            pl.BlockSpec((1, G, N, Eh), lambda b: (b, 0, 0, 0)),
            pl.BlockSpec((1, G, N, Eh), lambda b: (b, 0, 0, 0)),
            pl.BlockSpec((G, D, N), lambda b: (0, 0, 0)),   # constant block -> no re-DMA
            pl.BlockSpec((G, D, 1), lambda b: (0, 0, 0)),
        ],
        out_specs=pl.BlockSpec((1, D, F * E), lambda b: (b, 0, 0)),
        compiler_params=pltpu.CompilerParams(
            dimension_semantics=("parallel",)),
    )(x_hs, k_hs, v_hs, wq_g, bq_g)

    # (B, D, F*E) -> (B, F, D, E)
    return out.reshape(B, D, F, E).transpose(0, 2, 1, 3)


# ------------------------------ JAX glue ------------------------------------
def conv_block(x, w_conv, bn1):
    """nn.ZeroPad2d + Conv2d(1->F, (1, kl), bias=False) + BatchNorm2d(F, eps=0)."""
    kl = w_conv.shape[-1]
    pad_right = 1 - kl % 2
    x = jnp.pad(x, ((0, 0), (0, 0), (0, 0), (0, pad_right)))
    p = (kl - 1) // 2
    y = lax.conv_general_dilated(x, w_conv, (1, 1), ((0, 0), (p, p)),
                                 dimension_numbers=('NCHW', 'OIHW', 'NCHW'))
    gamma, beta, rm, rv, eps = bn1
    scl = (gamma / jnp.sqrt(rv + eps))[None, :, None, None]
    return (y - rm[None, :, None, None]) * scl + beta[None, :, None, None]


def inception_block(x, weights, biases):
    """Depthwise (groups=F) convs with widths 1,3,5, averaged."""
    F = x.shape[1]
    outs = []
    for i, (w, b) in enumerate(zip(weights, biases)):
        y = lax.conv_general_dilated(x, w, (1, 1), ((0, 0), (i, i)),
                                     dimension_numbers=('NCHW', 'OIHW', 'NCHW'),
                                     feature_group_count=F)
        outs.append(y + b[None, :, None, None])
    return jnp.stack(outs, axis=-1).mean(-1)


def post_process(graph, bn2, p1):
    """gelu (exact) -> BatchNorm2d(F) eval -> AvgPool2d((1,p1)) -> rearrange."""
    g = jax.nn.gelu(graph, approximate=False)
    gamma, beta, rm, rv, eps = bn2
    scl = (gamma / jnp.sqrt(rv + eps))[None, :, None, None]
    g = (g - rm[None, :, None, None]) * scl + beta[None, :, None, None]
    B, F, M, E = g.shape
    T = E // p1
    g = g[..., :T * p1].reshape(B, F, M, T, p1).mean(-1)
    return g.reshape(B, F * M, T)[:, :, None, :]


def dfast_dca_forward(x, params, cfg):
    h = conv_block(x, params['w_conv'], params['bn1'])
    B, F, N, E = h.shape
    H = cfg.num_heads if E % cfg.num_heads == 0 else 1
    key = inception_block(h, params['key_w'], params['key_b'])
    value = inception_block(h, params['val_w'], params['val_b'])
    graph = dca_attention(h, key, value, params['wq'], params['bq'], H, cfg.sparsity)
    return post_process(graph, params['bn2'], cfg.p1)


# --------------------------- pure-JAX reference ------------------------------
def attention_reference(hidden, key, value, wq, bq, num_heads, sparsity):
    B, F, N, E = hidden.shape
    D = wq.shape[1]
    H = num_heads
    Eh = E // H
    scale = 1.0 / math.sqrt(E)
    q = jnp.einsum('fdn,bfne->bfde', wq, hidden) + bq[None]
    qh = q.reshape(B, F, D, H, Eh)
    kh = key.reshape(B, F, N, H, Eh)
    vh = value.reshape(B, F, N, H, Eh)
    score = jnp.einsum('bfmhe,bfnhe->bfhmn', qh, kh) * scale
    k_keep = int(sparsity * N)
    thresh = lax.top_k(score, k_keep)[0][..., -1:]
    score = jnp.where(score < thresh, jnp.finfo(score.dtype).min, score)
    adj = jax.nn.softmax(score, axis=-1)
    g = jnp.einsum('bfhmn,bfnhe->bfmhe', adj, vh) + qh
    return g.reshape(B, F, D, H * Eh)


# -------------------------------- main ---------------------------------------
if __name__ == "__main__":
    cfg = Cfg()
    F, N, D, p1 = cfg.num_kernels, cfg.node_size, cfg.D, cfg.p1
    kl = cfg.frequency // 2
    B, T = 2, 16

    keys = jax.random.split(jax.random.PRNGKey(0), 16)
    x = jax.random.normal(keys[0], (B, 1, N, T), dtype=jnp.float32)

    ar = jnp.arange(F, dtype=jnp.float32)
    params = {
        'w_conv': 0.1 * jax.random.normal(keys[1], (F, 1, 1, kl), jnp.float32),
        # BatchNorm2d(F, False) -> eps = 0.0
        'bn1': (1.0 + 0.1 * ar, 0.05 * ar, 0.02 * ar, 1.0 + 0.1 * ar, 0.0),
        'key_w': [math.sqrt(2.0 / (2 * i + 1)) *
                  jax.random.normal(keys[2 + i], (F, 1, 1, 2 * i + 1), jnp.float32)
                  for i in range(3)],
        'key_b': [jnp.zeros((F,), jnp.float32) for _ in range(3)],
        'val_w': [math.sqrt(2.0 / (2 * i + 1)) *
                  jax.random.normal(keys[5 + i], (F, 1, 1, 2 * i + 1), jnp.float32)
                  for i in range(3)],
        'val_b': [jnp.zeros((F,), jnp.float32) for _ in range(3)],
        'wq': (1.0 / math.sqrt(N)) * jax.random.normal(keys[8], (F, D, N), jnp.float32),
        'bq': 0.1 * jax.random.normal(keys[9], (F, D, 1), jnp.float32),
        'bn2': (1.0 + 0.05 * ar, 0.02 * ar, 0.01 * ar, 1.0 + 0.2 * ar, 1e-5),
    }

    out = jax.block_until_ready(dfast_dca_forward(x, params, cfg))

    # correctness check against a pure-JAX implementation of the same math
    h = conv_block(x, params['w_conv'], params['bn1'])
    E = h.shape[-1]
    H = cfg.num_heads if E % cfg.num_heads == 0 else 1
    key_f = inception_block(h, params['key_w'], params['key_b'])
    val_f = inception_block(h, params['val_w'], params['val_b'])
    ref_graph = attention_reference(h, key_f, val_f, params['wq'], params['bq'],
                                    H, cfg.sparsity)
    ref = post_process(ref_graph, params['bn2'], cfg.p1)

    assert out.shape == (B, F * D, 1, E // p1), out.shape
    if not jnp.allclose(out, ref, atol=1e-4, rtol=1e-4):
        raise AssertionError("Pallas kernel output mismatch vs. JAX reference")
    print("KERNEL_OK")
</pallas_src>

<mosaic_0001>
module attributes {stable_mosaic.version = 11 : i64} {
  func.func @_dca_attention_kernel(%arg0: i32, %arg1: memref<1x8x16x8xf32, #tpu.memory_space<vmem>>, %arg2: memref<1x8x16x8xf32, #tpu.memory_space<vmem>>, %arg3: memref<1x8x16x8xf32, #tpu.memory_space<vmem>>, %arg4: memref<8x4x16xf32, #tpu.memory_space<vmem>>, %arg5: memref<8x4x1xf32, #tpu.memory_space<vmem>>, %arg6: memref<1x4x64xf32, #tpu.memory_space<vmem>>) attributes {dimension_semantics = [#tpu.dimension_semantics<parallel>], iteration_bounds = array<i64: 2>, scalar_prefetch = 0 : i64, scratch_operands = 0 : i64, tpu.core_type = #tpu.core_type<tc>, window_params = [{transform_indices = @transform_0, window_bounds = array<i64: 1, 8, 16, 8>}, {transform_indices = @transform_1, window_bounds = array<i64: 1, 8, 16, 8>}, {transform_indices = @transform_2, window_bounds = array<i64: 1, 8, 16, 8>}, {pipeline_mode = #tpu.pipeline_mode<synchronous>, transform_indices = @transform_3, window_bounds = array<i64: 8, 4, 16>}, {pipeline_mode = #tpu.pipeline_mode<synchronous>, transform_indices = @transform_4, window_bounds = array<i64: 8, 4, 1>}, {transform_indices = @transform_5, window_bounds = array<i64: 1, 4, 64>}]} {
    %c0 = arith.constant 0 : index
    %c0_0 = arith.constant 0 : index
    %c0_1 = arith.constant 0 : index
    %c0_2 = arith.constant 0 : index
    %0 = vector.load %arg1[%c0, %c0_0, %c0_1, %c0_2] : memref<1x8x16x8xf32, #tpu.memory_space<vmem>>, vector<1x8x16x8xf32>
    %1 = vector.shape_cast %0 : vector<1x8x16x8xf32> to vector<8x16x8xf32>
    %c0_3 = arith.constant 0 : index
    %c0_4 = arith.constant 0 : index
    %c0_5 = arith.constant 0 : index
    %c0_6 = arith.constant 0 : index
    %2 = vector.load %arg2[%c0_3, %c0_4, %c0_5, %c0_6] : memref<1x8x16x8xf32, #tpu.memory_space<vmem>>, vector<1x8x16x8xf32>
    %3 = vector.shape_cast %2 : vector<1x8x16x8xf32> to vector<8x16x8xf32>
    %c0_7 = arith.constant 0 : index
    %c0_8 = arith.constant 0 : index
    %c0_9 = arith.constant 0 : index
    %c0_10 = arith.constant 0 : index
    %4 = vector.load %arg3[%c0_7, %c0_8, %c0_9, %c0_10] : memref<1x8x16x8xf32, #tpu.memory_space<vmem>>, vector<1x8x16x8xf32>
    %5 = vector.shape_cast %4 : vector<1x8x16x8xf32> to vector<8x16x8xf32>
    %c0_11 = arith.constant 0 : index
    %c0_12 = arith.constant 0 : index
    %c0_13 = arith.constant 0 : index
    %6 = vector.load %arg4[%c0_11, %c0_12, %c0_13] : memref<8x4x16xf32, #tpu.memory_space<vmem>>, vector<8x4x16xf32>
    %c0_14 = arith.constant 0 : index
    %c0_15 = arith.constant 0 : index
    %c0_16 = arith.constant 0 : index
    %7 = vector.load %arg5[%c0_14, %c0_15, %c0_16] : memref<8x4x1xf32, #tpu.memory_space<vmem>>, vector<8x4x1xf32>
    %cst = arith.constant dense<0.000000e+00> : vector<8x4x8xf32>
    %8 = tpu.matmul %6, %1, %cst {dimension_numbers = #tpu.dot_dimension_numbers<[2], [1], [1], [2], [0, 0, 0, 1, 1, 2], [0], [0]>} : vector<8x4x16xf32>, vector<8x16x8xf32>, vector<8x4x8xf32> -> vector<8x4x8xf32>
    %9 = vector.broadcast %7 : vector<8x4x1xf32> to vector<8x4x8xf32>
    %10 = arith.addf %8, %9 : vector<8x4x8xf32>
    %cst_17 = arith.constant dense<0.000000e+00> : vector<8x4x16xf32>
    %11 = tpu.matmul %10, %3, %cst_17 {dimension_numbers = #tpu.dot_dimension_numbers<[2], [2], [1], [1], [0, 0, 0, 1, 1, 1], [0], [0]>} : vector<8x4x8xf32>, vector<8x16x8xf32>, vector<8x4x16xf32> -> vector<8x4x16xf32>
    %cst_18 = arith.constant 2.500000e-01 : f32
    %12 = vector.broadcast %cst_18 : f32 to vector<8x4x16xf32>
    %13 = arith.mulf %11, %12 : vector<8x4x16xf32>
    %14 = vector.shape_cast %13 : vector<8x4x16xf32> to vector<8x4x16x1xf32>
    %15 = vector.shape_cast %13 : vector<8x4x16xf32> to vector<8x4x1x16xf32>
    %16 = vector.broadcast %14 : vector<8x4x16x1xf32> to vector<8x4x16x16xf32>
    %17 = vector.broadcast %15 : vector<8x4x1x16xf32> to vector<8x4x16x16xf32>
    %18 = arith.cmpf ogt, %16, %17 : vector<8x4x16x16xf32>
    %19 = arith.extui %18 : vector<8x4x16x16xi1> to vector<8x4x16x16xi32>
    %20 = arith.sitofp %19 : vector<8x4x16x16xi32> to vector<8x4x16x16xf32>
    %cst_19 = arith.constant dense<0.000000e+00> : vector<8x4x16xf32>
    %21 = vector.multi_reduction <add>, %20, %cst_19 [2] : vector<8x4x16x16xf32> to vector<8x4x16xf32>
    %cst_20 = arith.constant 8.000000e+00 : f32
    %22 = vector.broadcast %cst_20 : f32 to vector<8x4x16xf32>
    %23 = arith.cmpf olt, %21, %22 : vector<8x4x16xf32>
    %cst_21 = arith.constant -3.40282347E+38 : f32
    %24 = vector.broadcast %cst_21 : f32 to vector<8x4x16xf32>
    %25 = arith.select %23, %13, %24 : vector<8x4x16xi1>, vector<8x4x16xf32>
    %cst_22 = arith.constant dense<0xFF800000> : vector<8x4xf32>
    %26 = vector.multi_reduction <maximumf>, %25, %cst_22 [2] : vector<8x4x16xf32> to vector<8x4xf32>
    %27 = vector.shape_cast %26 : vector<8x4xf32> to vector<8x4x1xf32>
    %28 = vector.broadcast %27 : vector<8x4x1xf32> to vector<8x4x16xf32>
    %29 = arith.subf %25, %28 : vector<8x4x16xf32>
    %30 = math.exp %29 : vector<8x4x16xf32>
    %cst_23 = arith.constant dense<0.000000e+00> : vector<8x4xf32>
    %31 = vector.multi_reduction <add>, %30, %cst_23 [2] : vector<8x4x16xf32> to vector<8x4xf32>
    %32 = vector.shape_cast %31 : vector<8x4xf32> to vector<8x4x1xf32>
    %33 = tpu.reciprocal %32 : vector<8x4x1xf32> -> vector<8x4x1xf32>
    %cst_24 = arith.constant dense<0.000000e+00> : vector<8x4x8xf32>
    %34 = tpu.matmul %30, %5, %cst_24 {dimension_numbers = #tpu.dot_dimension_numbers<[2], [1], [1], [2], [0, 0, 0, 1, 1, 2], [0], [0]>} : vector<8x4x16xf32>, vector<8x16x8xf32>, vector<8x4x8xf32> -> vector<8x4x8xf32>
    %35 = vector.broadcast %33 : vector<8x4x1xf32> to vector<8x4x8xf32>
    %36 = arith.mulf %34, %35 : vector<8x4x8xf32>
    %37 = arith.addf %36, %10 : vector<8x4x8xf32>
    %38 = tpu.transpose %37, [1, 0, 2] : vector<8x4x8xf32> -> vector<4x8x8xf32>
    %39 = vector.shape_cast %38 : vector<4x8x8xf32> to vector<4x64xf32>
    %c0_25 = arith.constant 0 : index
    %c0_26 = arith.constant 0 : index
    %c0_27 = arith.constant 0 : index
    %40 = vector.load %arg6[%c0_25, %c0_26, %c0_27] : memref<1x4x64xf32, #tpu.memory_space<vmem>>, vector<1x4x64xf32>
    %41 = vector.shape_cast %40 : vector<1x4x64xf32> to vector<4x64xf32>
    %42 = vector.shape_cast %39 : vector<4x64xf32> to vector<1x4x64xf32>
    tpu.vector_store %arg6[%c0_25, %c0_26, %c0_27], %42 {strides = array<i32>} : memref<1x4x64xf32, #tpu.memory_space<vmem>>, vector<1x4x64xf32>,
    return
  }
  func.func @transform_0(%arg0: i32) -> (i32, i32, i32, i32) {
    %c0_i32 = arith.constant 0 : i32
    %c0_i32_0 = arith.constant 0 : i32
    %c0_i32_1 = arith.constant 0 : i32
    %c0_i32_2 = arith.constant 0 : i32
    return %arg0, %c0_i32, %c0_i32_0, %c0_i32_1 : i32, i32, i32, i32
  }
  func.func @transform_1(%arg0: i32) -> (i32, i32, i32, i32) {
    %c0_i32 = arith.constant 0 : i32
    %c0_i32_0 = arith.constant 0 : i32
    %c0_i32_1 = arith.constant 0 : i32
    %c0_i32_2 = arith.constant 0 : i32
    return %arg0, %c0_i32, %c0_i32_0, %c0_i32_1 : i32, i32, i32, i32
  }
  func.func @transform_2(%arg0: i32) -> (i32, i32, i32, i32) {
    %c0_i32 = arith.constant 0 : i32
    %c0_i32_0 = arith.constant 0 : i32
    %c0_i32_1 = arith.constant 0 : i32
    %c0_i32_2 = arith.constant 0 : i32
    return %arg0, %c0_i32, %c0_i32_0, %c0_i32_1 : i32, i32, i32, i32
  }
  func.func @transform_3(%arg0: i32) -> (i32, i32, i32) {
    %c0_i32 = arith.constant 0 : i32
    %c0_i32_0 = arith.constant 0 : i32
    %c0_i32_1 = arith.constant 0 : i32
    %c0_i32_2 = arith.constant 0 : i32
    return %c0_i32, %c0_i32_0, %c0_i32_1 : i32, i32, i32
  }
  func.func @transform_4(%arg0: i32) -> (i32, i32, i32) {
    %c0_i32 = arith.constant 0 : i32
    %c0_i32_0 = arith.constant 0 : i32
    %c0_i32_1 = arith.constant 0 : i32
    %c0_i32_2 = arith.constant 0 : i32
    return %c0_i32, %c0_i32_0, %c0_i32_1 : i32, i32, i32
  }
  func.func @transform_5(%arg0: i32) -> (i32, i32, i32) {
    %c0_i32 = arith.constant 0 : i32
    %c0_i32_0 = arith.constant 0 : i32
    %c0_i32_1 = arith.constant 0 : i32
    return %arg0, %c0_i32, %c0_i32_0 : i32, i32, i32
  }
}

</mosaic_0001>

<llo_original>
// kernel: tpu_custom_call.1
$region0: #{tpu_custom_call.1}
  #allocation0 [shape = 'u32[]', space=smem, size = 0x4, offset = 0x4, fixed_abs, tag = 'smem constant byte address 0x4 - core index']
  #allocation1 [shape = 'u32[144,128]{1,0:T(1,128)}', space=vmem, size = 0x12000, scoped, tag = 'internal scratch']
  %s0 = inlined_call_operand.vmem [shape: f32[2,8,16,8], index: 0, kind: input, shape index: {}]
  %s1 = inlined_call_operand.vmem [shape: f32[2,8,16,8], index: 1, kind: input, shape index: {}]
  %s2 = inlined_call_operand.vmem [shape: f32[2,8,16,8], index: 2, kind: input, shape index: {}]
  %s3 = inlined_call_operand.vmem [shape: f32[8,4,16], index: 3, kind: input, shape index: {}]
  %s4 = inlined_call_operand.vmem [shape: f32[8,4,1], index: 4, kind: input, shape index: {}]
  %s5 = inlined_call_operand.hbm [shape: f32[2,4,64], index: 5, kind: output, shape index: {}]
  %s6 = sld [smem:[#allocation0]]
  $region53: #{tpu_custom_call.1} parent=0
    _
  %s8 = ssub.s32 1, %s6
  %s9 = scalar_select 0, %s8, %s6
  $region1: #{tpu_custom_call.1} parent=0
    #allocation2 [shape = 'u8[4096]{0}', space=vmem, size = 0x1000, scoped, tag = 'output window, operand 0']
    #allocation3 [shape = 's32[2]{0}', space=sflag, size = 0x8, scoped, tag = 'scoped memory for tpu_custom_call.1']
    %10 = vsyncpa [#allocation3], 0
    %s11 = scalar_lea.sflag [#allocation3], 1
    %12 = vsyncpa %s11, 0
    loop: start=0, step=1, limit=4
    $region2: #{tpu_custom_call.1} parent=1 // loop_pre_header
      _
    $region3: #{tpu_custom_call.1} parent=1 // loop_header
      %s14 = sphi 0, %s18
      %p15 = scmp.ge.s32.totalorder %s14, 4
      %s24 = sphi 0, %s26
      %s27 = sphi 0, %s24
      %s28 = sphi 0, %s27
      %s44 = sphi 0, %s28
      %s50 = sphi 0, %s52
      %s53 = sphi 0, %s50
      %s54 = sphi 0, %s53
      %s70 = sphi 0, %s54
      %s76 = sphi 0, %s78
      %s79 = sphi 0, %s76
      %s80 = sphi 0, %s79
      %s96 = sphi 0, %s80
      %s100 = sphi 0, %s100
      %s102 = sphi 0, %s100
      %s103 = sphi 0, %s102
      %s117 = sphi 0, %s103
      %s121 = sphi 0, %s121
      %s123 = sphi 0, %s121
      %s124 = sphi 0, %s123
      %s138 = sphi 0, %s124
      %s144 = sphi 0, %s146
      %s147 = sphi 0, %s144
      %s148 = sphi 0, %s147
      %s164 = sphi 0, %s148
    $region4: #{tpu_custom_call.1} parent=1 // loop_header_branch
      %17 = sbr.rel (%p15) target = $region8
    $region5: #{tpu_custom_call.1} parent=1 // loop_body
      %s19 = ssub.s32 %s14, 1
      %s20 = ssub.s32 %s14, 2
      %s21 = sadd.s32 %s14, 1
      %s22 = ssub.s32 %s14, %s21
      %p23 = scmp.eq.s32.totalorder %s22, 0
      %s25 = sadd.s32 %s24, 1
      %s26 = scalar_select %p23, %s24, %s25
      %p29 = pneg %p23
      %p30 = scmp.eq.s32.totalorder %s14, 1
      %p31 = por %p29, %p30
      %p32 = scmp.ne.s32.totalorder %s24, %s27
      %p33 = scmp.eq.s32.totalorder %s14, 0
      %p34 = por %p32, %p33
      %p35 = scmp.ne.s32.totalorder %s24, %s27
      %p36 = scmp.eq.s32.totalorder %s19, 1
      %p37 = por %p35, %p36
      %p38 = scmp.ne.s32.totalorder %s27, %s28
      %p39 = scmp.eq.s32.totalorder %s19, 0
      %p40 = por %p38, %p39
      %p41 = scmp.ne.s32.totalorder %s27, %s28
      %p42 = scmp.eq.s32.totalorder %s20, 1
      %p43 = por %p41, %p42
      %p45 = scmp.ne.s32.totalorder %s28, %s44
      %p46 = scmp.eq.s32.totalorder %s20, 0
      %p47 = por %p45, %p46
      %s48 = ssub.s32 %s14, %s21
      %p49 = scmp.eq.s32.totalorder %s48, 0
      %s51 = sadd.s32 %s50, 1
      %s52 = scalar_select %p49, %s50, %s51
      %p55 = pneg %p49
      %p56 = scmp.eq.s32.totalorder %s14, 1
      %p57 = por %p55, %p56
      %p58 = scmp.ne.s32.totalorder %s50, %s53
      %p59 = scmp.eq.s32.totalorder %s14, 0
      %p60 = por %p58, %p59
      %p61 = scmp.ne.s32.totalorder %s50, %s53
      %p62 = scmp.eq.s32.totalorder %s19, 1
      %p63 = por %p61, %p62
      %p64 = scmp.ne.s32.totalorder %s53, %s54
      %p65 = scmp.eq.s32.totalorder %s19, 0
      %p66 = por %p64, %p65
      %p67 = scmp.ne.s32.totalorder %s53, %s54
      %p68 = scmp.eq.s32.totalorder %s20, 1
      %p69 = por %p67, %p68
      %p71 = scmp.ne.s32.totalorder %s54, %s70
      %p72 = scmp.eq.s32.totalorder %s20, 0
      %p73 = por %p71, %p72
      %s74 = ssub.s32 %s14, %s21
      %p75 = scmp.eq.s32.totalorder %s74, 0
      %s77 = sadd.s32 %s76, 1
      %s78 = scalar_select %p75, %s76, %s77
      %p81 = pneg %p75
      %p82 = scmp.eq.s32.totalorder %s14, 1
      %p83 = por %p81, %p82
      %p84 = scmp.ne.s32.totalorder %s76, %s79
      %p85 = scmp.eq.s32.totalorder %s14, 0
      %p86 = por %p84, %p85
      %p87 = scmp.ne.s32.totalorder %s76, %s79
      %p88 = scmp.eq.s32.totalorder %s19, 1
      %p89 = por %p87, %p88
      %p90 = scmp.ne.s32.totalorder %s79, %s80
      %p91 = scmp.eq.s32.totalorder %s19, 0
      %p92 = por %p90, %p91
      %p93 = scmp.ne.s32.totalorder %s79, %s80
      %p94 = scmp.eq.s32.totalorder %s20, 1
      %p95 = por %p93, %p94
      %p97 = scmp.ne.s32.totalorder %s80, %s96
      %p98 = scmp.eq.s32.totalorder %s20, 0
      %p99 = por %p97, %p98
      %s101 = sadd.s32 %s100, 1
      %p104 = scmp.eq.s32.totalorder %s14, 1
      %p105 = scmp.ne.s32.totalorder %s100, %s102
      %p106 = scmp.eq.s32.totalorder %s14, 0
      %p107 = por %p105, %p106
      %p108 = scmp.ne.s32.totalorder %s100, %s102
      %p109 = scmp.eq.s32.totalorder %s19, 1
      %p110 = por %p108, %p109
      %p111 = scmp.ne.s32.totalorder %s102, %s103
      %p112 = scmp.eq.s32.totalorder %s19, 0
      %p113 = por %p111, %p112
      %p114 = scmp.ne.s32.totalorder %s102, %s103
      %p115 = scmp.eq.s32.totalorder %s20, 1
      %p116 = por %p114, %p115
      %p118 = scmp.ne.s32.totalorder %s103, %s117
      %p119 = scmp.eq.s32.totalorder %s20, 0
      %p120 = por %p118, %p119
      %s122 = sadd.s32 %s121, 1
      %p125 = scmp.eq.s32.totalorder %s14, 1
      %p126 = scmp.ne.s32.totalorder %s121, %s123
      %p127 = scmp.eq.s32.totalorder %s14, 0
      %p128 = por %p126, %p127
      %p129 = scmp.ne.s32.totalorder %s121, %s123
      %p130 = scmp.eq.s32.totalorder %s19, 1
      %p131 = por %p129, %p130
      %p132 = scmp.ne.s32.totalorder %s123, %s124
      %p133 = scmp.eq.s32.totalorder %s19, 0
      %p134 = por %p132, %p133
      %p135 = scmp.ne.s32.totalorder %s123, %s124
      %p136 = scmp.eq.s32.totalorder %s20, 1
      %p137 = por %p135, %p136
      %p139 = scmp.ne.s32.totalorder %s124, %s138
      %p140 = scmp.eq.s32.totalorder %s20, 0
      %p141 = por %p139, %p140
      %s142 = ssub.s32 %s14, %s21
      %p143 = scmp.eq.s32.totalorder %s142, 0
      %s145 = sadd.s32 %s144, 1
      %s146 = scalar_select %p143, %s144, %s145
      %p149 = pneg %p143
      %p150 = scmp.eq.s32.totalorder %s14, 1
      %p151 = por %p149, %p150
      %p152 = scmp.ne.s32.totalorder %s144, %s147
      %p153 = scmp.eq.s32.totalorder %s14, 0
      %p154 = por %p152, %p153
      %p155 = scmp.ne.s32.totalorder %s144, %s147
      %p156 = scmp.eq.s32.totalorder %s19, 1
      %p157 = por %p155, %p156
      %p158 = scmp.ne.s32.totalorder %s147, %s148
      %p159 = scmp.eq.s32.totalorder %s19, 0
      %p160 = por %p158, %p159
      %p161 = scmp.ne.s32.totalorder %s147, %s148
      %p162 = scmp.eq.s32.totalorder %s20, 1
      %p163 = por %p161, %p162
      %p165 = scmp.ne.s32.totalorder %s148, %s164
      %p166 = scmp.eq.s32.totalorder %s20, 0
      %p167 = por %p165, %p166
      %p168 = scmp.le.s32.totalorder 1, %s14
      %p169 = scmp.lt.s32.totalorder %s14, 3
      %p170 = pnand %p168, %p169
      %p171 = pneg %p170
      // Predicated region
      $region9: #{tpu_custom_call.1} parent=5 // pred_check
        _
      $region10: #{tpu_custom_call.1} parent=5 // pred_check_branch
        %173 = sbr.rel (%p170) target = $region12
      $region11: #{tpu_custom_call.1} parent=5 // pred_region
        %s174 = ssub.s32 %s14, 1
        // Predicated region
        $region13: #{tpu_custom_call.1} parent=11 // pred_check
          %p175 = pneg %p113
        $region14: #{tpu_custom_call.1} parent=11 // pred_check_branch
          %177 = sbr.rel (%p175) target = $region16
        $region15: #{tpu_custom_call.1} parent=11 // pred_region
          _
        $region16: #{tpu_custom_call.1} parent=11 // pred_fallthru
          _
        // Predicated region
        $region17: #{tpu_custom_call.1} parent=11 // pred_check
          %p178 = pneg %p134
        $region18: #{tpu_custom_call.1} parent=11 // pred_check_branch
          %180 = sbr.rel (%p178) target = $region20
        $region19: #{tpu_custom_call.1} parent=11 // pred_region
          _
        $region20: #{tpu_custom_call.1} parent=11 // pred_fallthru
          _
      $region12: #{tpu_custom_call.1} parent=5 // pred_fallthru
        _
      %p181 = scmp.lt.s32.totalorder %s14, 2
      // Predicated region
      $region21: #{tpu_custom_call.1} parent=5 // pred_check
        %p182 = pneg %p181
      $region22: #{tpu_custom_call.1} parent=5 // pred_check_branch
        %184 = sbr.rel (%p182) target = $region24
      $region23: #{tpu_custom_call.1} parent=5 // pred_region
        // Predicated region
        $region25: #{tpu_custom_call.1} parent=23 // pred_check
          %p185 = pneg %p34
        $region26: #{tpu_custom_call.1} parent=23 // pred_check_branch
          %187 = sbr.rel (%p185) target = $region28
        $region27: #{tpu_custom_call.1} parent=23 // pred_region
          %p188 = scmp.lt.s32.totalorder %s14, 1
          %s189 = scalar_select %p188, %s14, 1
          %s190 = smul.addr %s189, 16
          %s191 = smul.addr %s190, 8
          %s192 = scalar_lea.vmem %s0, %s191
        $region28: #{tpu_custom_call.1} parent=23 // pred_fallthru
          _
        // Predicated region
        $region29: #{tpu_custom_call.1} parent=23 // pred_check
          %p193 = pneg %p60
        $region30: #{tpu_custom_call.1} parent=23 // pred_check_branch
          %195 = sbr.rel (%p193) target = $region32
        $region31: #{tpu_custom_call.1} parent=23 // pred_region
          %p196 = scmp.lt.s32.totalorder %s14, 1
          %s197 = scalar_select %p196, %s14, 1
          %s198 = smul.addr %s197, 16
          %s199 = smul.addr %s198, 8
          %s200 = scalar_lea.vmem %s1, %s199
        $region32: #{tpu_custom_call.1} parent=23 // pred_fallthru
          _
        // Predicated region
        $region33: #{tpu_custom_call.1} parent=23 // pred_check
          %p201 = pneg %p86
        $region34: #{tpu_custom_call.1} parent=23 // pred_check_branch
          %203 = sbr.rel (%p201) target = $region36
        $region35: #{tpu_custom_call.1} parent=23 // pred_region
          %p204 = scmp.lt.s32.totalorder %s14, 1
          %s205 = scalar_select %p204, %s14, 1
          %s206 = smul.addr %s205, 16
          %s207 = smul.addr %s206, 8
          %s208 = scalar_lea.vmem %s2, %s207
        $region36: #{tpu_custom_call.1} parent=23 // pred_fallthru
          _
      $region24: #{tpu_custom_call.1} parent=5 // pred_fallthru
        _
      %p209 = scmp.le.s32.totalorder 1, %s14
      %p210 = scmp.lt.s32.totalorder %s14, 3
      %p211 = pnand %p209, %p210
      %p212 = pneg %p211
      // Predicated region
      $region37: #{tpu_custom_call.1} parent=5 // pred_check
        _
      $region38: #{tpu_custom_call.1} parent=5 // pred_check_branch
        %214 = sbr.rel (%p211) target = $region40
      $region39: #{tpu_custom_call.1} parent=5 // pred_region
        %s215 = ssub.s32 %s14, 1
        %p216 = scmp.lt.s32.totalorder %s19, 1
        %s217 = scalar_select %p216, %s19, 1
        %s218 = smul.addr %s217, 16
        %s219 = smul.addr %s218, 8
        %s220 = scalar_lea.vmem %s0, %s219
        %p221 = pneg %p40
        %p222 = pneg %p37
        %p223 = scmp.lt.s32.totalorder %s19, 1
        %s224 = scalar_select %p223, %s19, 1
        %s225 = smul.addr %s224, 16
        %s226 = smul.addr %s225, 8
        %s227 = scalar_lea.vmem %s1, %s226
        %p228 = pneg %p66
        %p229 = pneg %p63
        %p230 = scmp.lt.s32.totalorder %s19, 1
        %s231 = scalar_select %p230, %s19, 1
        %s232 = smul.addr %s231, 16
        %s233 = smul.addr %s232, 8
        %s234 = scalar_lea.vmem %s2, %s233
        %p235 = pneg %p92
        %p236 = pneg %p89
        %p237 = pneg %p113
        %p238 = pneg %p110
        %p239 = pneg %p134
        %p240 = pneg %p131
        %p241 = pneg %p160
        %p242 = pneg %p157
        %s243 = sand.u32 %s147, 1
        %s244 = scalar_lea.sflag [#allocation3], %s243
        %s245 = sand.u32 %s147, 1
        %s246 = smul.addr %s245, 4
        %s247 = scalar_lea.vmem [#allocation2], %s246
        %p248 = scmp.lt.s32.totalorder %s19, 1
        %s249 = scalar_select %p248, %s19, 1
        %s250 = smul.addr %s249, 16
        %s251 = smul.addr %s250, 8
        %s252 = scalar_lea.vmem %s0, %s251
        %p253 = scmp.lt.s32.totalorder %s19, 1
        %s254 = scalar_select %p253, %s19, 1
        %s255 = smul.addr %s254, 16
        %s256 = smul.addr %s255, 8
        %s257 = scalar_lea.vmem %s1, %s256
        %p258 = scmp.lt.s32.totalorder %s19, 1
        %s259 = scalar_select %p258, %s19, 1
        %s260 = smul.addr %s259, 16
        %s261 = smul.addr %s260, 8
        %s262 = scalar_lea.vmem %s2, %s261
        %v263 = vld [vmem:[%s252] sm:$0xff]
        %v264 = vld [vmem:[%s252 + $0x8] sm:$0xff]
        %v265 = vld [vmem:[%s252 + $0x10] sm:$0xff]
        %v266 = vld [vmem:[%s252 + $0x18] sm:$0xff]
        %v267 = vld [vmem:[%s252 + $0x20] sm:$0xff]
        %v268 = vld [vmem:[%s252 + $0x28] sm:$0xff]
        %v269 = vld [vmem:[%s252 + $0x30] sm:$0xff]
        %v270 = vld [vmem:[%s252 + $0x38] sm:$0xff]
        %v271 = vld [vmem:[%s252 + $0x40] sm:$0xff]
        %v272 = vld [vmem:[%s252 + $0x48] sm:$0xff]
        %v273 = vld [vmem:[%s252 + $0x50] sm:$0xff]
        %v274 = vld [vmem:[%s252 + $0x58] sm:$0xff]
        %v275 = vld [vmem:[%s252 + $0x60] sm:$0xff]
        %v276 = vld [vmem:[%s252 + $0x68] sm:$0xff]
        %v277 = vld [vmem:[%s252 + $0x70] sm:$0xff]
        %v278 = vld [vmem:[%s252 + $0x78] sm:$0xff]
        %v279 = vld [vmem:[%s257] sm:$0xff]
        %v280 = vld [vmem:[%s257 + $0x8] sm:$0xff]
        %v281 = vld [vmem:[%s257 + $0x10] sm:$0xff]
        %v282 = vld [vmem:[%s257 + $0x18] sm:$0xff]
        %v283 = vld [vmem:[%s257 + $0x20] sm:$0xff]
        %v284 = vld [vmem:[%s257 + $0x28] sm:$0xff]
        %v285 = vld [vmem:[%s257 + $0x30] sm:$0xff]
        %v286 = vld [vmem:[%s257 + $0x38] sm:$0xff]
        %v287 = vld [vmem:[%s257 + $0x40] sm:$0xff]
        %v288 = vld [vmem:[%s257 + $0x48] sm:$0xff]
        %v289 = vld [vmem:[%s257 + $0x50] sm:$0xff]
        %v290 = vld [vmem:[%s257 + $0x58] sm:$0xff]
        %v291 = vld [vmem:[%s257 + $0x60] sm:$0xff]
        %v292 = vld [vmem:[%s257 + $0x68] sm:$0xff]
        %v293 = vld [vmem:[%s257 + $0x70] sm:$0xff]
        %v294 = vld [vmem:[%s257 + $0x78] sm:$0xff]
        %v295 = vld [vmem:[%s262] sm:$0xff]
        %v296 = vld [vmem:[%s262 + $0x8] sm:$0xff]
        %v297 = vld [vmem:[%s262 + $0x10] sm:$0xff]
        %v298 = vld [vmem:[%s262 + $0x18] sm:$0xff]
        %v299 = vld [vmem:[%s262 + $0x20] sm:$0xff]
        %v300 = vld [vmem:[%s262 + $0x28] sm:$0xff]
        %v301 = vld [vmem:[%s262 + $0x30] sm:$0xff]
        %v302 = vld [vmem:[%s262 + $0x38] sm:$0xff]
        %v303 = vld [vmem:[%s262 + $0x40] sm:$0xff]
        %v304 = vld [vmem:[%s262 + $0x48] sm:$0xff]
        %v305 = vld [vmem:[%s262 + $0x50] sm:$0xff]
        %v306 = vld [vmem:[%s262 + $0x58] sm:$0xff]
        %v307 = vld [vmem:[%s262 + $0x60] sm:$0xff]
        %v308 = vld [vmem:[%s262 + $0x68] sm:$0xff]
        %v309 = vld [vmem:[%s262 + $0x70] sm:$0xff]
        %v310 = vld [vmem:[%s262 + $0x78] sm:$0xff]
        %v311 = vld [vmem:[%s3] sm:$0xf]
        %v312 = vld [vmem:[%s3 + $0x4] sm:$0xf]
        %v313 = vld [vmem:[%s3 + $0x8] sm:$0xf]
        %v314 = vld [vmem:[%s3 + $0xc] sm:$0xf]
        %v315 = vld [vmem:[%s3 + $0x10] sm:$0xf]
        %v316 = vld [vmem:[%s3 + $0x14] sm:$0xf]
        %v317 = vld [vmem:[%s3 + $0x18] sm:$0xf]
        %v318 = vld [vmem:[%s3 + $0x1c] sm:$0xf]
        %v319 = vld [vmem:[%s4] sm:$0xf]
        %v320 = vld [vmem:[%s4 + $0x4] sm:$0xf]
        %v321 = vld [vmem:[%s4 + $0x8] sm:$0xf]
        %v322 = vld [vmem:[%s4 + $0xc] sm:$0xf]
        %v323 = vld [vmem:[%s4 + $0x10] sm:$0xf]
        %v324 = vld [vmem:[%s4 + $0x14] sm:$0xf]
        %v325 = vld [vmem:[%s4 + $0x18] sm:$0xf]
        %v326 = vld [vmem:[%s4 + $0x1c] sm:$0xf]
        %328 = vset.pattern.permute.xlu0 0
        %329 = vperm.xlu0 %328, %v319
        %v330 = vpop.permute.xlu0 %329
        %333 = vset.pattern.permute.xlu0 0
        %334 = vperm.xlu0 %333, %v320
        %v335 = vpop.permute.xlu0 %334
        %338 = vset.pattern.permute.xlu0 0
        %339 = vperm.xlu0 %338, %v321
        %v340 = vpop.permute.xlu0 %339
        %343 = vset.pattern.permute.xlu0 0
        %344 = vperm.xlu0 %343, %v322
        %v345 = vpop.permute.xlu0 %344
        %348 = vset.pattern.permute.xlu0 0
        %349 = vperm.xlu0 %348, %v323
        %v350 = vpop.permute.xlu0 %349
        %353 = vset.pattern.permute.xlu0 0
        %354 = vperm.xlu0 %353, %v324
        %v355 = vpop.permute.xlu0 %354
        %358 = vset.pattern.permute.xlu0 0
        %359 = vperm.xlu0 %358, %v325
        %v360 = vpop.permute.xlu0 %359
        %363 = vset.pattern.permute.xlu0 0
        %364 = vperm.xlu0 %363, %v326
        %v365 = vpop.permute.xlu0 %364
        %vm367 = vcmask 130048
        %v369 = vsel %vm367, %v311, 0
        %371 = vmatprep.subr.mxu0 0.0
        %372 = vmatpush1.msra.mxu0 0.0
        %373 = vmatprep.subr.mxu0 0.0
        %374 = vmatpush1.msra.mxu0 0.0
        %375 = vmatprep.subr.mxu0 0.0
        %376 = vmatpush1.msra.mxu0 0.0
        %377 = vmatprep.subr.mxu0 0.0
        %378 = vmatpush1.msra.mxu0 0.0
        %379 = vmatprep.subr.mxu0 0.0
        %380 = vmatpush1.msra.mxu0 0.0
        %381 = vmatprep.subr.mxu0 0.0
        %382 = vmatpush1.msra.mxu0 0.0
        %383 = vmatprep.subr.mxu0 0.0
        %384 = vmatpush1.msra.mxu0 0.0
        %385 = vmatprep.subr.mxu0 0.0
        %386 = vmatpush1.msra.mxu0 0.0
        %387 = vmatprep.subr.mxu0 0.0
        %388 = vmatpush1.msra.mxu0 0.0
        %389 = vmatprep.subr.mxu0 0.0
        %390 = vmatpush1.msra.mxu0 0.0
        %391 = vmatprep.subr.mxu0 0.0
        %392 = vmatpush1.msra.mxu0 0.0
        %393 = vmatprep.subr.mxu0 0.0
        %394 = vmatpush1.msra.mxu0 0.0
        %395 = vmatprep.subr.mxu0 0.0
        %396 = vmatpush1.msra.mxu0 0.0
        %397 = vmatprep.subr.mxu0 0.0
        %398 = vmatpush1.msra.mxu0 0.0
        %399 = vmatprep.subr.mxu0 0.0
        %400 = vmatpush1.msra.mxu0 %v264
        %401 = vmatprep.subr.mxu0 0.0
        %402 = vmatpush1.msra.mxu0 %v263
        %403 = vmatprep.subr.mxu0 0.0
        %404 = vmatpush2.msra.mxu0 0.0
        %405 = vmatprep.subr.mxu0 0.0
        %406 = vmatpush2.msra.mxu0 0.0
        %407 = vmatprep.subr.mxu0 0.0
        %408 = vmatpush2.msra.mxu0 0.0
        %409 = vmatprep.subr.mxu0 0.0
        %410 = vmatpush2.msra.mxu0 0.0
        %411 = vmatprep.subr.mxu0 0.0
        %412 = vmatpush2.msra.mxu0 0.0
        %413 = vmatprep.subr.mxu0 0.0
        %414 = vmatpush2.msra.mxu0 0.0
        %415 = vmatprep.subr.mxu0 0.0
        %416 = vmatpush2.msra.mxu0 0.0
        %417 = vmatprep.subr.mxu0 0.0
        %418 = vmatpush2.msra.mxu0 0.0
        %419 = vmatprep.subr.mxu0 0.0
        %420 = vmatpush2.msra.mxu0 0.0
        %421 = vmatprep.subr.mxu0 0.0
        %422 = vmatpush2.msra.mxu0 0.0
        %423 = vmatprep.subr.mxu0 0.0
        %424 = vmatpush2.msra.mxu0 0.0
        %425 = vmatprep.subr.mxu0 0.0
        %426 = vmatpush2.msra.mxu0 0.0
        %427 = vmatprep.subr.mxu0 0.0
        %428 = vmatpush2.msra.mxu0 0.0
        %429 = vmatprep.subr.mxu0 0.0
        %430 = vmatpush2.msra.mxu0 0.0
        %431 = vmatprep.subr.mxu0 0.0
        %432 = vmatpush2.msra.mxu0 0.0
        %433 = vmatprep.subr.mxu0 0.0
        %434 = vmatpush2.msra.mxu0 0.0
        %435 = vmatprep.mubr.f32.mxu0 0.0
        %436 = vmatmul.mubr.f32.gmra.mxu0 %v369
        %v437 = vpop.f32.mrf.mxu0
        %v438 = vadd.f32 %v330, %v437
        %v439 = vpop.f32.mrf.mxu0
        %440 = vdwg.mxu0
        %v442 = vsel %vm367, %v312, 0
        %444 = vmatprep.subr.mxu0 0.0
        %445 = vmatpush1.msra.mxu0 0.0
        %446 = vmatprep.subr.mxu0 0.0
        %447 = vmatpush1.msra.mxu0 0.0
        %448 = vmatprep.subr.mxu0 0.0
        %449 = vmatpush1.msra.mxu0 0.0
        %450 = vmatprep.subr.mxu0 0.0
        %451 = vmatpush1.msra.mxu0 0.0
        %452 = vmatprep.subr.mxu0 0.0
        %453 = vmatpush1.msra.mxu0 0.0
        %454 = vmatprep.subr.mxu0 0.0
        %455 = vmatpush1.msra.mxu0 0.0
        %456 = vmatprep.subr.mxu0 0.0
        %457 = vmatpush1.msra.mxu0 0.0
        %458 = vmatprep.subr.mxu0 0.0
        %459 = vmatpush1.msra.mxu0 0.0
        %460 = vmatprep.subr.mxu0 0.0
        %461 = vmatpush1.msra.mxu0 0.0
        %462 = vmatprep.subr.mxu0 0.0
        %463 = vmatpush1.msra.mxu0 0.0
        %464 = vmatprep.subr.mxu0 0.0
        %465 = vmatpush1.msra.mxu0 0.0
        %466 = vmatprep.subr.mxu0 0.0
        %467 = vmatpush1.msra.mxu0 0.0
        %468 = vmatprep.subr.mxu0 0.0
        %469 = vmatpush1.msra.mxu0 0.0
        %470 = vmatprep.subr.mxu0 0.0
        %471 = vmatpush1.msra.mxu0 0.0
        %472 = vmatprep.subr.mxu0 0.0
        %473 = vmatpush1.msra.mxu0 %v266
        %474 = vmatprep.subr.mxu0 0.0
        %475 = vmatpush1.msra.mxu0 %v265
        %476 = vmatprep.subr.mxu0 0.0
        %477 = vmatpush2.msra.mxu0 0.0
        %478 = vmatprep.subr.mxu0 0.0
        %479 = vmatpush2.msra.mxu0 0.0
        %480 = vmatprep.subr.mxu0 0.0
        %481 = vmatpush2.msra.mxu0 0.0
        %482 = vmatprep.subr.mxu0 0.0
        %483 = vmatpush2.msra.mxu0 0.0
        %484 = vmatprep.subr.mxu0 0.0
        %485 = vmatpush2.msra.mxu0 0.0
        %486 = vmatprep.subr.mxu0 0.0
        %487 = vmatpush2.msra.mxu0 0.0
        %488 = vmatprep.subr.mxu0 0.0
        %489 = vmatpush2.msra.mxu0 0.0
        %490 = vmatprep.subr.mxu0 0.0
        %491 = vmatpush2.msra.mxu0 0.0
        %492 = vmatprep.subr.mxu0 0.0
        %493 = vmatpush2.msra.mxu0 0.0
        %494 = vmatprep.subr.mxu0 0.0
        %495 = vmatpush2.msra.mxu0 0.0
        %496 = vmatprep.subr.mxu0 0.0
        %497 = vmatpush2.msra.mxu0 0.0
        %498 = vmatprep.subr.mxu0 0.0
        %499 = vmatpush2.msra.mxu0 0.0
        %500 = vmatprep.subr.mxu0 0.0
        %501 = vmatpush2.msra.mxu0 0.0
        %502 = vmatprep.subr.mxu0 0.0
        %503 = vmatpush2.msra.mxu0 0.0
        %504 = vmatprep.subr.mxu0 0.0
        %505 = vmatpush2.msra.mxu0 0.0
        %506 = vmatprep.subr.mxu0 0.0
        %507 = vmatpush2.msra.mxu0 0.0
        %508 = vmatprep.mubr.f32.mxu0 0.0
        %509 = vmatmul.mubr.f32.gmra.mxu0 %v442
        %v510 = vpop.f32.mrf.mxu0
        %v511 = vadd.f32 %v335, %v510
        %v512 = vpop.f32.mrf.mxu0
        %513 = vdwg.mxu0
        %v515 = vsel %vm367, %v313, 0
        %517 = vmatprep.subr.mxu0 0.0
        %518 = vmatpush1.msra.mxu0 0.0
        %519 = vmatprep.subr.mxu0 0.0
        %520 = vmatpush1.msra.mxu0 0.0
        %521 = vmatprep.subr.mxu0 0.0
        %522 = vmatpush1.msra.mxu0 0.0
        %523 = vmatprep.subr.mxu0 0.0
        %524 = vmatpush1.msra.mxu0 0.0
        %525 = vmatprep.subr.mxu0 0.0
        %526 = vmatpush1.msra.mxu0 0.0
        %527 = vmatprep.subr.mxu0 0.0
        %528 = vmatpush1.msra.mxu0 0.0
        %529 = vmatprep.subr.mxu0 0.0
        %530 = vmatpush1.msra.mxu0 0.0
        %531 = vmatprep.subr.mxu0 0.0
        %532 = vmatpush1.msra.mxu0 0.0
        %533 = vmatprep.subr.mxu0 0.0
        %534 = vmatpush1.msra.mxu0 0.0
        %535 = vmatprep.subr.mxu0 0.0
        %536 = vmatpush1.msra.mxu0 0.0
        %537 = vmatprep.subr.mxu0 0.0
        %538 = vmatpush1.msra.mxu0 0.0
        %539 = vmatprep.subr.mxu0 0.0
        %540 = vmatpush1.msra.mxu0 0.0
        %541 = vmatprep.subr.mxu0 0.0
        %542 = vmatpush1.msra.mxu0 0.0
        %543 = vmatprep.subr.mxu0 0.0
        %544 = vmatpush1.msra.mxu0 0.0
        %545 = vmatprep.subr.mxu0 0.0
        %546 = vmatpush1.msra.mxu0 %v268
        %547 = vmatprep.subr.mxu0 0.0
        %548 = vmatpush1.msra.mxu0 %v267
        %549 = vmatprep.subr.mxu0 0.0
        %550 = vmatpush2.msra.mxu0 0.0
        %551 = vmatprep.subr.mxu0 0.0
        %552 = vmatpush2.msra.mxu0 0.0
        %553 = vmatprep.subr.mxu0 0.0
        %554 = vmatpush2.msra.mxu0 0.0
        %555 = vmatprep.subr.mxu0 0.0
        %556 = vmatpush2.msra.mxu0 0.0
        %557 = vmatprep.subr.mxu0 0.0
        %558 = vmatpush2.msra.mxu0 0.0
        %559 = vmatprep.subr.mxu0 0.0
        %560 = vmatpush2.msra.mxu0 0.0
        %561 = vmatprep.subr.mxu0 0.0
        %562 = vmatpush2.msra.mxu0 0.0
        %563 = vmatprep.subr.mxu0 0.0
        %564 = vmatpush2.msra.mxu0 0.0
        %565 = vmatprep.subr.mxu0 0.0
        %566 = vmatpush2.msra.mxu0 0.0
        %567 = vmatprep.subr.mxu0 0.0
        %568 = vmatpush2.msra.mxu0 0.0
        %569 = vmatprep.subr.mxu0 0.0
        %570 = vmatpush2.msra.mxu0 0.0
        %571 = vmatprep.subr.mxu0 0.0
        %572 = vmatpush2.msra.mxu0 0.0
        %573 = vmatprep.subr.mxu0 0.0
        %574 = vmatpush2.msra.mxu0 0.0
        %575 = vmatprep.subr.mxu0 0.0
        %576 = vmatpush2.msra.mxu0 0.0
        %577 = vmatprep.subr.mxu0 0.0
        %578 = vmatpush2.msra.mxu0 0.0
        %579 = vmatprep.subr.mxu0 0.0
        %580 = vmatpush2.msra.mxu0 0.0
        %581 = vmatprep.mubr.f32.mxu0 0.0
        %582 = vmatmul.mubr.f32.gmra.mxu0 %v515
        %v583 = vpop.f32.mrf.mxu0
        %v584 = vadd.f32 %v340, %v583
        %v585 = vpop.f32.mrf.mxu0
        %586 = vdwg.mxu0
        %v588 = vsel %vm367, %v314, 0
        %590 = vmatprep.subr.mxu0 0.0
        %591 = vmatpush1.msra.mxu0 0.0
        %592 = vmatprep.subr.mxu0 0.0
        %593 = vmatpush1.msra.mxu0 0.0
        %594 = vmatprep.subr.mxu0 0.0
        %595 = vmatpush1.msra.mxu0 0.0
        %596 = vmatprep.subr.mxu0 0.0
        %597 = vmatpush1.msra.mxu0 0.0
        %598 = vmatprep.subr.mxu0 0.0
        %599 = vmatpush1.msra.mxu0 0.0
        %600 = vmatprep.subr.mxu0 0.0
        %601 = vmatpush1.msra.mxu0 0.0
        %602 = vmatprep.subr.mxu0 0.0
        %603 = vmatpush1.msra.mxu0 0.0
        %604 = vmatprep.subr.mxu0 0.0
        %605 = vmatpush1.msra.mxu0 0.0
        %606 = vmatprep.subr.mxu0 0.0
        %607 = vmatpush1.msra.mxu0 0.0
        %608 = vmatprep.subr.mxu0 0.0
        %609 = vmatpush1.msra.mxu0 0.0
        %610 = vmatprep.subr.mxu0 0.0
        %611 = vmatpush1.msra.mxu0 0.0
        %612 = vmatprep.subr.mxu0 0.0
        %613 = vmatpush1.msra.mxu0 0.0
        %614 = vmatprep.subr.mxu0 0.0
        %615 = vmatpush1.msra.mxu0 0.0
        %616 = vmatprep.subr.mxu0 0.0
        %617 = vmatpush1.msra.mxu0 0.0
        %618 = vmatprep.subr.mxu0 0.0
        %619 = vmatpush1.msra.mxu0 %v270
        %620 = vmatprep.subr.mxu0 0.0
        %621 = vmatpush1.msra.mxu0 %v269
        %622 = vmatprep.subr.mxu0 0.0
        %623 = vmatpush2.msra.mxu0 0.0
        %624 = vmatprep.subr.mxu0 0.0
        %625 = vmatpush2.msra.mxu0 0.0
        %626 = vmatprep.subr.mxu0 0.0
        %627 = vmatpush2.msra.mxu0 0.0
        %628 = vmatprep.subr.mxu0 0.0
        %629 = vmatpush2.msra.mxu0 0.0
        %630 = vmatprep.subr.mxu0 0.0
        %631 = vmatpush2.msra.mxu0 0.0
        %632 = vmatprep.subr.mxu0 0.0
        %633 = vmatpush2.msra.mxu0 0.0
        %634 = vmatprep.subr.mxu0 0.0
        %635 = vmatpush2.msra.mxu0 0.0
        %636 = vmatprep.subr.mxu0 0.0
        %637 = vmatpush2.msra.mxu0 0.0
        %638 = vmatprep.subr.mxu0 0.0
        %639 = vmatpush2.msra.mxu0 0.0
        %640 = vmatprep.subr.mxu0 0.0
        %641 = vmatpush2.msra.mxu0 0.0
        %642 = vmatprep.subr.mxu0 0.0
        %643 = vmatpush2.msra.mxu0 0.0
        %644 = vmatprep.subr.mxu0 0.0
        %645 = vmatpush2.msra.mxu0 0.0
        %646 = vmatprep.subr.mxu0 0.0
        %647 = vmatpush2.msra.mxu0 0.0
        %648 = vmatprep.subr.mxu0 0.0
        %649 = vmatpush2.msra.mxu0 0.0
        %650 = vmatprep.subr.mxu0 0.0
        %651 = vmatpush2.msra.mxu0 0.0
        %652 = vmatprep.subr.mxu0 0.0
        %653 = vmatpush2.msra.mxu0 0.0
        %654 = vmatprep.mubr.f32.mxu0 0.0
        %655 = vmatmul.mubr.f32.gmra.mxu0 %v588
        %v656 = vpop.f32.mrf.mxu0
        %v657 = vadd.f32 %v345, %v656
        %v658 = vpop.f32.mrf.mxu0
        %659 = vdwg.mxu0
        %v661 = vsel %vm367, %v315, 0
        %663 = vmatprep.subr.mxu0 0.0
        %664 = vmatpush1.msra.mxu0 0.0
        %665 = vmatprep.subr.mxu0 0.0
        %666 = vmatpush1.msra.mxu0 0.0
        %667 = vmatprep.subr.mxu0 0.0
        %668 = vmatpush1.msra.mxu0 0.0
        %669 = vmatprep.subr.mxu0 0.0
        %670 = vmatpush1.msra.mxu0 0.0
        %671 = vmatprep.subr.mxu0 0.0
        %672 = vmatpush1.msra.mxu0 0.0
        %673 = vmatprep.subr.mxu0 0.0
        %674 = vmatpush1.msra.mxu0 0.0
        %675 = vmatprep.subr.mxu0 0.0
        %676 = vmatpush1.msra.mxu0 0.0
        %677 = vmatprep.subr.mxu0 0.0
        %678 = vmatpush1.msra.mxu0 0.0
        %679 = vmatprep.subr.mxu0 0.0
        %680 = vmatpush1.msra.mxu0 0.0
        %681 = vmatprep.subr.mxu0 0.0
        %682 = vmatpush1.msra.mxu0 0.0
        %683 = vmatprep.subr.mxu0 0.0
        %684 = vmatpush1.msra.mxu0 0.0
        %685 = vmatprep.subr.mxu0 0.0
        %686 = vmatpush1.msra.mxu0 0.0
        %687 = vmatprep.subr.mxu0 0.0
        %688 = vmatpush1.msra.mxu0 0.0
        %689 = vmatprep.subr.mxu0 0.0
        %690 = vmatpush1.msra.mxu0 0.0
        %691 = vmatprep.subr.mxu0 0.0
        %692 = vmatpush1.msra.mxu0 %v272
        %693 = vmatprep.subr.mxu0 0.0
        %694 = vmatpush1.msra.mxu0 %v271
        %695 = vmatprep.subr.mxu0 0.0
        %696 = vmatpush2.msra.mxu0 0.0
        %697 = vmatprep.subr.mxu0 0.0
        %698 = vmatpush2.msra.mxu0 0.0
        %699 = vmatprep.subr.mxu0 0.0
        %700 = vmatpush2.msra.mxu0 0.0
        %701 = vmatprep.subr.mxu0 0.0
        %702 = vmatpush2.msra.mxu0 0.0
        %703 = vmatprep.subr.mxu0 0.0
        %704 = vmatpush2.msra.mxu0 0.0
        %705 = vmatprep.subr.mxu0 0.0
        %706 = vmatpush2.msra.mxu0 0.0
        %707 = vmatprep.subr.mxu0 0.0
        %708 = vmatpush2.msra.mxu0 0.0
        %709 = vmatprep.subr.mxu0 0.0
        %710 = vmatpush2.msra.mxu0 0.0
        %711 = vmatprep.subr.mxu0 0.0
        %712 = vmatpush2.msra.mxu0 0.0
        %713 = vmatprep.subr.mxu0 0.0
        %714 = vmatpush2.msra.mxu0 0.0
        %715 = vmatprep.subr.mxu0 0.0
        %716 = vmatpush2.msra.mxu0 0.0
        %717 = vmatprep.subr.mxu0 0.0
        %718 = vmatpush2.msra.mxu0 0.0
        %719 = vmatprep.subr.mxu0 0.0
        %720 = vmatpush2.msra.mxu0 0.0
        %721 = vmatprep.subr.mxu0 0.0
        %722 = vmatpush2.msra.mxu0 0.0
        %723 = vmatprep.subr.mxu0 0.0
        %724 = vmatpush2.msra.mxu0 0.0
        %725 = vmatprep.subr.mxu0 0.0
        %726 = vmatpush2.msra.mxu0 0.0
        %727 = vmatprep.mubr.f32.mxu0 0.0
        %728 = vmatmul.mubr.f32.gmra.mxu0 %v661
        %v729 = vpop.f32.mrf.mxu0
        %v730 = vadd.f32 %v350, %v729
        %v731 = vpop.f32.mrf.mxu0
        %732 = vdwg.mxu0
        %v734 = vsel %vm367, %v316, 0
        %736 = vmatprep.subr.mxu0 0.0
        %737 = vmatpush1.msra.mxu0 0.0
        %738 = vmatprep.subr.mxu0 0.0
        %739 = vmatpush1.msra.mxu0 0.0
        %740 = vmatprep.subr.mxu0 0.0
        %741 = vmatpush1.msra.mxu0 0.0
        %742 = vmatprep.subr.mxu0 0.0
        %743 = vmatpush1.msra.mxu0 0.0
        %744 = vmatprep.subr.mxu0 0.0
        %745 = vmatpush1.msra.mxu0 0.0
        %746 = vmatprep.subr.mxu0 0.0
        %747 = vmatpush1.msra.mxu0 0.0
        %748 = vmatprep.subr.mxu0 0.0
        %749 = vmatpush1.msra.mxu0 0.0
        %750 = vmatprep.subr.mxu0 0.0
        %751 = vmatpush1.msra.mxu0 0.0
        %752 = vmatprep.subr.mxu0 0.0
        %753 = vmatpush1.msra.mxu0 0.0
        %754 = vmatprep.subr.mxu0 0.0
        %755 = vmatpush1.msra.mxu0 0.0
        %756 = vmatprep.subr.mxu0 0.0
        %757 = vmatpush1.msra.mxu0 0.0
        %758 = vmatprep.subr.mxu0 0.0
        %759 = vmatpush1.msra.mxu0 0.0
        %760 = vmatprep.subr.mxu0 0.0
        %761 = vmatpush1.msra.mxu0 0.0
        %762 = vmatprep.subr.mxu0 0.0
        %763 = vmatpush1.msra.mxu0 0.0
        %764 = vmatprep.subr.mxu0 0.0
        %765 = vmatpush1.msra.mxu0 %v274
        %766 = vmatprep.subr.mxu0 0.0
        %767 = vmatpush1.msra.mxu0 %v273
        %768 = vmatprep.subr.mxu0 0.0
        %769 = vmatpush2.msra.mxu0 0.0
        %770 = vmatprep.subr.mxu0 0.0
        %771 = vmatpush2.msra.mxu0 0.0
        %772 = vmatprep.subr.mxu0 0.0
        %773 = vmatpush2.msra.mxu0 0.0
        %774 = vmatprep.subr.mxu0 0.0
        %775 = vmatpush2.msra.mxu0 0.0
        %776 = vmatprep.subr.mxu0 0.0
        %777 = vmatpush2.msra.mxu0 0.0
        %778 = vmatprep.subr.mxu0 0.0
        %779 = vmatpush2.msra.mxu0 0.0
        %780 = vmatprep.subr.mxu0 0.0
        %781 = vmatpush2.msra.mxu0 0.0
        %782 = vmatprep.subr.mxu0 0.0
        %783 = vmatpush2.msra.mxu0 0.0
        %784 = vmatprep.subr.mxu0 0.0
        %785 = vmatpush2.msra.mxu0 0.0
        %786 = vmatprep.subr.mxu0 0.0
        %787 = vmatpush2.msra.mxu0 0.0
        %788 = vmatprep.subr.mxu0 0.0
        %789 = vmatpush2.msra.mxu0 0.0
        %790 = vmatprep.subr.mxu0 0.0
        %791 = vmatpush2.msra.mxu0 0.0
        %792 = vmatprep.subr.mxu0 0.0
        %793 = vmatpush2.msra.mxu0 0.0
        %794 = vmatprep.subr.mxu0 0.0
        %795 = vmatpush2.msra.mxu0 0.0
        %796 = vmatprep.subr.mxu0 0.0
        %797 = vmatpush2.msra.mxu0 0.0
        %798 = vmatprep.subr.mxu0 0.0
        %799 = vmatpush2.msra.mxu0 0.0
        %800 = vmatprep.mubr.f32.mxu0 0.0
        %801 = vmatmul.mubr.f32.gmra.mxu0 %v734
        %v802 = vpop.f32.mrf.mxu0
        %v803 = vadd.f32 %v355, %v802
        %v804 = vpop.f32.mrf.mxu0
        %805 = vdwg.mxu0
        %v807 = vsel %vm367, %v317, 0
        %809 = vmatprep.subr.mxu0 0.0
        %810 = vmatpush1.msra.mxu0 0.0
        %811 = vmatprep.subr.mxu0 0.0
        %812 = vmatpush1.msra.mxu0 0.0
        %813 = vmatprep.subr.mxu0 0.0
        %814 = vmatpush1.msra.mxu0 0.0
        %815 = vmatprep.subr.mxu0 0.0
        %816 = vmatpush1.msra.mxu0 0.0
        %817 = vmatprep.subr.mxu0 0.0
        %818 = vmatpush1.msra.mxu0 0.0
        %819 = vmatprep.subr.mxu0 0.0
        %820 = vmatpush1.msra.mxu0 0.0
        %821 = vmatprep.subr.mxu0 0.0
        %822 = vmatpush1.msra.mxu0 0.0
        %823 = vmatprep.subr.mxu0 0.0
        %824 = vmatpush1.msra.mxu0 0.0
        %825 = vmatprep.subr.mxu0 0.0
        %826 = vmatpush1.msra.mxu0 0.0
        %827 = vmatprep.subr.mxu0 0.0
        %828 = vmatpush1.msra.mxu0 0.0
        %829 = vmatprep.subr.mxu0 0.0
        %830 = vmatpush1.msra.mxu0 0.0
        %831 = vmatprep.subr.mxu0 0.0
        %832 = vmatpush1.msra.mxu0 0.0
        %833 = vmatprep.subr.mxu0 0.0
        %834 = vmatpush1.msra.mxu0 0.0
        %835 = vmatprep.subr.mxu0 0.0
        %836 = vmatpush1.msra.mxu0 0.0
        %837 = vmatprep.subr.mxu0 0.0
        %838 = vmatpush1.msra.mxu0 %v276
        %839 = vmatprep.subr.mxu0 0.0
        %840 = vmatpush1.msra.mxu0 %v275
        %841 = vmatprep.subr.mxu0 0.0
        %842 = vmatpush2.msra.mxu0 0.0
        %843 = vmatprep.subr.mxu0 0.0
        %844 = vmatpush2.msra.mxu0 0.0
        %845 = vmatprep.subr.mxu0 0.0
        %846 = vmatpush2.msra.mxu0 0.0
        %847 = vmatprep.subr.mxu0 0.0
        %848 = vmatpush2.msra.mxu0 0.0
        %849 = vmatprep.subr.mxu0 0.0
        %850 = vmatpush2.msra.mxu0 0.0
        %851 = vmatprep.subr.mxu0 0.0
        %852 = vmatpush2.msra.mxu0 0.0
        %853 = vmatprep.subr.mxu0 0.0
        %854 = vmatpush2.msra.mxu0 0.0
        %855 = vmatprep.subr.mxu0 0.0
        %856 = vmatpush2.msra.mxu0 0.0
        %857 = vmatprep.subr.mxu0 0.0
        %858 = vmatpush2.msra.mxu0 0.0
        %859 = vmatprep.subr.mxu0 0.0
        %860 = vmatpush2.msra.mxu0 0.0
        %861 = vmatprep.subr.mxu0 0.0
        %862 = vmatpush2.msra.mxu0 0.0
        %863 = vmatprep.subr.mxu0 0.0
        %864 = vmatpush2.msra.mxu0 0.0
        %865 = vmatprep.subr.mxu0 0.0
        %866 = vmatpush2.msra.mxu0 0.0
        %867 = vmatprep.subr.mxu0 0.0
        %868 = vmatpush2.msra.mxu0 0.0
        %869 = vmatprep.subr.mxu0 0.0
        %870 = vmatpush2.msra.mxu0 0.0
        %871 = vmatprep.subr.mxu0 0.0
        %872 = vmatpush2.msra.mxu0 0.0
        %873 = vmatprep.mubr.f32.mxu0 0.0
        %874 = vmatmul.mubr.f32.gmra.mxu0 %v807
        %v875 = vpop.f32.mrf.mxu0
        %v876 = vadd.f32 %v360, %v875
        %v877 = vpop.f32.mrf.mxu0
        %878 = vdwg.mxu0
        %v880 = vsel %vm367, %v318, 0
        %882 = vmatprep.subr.mxu0 0.0
        %883 = vmatpush1.msra.mxu0 0.0
        %884 = vmatprep.subr.mxu0 0.0
        %885 = vmatpush1.msra.mxu0 0.0
        %886 = vmatprep.subr.mxu0 0.0
        %887 = vmatpush1.msra.mxu0 0.0
        %888 = vmatprep.subr.mxu0 0.0
        %889 = vmatpush1.msra.mxu0 0.0
        %890 = vmatprep.subr.mxu0 0.0
        %891 = vmatpush1.msra.mxu0 0.0
        %892 = vmatprep.subr.mxu0 0.0
        %893 = vmatpush1.msra.mxu0 0.0
        %894 = vmatprep.subr.mxu0 0.0
        %895 = vmatpush1.msra.mxu0 0.0
        %896 = vmatprep.subr.mxu0 0.0
        %897 = vmatpush1.msra.mxu0 0.0
        %898 = vmatprep.subr.mxu0 0.0
        %899 = vmatpush1.msra.mxu0 0.0
        %900 = vmatprep.subr.mxu0 0.0
        %901 = vmatpush1.msra.mxu0 0.0
        %902 = vmatprep.subr.mxu0 0.0
        %903 = vmatpush1.msra.mxu0 0.0
        %904 = vmatprep.subr.mxu0 0.0
        %905 = vmatpush1.msra.mxu0 0.0
        %906 = vmatprep.subr.mxu0 0.0
        %907 = vmatpush1.msra.mxu0 0.0
        %908 = vmatprep.subr.mxu0 0.0
        %909 = vmatpush1.msra.mxu0 0.0
        %910 = vmatprep.subr.mxu0 0.0
        %911 = vmatpush1.msra.mxu0 %v278
        %912 = vmatprep.subr.mxu0 0.0
        %913 = vmatpush1.msra.mxu0 %v277
        %914 = vmatprep.subr.mxu0 0.0
        %915 = vmatpush2.msra.mxu0 0.0
        %916 = vmatprep.subr.mxu0 0.0
        %917 = vmatpush2.msra.mxu0 0.0
        %918 = vmatprep.subr.mxu0 0.0
        %919 = vmatpush2.msra.mxu0 0.0
        %920 = vmatprep.subr.mxu0 0.0
        %921 = vmatpush2.msra.mxu0 0.0
        %922 = vmatprep.subr.mxu0 0.0
        %923 = vmatpush2.msra.mxu0 0.0
        %924 = vmatprep.subr.mxu0 0.0
        %925 = vmatpush2.msra.mxu0 0.0
        %926 = vmatprep.subr.mxu0 0.0
        %927 = vmatpush2.msra.mxu0 0.0
        %928 = vmatprep.subr.mxu0 0.0
        %929 = vmatpush2.msra.mxu0 0.0
        %930 = vmatprep.subr.mxu0 0.0
        %931 = vmatpush2.msra.mxu0 0.0
        %932 = vmatprep.subr.mxu0 0.0
        %933 = vmatpush2.msra.mxu0 0.0
        %934 = vmatprep.subr.mxu0 0.0
        %935 = vmatpush2.msra.mxu0 0.0
        %936 = vmatprep.subr.mxu0 0.0
        %937 = vmatpush2.msra.mxu0 0.0
        %938 = vmatprep.subr.mxu0 0.0
        %939 = vmatpush2.msra.mxu0 0.0
        %940 = vmatprep.subr.mxu0 0.0
        %941 = vmatpush2.msra.mxu0 0.0
        %942 = vmatprep.subr.mxu0 0.0
        %943 = vmatpush2.msra.mxu0 0.0
        %944 = vmatprep.subr.mxu0 0.0
        %945 = vmatpush2.msra.mxu0 0.0
        %946 = vmatprep.mubr.f32.mxu0 0.0
        %947 = vmatmul.mubr.f32.gmra.mxu0 %v880
        %v948 = vpop.f32.mrf.mxu0
        %v949 = vadd.f32 %v365, %v948
        %v950 = vpop.f32.mrf.mxu0
        %951 = vdwg.mxu0
        %vm952 = vcmask 64512
        %v954 = vsel %vm952, %v438, 0
        %v957 = vsel %vm952, %v279, 0
        %v960 = vsel %vm952, %v280, 0
        %962 = vmatprep.subr.mxu0 0.0
        %963 = vmatpush1.xpose.msra.mxu0 0.0
        %964 = vmatprep.subr.mxu0 0.0
        %965 = vmatpush1.xpose.msra.mxu0 0.0
        %966 = vmatprep.subr.mxu0 0.0
        %967 = vmatpush1.xpose.msra.mxu0 0.0
        %968 = vmatprep.subr.mxu0 0.0
        %969 = vmatpush1.xpose.msra.mxu0 0.0
        %970 = vmatprep.subr.mxu0 0.0
        %971 = vmatpush1.xpose.msra.mxu0 0.0
        %972 = vmatprep.subr.mxu0 0.0
        %973 = vmatpush1.xpose.msra.mxu0 0.0
        %974 = vmatprep.subr.mxu0 0.0
        %975 = vmatpush1.xpose.msra.mxu0 0.0
        %976 = vmatprep.subr.mxu0 0.0
        %977 = vmatpush1.xpose.msra.mxu0 0.0
        %978 = vmatprep.subr.mxu0 0.0
        %979 = vmatpush1.xpose.msra.mxu0 0.0
        %980 = vmatprep.subr.mxu0 0.0
        %981 = vmatpush1.xpose.msra.mxu0 0.0
        %982 = vmatprep.subr.mxu0 0.0
        %983 = vmatpush1.xpose.msra.mxu0 0.0
        %984 = vmatprep.subr.mxu0 0.0
        %985 = vmatpush1.xpose.msra.mxu0 0.0
        %986 = vmatprep.subr.mxu0 0.0
        %987 = vmatpush1.xpose.msra.mxu0 0.0
        %988 = vmatprep.subr.mxu0 0.0
        %989 = vmatpush1.xpose.msra.mxu0 0.0
        %990 = vmatprep.subr.mxu0 0.0
        %991 = vmatpush1.xpose.msra.mxu0 %v960
        %992 = vmatprep.subr.mxu0 0.0
        %993 = vmatpush1.xpose.msra.mxu0 %v957
        %994 = vmatprep.subr.mxu0 0.0
        %995 = vmatpush2.xpose.msra.mxu0 0.0
        %996 = vmatprep.subr.mxu0 0.0
        %997 = vmatpush2.xpose.msra.mxu0 0.0
        %998 = vmatprep.subr.mxu0 0.0
        %999 = vmatpush2.xpose.msra.mxu0 0.0
        %1000 = vmatprep.subr.mxu0 0.0
        %1001 = vmatpush2.xpose.msra.mxu0 0.0
        %1002 = vmatprep.subr.mxu0 0.0
        %1003 = vmatpush2.xpose.msra.mxu0 0.0
        %1004 = vmatprep.subr.mxu0 0.0
        %1005 = vmatpush2.xpose.msra.mxu0 0.0
        %1006 = vmatprep.subr.mxu0 0.0
        %1007 = vmatpush2.xpose.msra.mxu0 0.0
        %1008 = vmatprep.subr.mxu0 0.0
        %1009 = vmatpush2.xpose.msra.mxu0 0.0
        %1010 = vmatprep.subr.mxu0 0.0
        %1011 = vmatpush2.xpose.msra.mxu0 0.0
        %1012 = vmatprep.subr.mxu0 0.0
        %1013 = vmatpush2.xpose.msra.mxu0 0.0
        %1014 = vmatprep.subr.mxu0 0.0
        %1015 = vmatpush2.xpose.msra.mxu0 0.0
        %1016 = vmatprep.subr.mxu0 0.0
        %1017 = vmatpush2.xpose.msra.mxu0 0.0
        %1018 = vmatprep.subr.mxu0 0.0
        %1019 = vmatpush2.xpose.msra.mxu0 0.0
        %1020 = vmatprep.subr.mxu0 0.0
        %1021 = vmatpush2.xpose.msra.mxu0 0.0
        %1022 = vmatprep.subr.mxu0 0.0
        %1023 = vmatpush2.xpose.msra.mxu0 0.0
        %1024 = vmatprep.subr.mxu0 0.0
        %1025 = vmatpush2.xpose.msra.mxu0 0.0
        %1026 = vmatprep.mubr.f32.mxu0 0.0
        %1027 = vmatmul.mubr.f32.gmra.mxu0 %v954
        %v1028 = vpop.f32.mrf.mxu0
        %v1029 = vadd.f32 0.0, %v1028
        %v1030 = vpop.f32.mrf.mxu0
        %1031 = vdwg.mxu0
        %v1033 = vsel %vm952, %v511, 0
        %v1036 = vsel %vm952, %v281, 0
        %v1039 = vsel %vm952, %v282, 0
        %1041 = vmatprep.subr.mxu0 0.0
        %1042 = vmatpush1.xpose.msra.mxu0 0.0
        %1043 = vmatprep.subr.mxu0 0.0
        %1044 = vmatpush1.xpose.msra.mxu0 0.0
        %1045 = vmatprep.subr.mxu0 0.0
        %1046 = vmatpush1.xpose.msra.mxu0 0.0
        %1047 = vmatprep.subr.mxu0 0.0
        %1048 = vmatpush1.xpose.msra.mxu0 0.0
        %1049 = vmatprep.subr.mxu0 0.0
        %1050 = vmatpush1.xpose.msra.mxu0 0.0
        %1051 = vmatprep.subr.mxu0 0.0
        %1052 = vmatpush1.xpose.msra.mxu0 0.0
        %1053 = vmatprep.subr.mxu0 0.0
        %1054 = vmatpush1.xpose.msra.mxu0 0.0
        %1055 = vmatprep.subr.mxu0 0.0
        %1056 = vmatpush1.xpose.msra.mxu0 0.0
        %1057 = vmatprep.subr.mxu0 0.0
        %1058 = vmatpush1.xpose.msra.mxu0 0.0
        %1059 = vmatprep.subr.mxu0 0.0
        %1060 = vmatpush1.xpose.msra.mxu0 0.0
        %1061 = vmatprep.subr.mxu0 0.0
        %1062 = vmatpush1.xpose.msra.mxu0 0.0
        %1063 = vmatprep.subr.mxu0 0.0
        %1064 = vmatpush1.xpose.msra.mxu0 0.0
        %1065 = vmatprep.subr.mxu0 0.0
        %1066 = vmatpush1.xpose.msra.mxu0 0.0
        %1067 = vmatprep.subr.mxu0 0.0
        %1068 = vmatpush1.xpose.msra.mxu0 0.0
        %1069 = vmatprep.subr.mxu0 0.0
        %1070 = vmatpush1.xpose.msra.mxu0 %v1039
        %1071 = vmatprep.subr.mxu0 0.0
        %1072 = vmatpush1.xpose.msra.mxu0 %v1036
        %1073 = vmatprep.subr.mxu0 0.0
        %1074 = vmatpush2.xpose.msra.mxu0 0.0
        %1075 = vmatprep.subr.mxu0 0.0
        %1076 = vmatpush2.xpose.msra.mxu0 0.0
        %1077 = vmatprep.subr.mxu0 0.0
        %1078 = vmatpush2.xpose.msra.mxu0 0.0
        %1079 = vmatprep.subr.mxu0 0.0
        %1080 = vmatpush2.xpose.msra.mxu0 0.0
        %1081 = vmatprep.subr.mxu0 0.0
        %1082 = vmatpush2.xpose.msra.mxu0 0.0
        %1083 = vmatprep.subr.mxu0 0.0
        %1084 = vmatpush2.xpose.msra.mxu0 0.0
        %1085 = vmatprep.subr.mxu0 0.0
        %1086 = vmatpush2.xpose.msra.mxu0 0.0
        %1087 = vmatprep.subr.mxu0 0.0
        %1088 = vmatpush2.xpose.msra.mxu0 0.0
        %1089 = vmatprep.subr.mxu0 0.0
        %1090 = vmatpush2.xpose.msra.mxu0 0.0
        %1091 = vmatprep.subr.mxu0 0.0
        %1092 = vmatpush2.xpose.msra.mxu0 0.0
        %1093 = vmatprep.subr.mxu0 0.0
        %1094 = vmatpush2.xpose.msra.mxu0 0.0
        %1095 = vmatprep.subr.mxu0 0.0
        %1096 = vmatpush2.xpose.msra.mxu0 0.0
        %1097 = vmatprep.subr.mxu0 0.0
        %1098 = vmatpush2.xpose.msra.mxu0 0.0
        %1099 = vmatprep.subr.mxu0 0.0
        %1100 = vmatpush2.xpose.msra.mxu0 0.0
        %1101 = vmatprep.subr.mxu0 0.0
        %1102 = vmatpush2.xpose.msra.mxu0 0.0
        %1103 = vmatprep.subr.mxu0 0.0
        %1104 = vmatpush2.xpose.msra.mxu0 0.0
        %1105 = vmatprep.mubr.f32.mxu0 0.0
        %1106 = vmatmul.mubr.f32.gmra.mxu0 %v1033
        %v1107 = vpop.f32.mrf.mxu0
        %v1108 = vadd.f32 0.0, %v1107
        %v1109 = vpop.f32.mrf.mxu0
        %1110 = vdwg.mxu0
        %v1112 = vsel %vm952, %v584, 0
        %v1115 = vsel %vm952, %v283, 0
        %v1118 = vsel %vm952, %v284, 0
        %1120 = vmatprep.subr.mxu0 0.0
        %1121 = vmatpush1.xpose.msra.mxu0 0.0
        %1122 = vmatprep.subr.mxu0 0.0
        %1123 = vmatpush1.xpose.msra.mxu0 0.0
        %1124 = vmatprep.subr.mxu0 0.0
        %1125 = vmatpush1.xpose.msra.mxu0 0.0
        %1126 = vmatprep.subr.mxu0 0.0
        %1127 = vmatpush1.xpose.msra.mxu0 0.0
        %1128 = vmatprep.subr.mxu0 0.0
        %1129 = vmatpush1.xpose.msra.mxu0 0.0
        %1130 = vmatprep.subr.mxu0 0.0
        %1131 = vmatpush1.xpose.msra.mxu0 0.0
        %1132 = vmatprep.subr.mxu0 0.0
        %1133 = vmatpush1.xpose.msra.mxu0 0.0
        %1134 = vmatprep.subr.mxu0 0.0
        %1135 = vmatpush1.xpose.msra.mxu0 0.0
        %1136 = vmatprep.subr.mxu0 0.0
        %1137 = vmatpush1.xpose.msra.mxu0 0.0
        %1138 = vmatprep.subr.mxu0 0.0
        %1139 = vmatpush1.xpose.msra.mxu0 0.0
        %1140 = vmatprep.subr.mxu0 0.0
        %1141 = vmatpush1.xpose.msra.mxu0 0.0
        %1142 = vmatprep.subr.mxu0 0.0
        %1143 = vmatpush1.xpose.msra.mxu0 0.0
        %1144 = vmatprep.subr.mxu0 0.0
        %1145 = vmatpush1.xpose.msra.mxu0 0.0
        %1146 = vmatprep.subr.mxu0 0.0
        %1147 = vmatpush1.xpose.msra.mxu0 0.0
        %1148 = vmatprep.subr.mxu0 0.0
        %1149 = vmatpush1.xpose.msra.mxu0 %v1118
        %1150 = vmatprep.subr.mxu0 0.0
        %1151 = vmatpush1.xpose.msra.mxu0 %v1115
        %1152 = vmatprep.subr.mxu0 0.0
        %1153 = vmatpush2.xpose.msra.mxu0 0.0
        %1154 = vmatprep.subr.mxu0 0.0
        %1155 = vmatpush2.xpose.msra.mxu0 0.0
        %1156 = vmatprep.subr.mxu0 0.0
        %1157 = vmatpush2.xpose.msra.mxu0 0.0
        %1158 = vmatprep.subr.mxu0 0.0
        %1159 = vmatpush2.xpose.msra.mxu0 0.0
        %1160 = vmatprep.subr.mxu0 0.0
        %1161 = vmatpush2.xpose.msra.mxu0 0.0
        %1162 = vmatprep.subr.mxu0 0.0
        %1163 = vmatpush2.xpose.msra.mxu0 0.0
        %1164 = vmatprep.subr.mxu0 0.0
        %1165 = vmatpush2.xpose.msra.mxu0 0.0
        %1166 = vmatprep.subr.mxu0 0.0
        %1167 = vmatpush2.xpose.msra.mxu0 0.0
        %1168 = vmatprep.subr.mxu0 0.0
        %1169 = vmatpush2.xpose.msra.mxu0 0.0
        %1170 = vmatprep.subr.mxu0 0.0
        %1171 = vmatpush2.xpose.msra.mxu0 0.0
        %1172 = vmatprep.subr.mxu0 0.0
        %1173 = vmatpush2.xpose.msra.mxu0 0.0
        %1174 = vmatprep.subr.mxu0 0.0
        %1175 = vmatpush2.xpose.msra.mxu0 0.0
        %1176 = vmatprep.subr.mxu0 0.0
        %1177 = vmatpush2.xpose.msra.mxu0 0.0
        %1178 = vmatprep.subr.mxu0 0.0
        %1179 = vmatpush2.xpose.msra.mxu0 0.0
        %1180 = vmatprep.subr.mxu0 0.0
        %1181 = vmatpush2.xpose.msra.mxu0 0.0
        %1182 = vmatprep.subr.mxu0 0.0
        %1183 = vmatpush2.xpose.msra.mxu0 0.0
        %1184 = vmatprep.mubr.f32.mxu0 0.0
        %1185 = vmatmul.mubr.f32.gmra.mxu0 %v1112
        %v1186 = vpop.f32.mrf.mxu0
        %v1187 = vadd.f32 0.0, %v1186
        %v1188 = vpop.f32.mrf.mxu0
        %1189 = vdwg.mxu0
        %v1191 = vsel %vm952, %v657, 0
        %v1194 = vsel %vm952, %v285, 0
        %v1197 = vsel %vm952, %v286, 0
        %1199 = vmatprep.subr.mxu0 0.0
        %1200 = vmatpush1.xpose.msra.mxu0 0.0
        %1201 = vmatprep.subr.mxu0 0.0
        %1202 = vmatpush1.xpose.msra.mxu0 0.0
        %1203 = vmatprep.subr.mxu0 0.0
        %1204 = vmatpush1.xpose.msra.mxu0 0.0
        %1205 = vmatprep.subr.mxu0 0.0
        %1206 = vmatpush1.xpose.msra.mxu0 0.0
        %1207 = vmatprep.subr.mxu0 0.0
        %1208 = vmatpush1.xpose.msra.mxu0 0.0
        %1209 = vmatprep.subr.mxu0 0.0
        %1210 = vmatpush1.xpose.msra.mxu0 0.0
        %1211 = vmatprep.subr.mxu0 0.0
        %1212 = vmatpush1.xpose.msra.mxu0 0.0
        %1213 = vmatprep.subr.mxu0 0.0
        %1214 = vmatpush1.xpose.msra.mxu0 0.0
        %1215 = vmatprep.subr.mxu0 0.0
        %1216 = vmatpush1.xpose.msra.mxu0 0.0
        %1217 = vmatprep.subr.mxu0 0.0
        %1218 = vmatpush1.xpose.msra.mxu0 0.0
        %1219 = vmatprep.subr.mxu0 0.0
        %1220 = vmatpush1.xpose.msra.mxu0 0.0
        %1221 = vmatprep.subr.mxu0 0.0
        %1222 = vmatpush1.xpose.msra.mxu0 0.0
        %1223 = vmatprep.subr.mxu0 0.0
        %1224 = vmatpush1.xpose.msra.mxu0 0.0
        %1225 = vmatprep.subr.mxu0 0.0
        %1226 = vmatpush1.xpose.msra.mxu0 0.0
        %1227 = vmatprep.subr.mxu0 0.0
        %1228 = vmatpush1.xpose.msra.mxu0 %v1197
        %1229 = vmatprep.subr.mxu0 0.0
        %1230 = vmatpush1.xpose.msra.mxu0 %v1194
        %1231 = vmatprep.subr.mxu0 0.0
        %1232 = vmatpush2.xpose.msra.mxu0 0.0
        %1233 = vmatprep.subr.mxu0 0.0
        %1234 = vmatpush2.xpose.msra.mxu0 0.0
        %1235 = vmatprep.subr.mxu0 0.0
        %1236 = vmatpush2.xpose.msra.mxu0 0.0
        %1237 = vmatprep.subr.mxu0 0.0
        %1238 = vmatpush2.xpose.msra.mxu0 0.0
        %1239 = vmatprep.subr.mxu0 0.0
        %1240 = vmatpush2.xpose.msra.mxu0 0.0
        %1241 = vmatprep.subr.mxu0 0.0
        %1242 = vmatpush2.xpose.msra.mxu0 0.0
        %1243 = vmatprep.subr.mxu0 0.0
        %1244 = vmatpush2.xpose.msra.mxu0 0.0
        %1245 = vmatprep.subr.mxu0 0.0
        %1246 = vmatpush2.xpose.msra.mxu0 0.0
        %1247 = vmatprep.subr.mxu0 0.0
        %1248 = vmatpush2.xpose.msra.mxu0 0.0
        %1249 = vmatprep.subr.mxu0 0.0
        %1250 = vmatpush2.xpose.msra.mxu0 0.0
        %1251 = vmatprep.subr.mxu0 0.0
        %1252 = vmatpush2.xpose.msra.mxu0 0.0
        %1253 = vmatprep.subr.mxu0 0.0
        %1254 = vmatpush2.xpose.msra.mxu0 0.0
        %1255 = vmatprep.subr.mxu0 0.0
        %1256 = vmatpush2.xpose.msra.mxu0 0.0
        %1257 = vmatprep.subr.mxu0 0.0
        %1258 = vmatpush2.xpose.msra.mxu0 0.0
        %1259 = vmatprep.subr.mxu0 0.0
        %1260 = vmatpush2.xpose.msra.mxu0 0.0
        %1261 = vmatprep.subr.mxu0 0.0
        %1262 = vmatpush2.xpose.msra.mxu0 0.0
        %1263 = vmatprep.mubr.f32.mxu0 0.0
        %1264 = vmatmul.mubr.f32.gmra.mxu0 %v1191
        %v1265 = vpop.f32.mrf.mxu0
        %v1266 = vadd.f32 0.0, %v1265
        %v1267 = vpop.f32.mrf.mxu0
        %1268 = vdwg.mxu0
        %v1270 = vsel %vm952, %v730, 0
        %v1273 = vsel %vm952, %v287, 0
        %v1276 = vsel %vm952, %v288, 0
        %1278 = vmatprep.subr.mxu0 0.0
        %1279 = vmatpush1.xpose.msra.mxu0 0.0
        %1280 = vmatprep.subr.mxu0 0.0
        %1281 = vmatpush1.xpose.msra.mxu0 0.0
        %1282 = vmatprep.subr.mxu0 0.0
        %1283 = vmatpush1.xpose.msra.mxu0 0.0
        %1284 = vmatprep.subr.mxu0 0.0
        %1285 = vmatpush1.xpose.msra.mxu0 0.0
        %1286 = vmatprep.subr.mxu0 0.0
        %1287 = vmatpush1.xpose.msra.mxu0 0.0
        %1288 = vmatprep.subr.mxu0 0.0
        %1289 = vmatpush1.xpose.msra.mxu0 0.0
        %1290 = vmatprep.subr.mxu0 0.0
        %1291 = vmatpush1.xpose.msra.mxu0 0.0
        %1292 = vmatprep.subr.mxu0 0.0
        %1293 = vmatpush1.xpose.msra.mxu0 0.0
        %1294 = vmatprep.subr.mxu0 0.0
        %1295 = vmatpush1.xpose.msra.mxu0 0.0
        %1296 = vmatprep.subr.mxu0 0.0
        %1297 = vmatpush1.xpose.msra.mxu0 0.0
        %1298 = vmatprep.subr.mxu0 0.0
        %1299 = vmatpush1.xpose.msra.mxu0 0.0
        %1300 = vmatprep.subr.mxu0 0.0
        %1301 = vmatpush1.xpose.msra.mxu0 0.0
        %1302 = vmatprep.subr.mxu0 0.0
        %1303 = vmatpush1.xpose.msra.mxu0 0.0
        %1304 = vmatprep.subr.mxu0 0.0
        %1305 = vmatpush1.xpose.msra.mxu0 0.0
        %1306 = vmatprep.subr.mxu0 0.0
        %1307 = vmatpush1.xpose.msra.mxu0 %v1276
        %1308 = vmatprep.subr.mxu0 0.0
        %1309 = vmatpush1.xpose.msra.mxu0 %v1273
        %1310 = vmatprep.subr.mxu0 0.0
        %1311 = vmatpush2.xpose.msra.mxu0 0.0
        %1312 = vmatprep.subr.mxu0 0.0
        %1313 = vmatpush2.xpose.msra.mxu0 0.0
        %1314 = vmatprep.subr.mxu0 0.0
        %1315 = vmatpush2.xpose.msra.mxu0 0.0
        %1316 = vmatprep.subr.mxu0 0.0
        %1317 = vmatpush2.xpose.msra.mxu0 0.0
        %1318 = vmatprep.subr.mxu0 0.0
        %1319 = vmatpush2.xpose.msra.mxu0 0.0
        %1320 = vmatprep.subr.mxu0 0.0
        %1321 = vmatpush2.xpose.msra.mxu0 0.0
        %1322 = vmatprep.subr.mxu0 0.0
        %1323 = vmatpush2.xpose.msra.mxu0 0.0
        %1324 = vmatprep.subr.mxu0 0.0
        %1325 = vmatpush2.xpose.msra.mxu0 0.0
        %1326 = vmatprep.subr.mxu0 0.0
        %1327 = vmatpush2.xpose.msra.mxu0 0.0
        %1328 = vmatprep.subr.mxu0 0.0
        %1329 = vmatpush2.xpose.msra.mxu0 0.0
        %1330 = vmatprep.subr.mxu0 0.0
        %1331 = vmatpush2.xpose.msra.mxu0 0.0
        %1332 = vmatprep.subr.mxu0 0.0
        %1333 = vmatpush2.xpose.msra.mxu0 0.0
        %1334 = vmatprep.subr.mxu0 0.0
        %1335 = vmatpush2.xpose.msra.mxu0 0.0
        %1336 = vmatprep.subr.mxu0 0.0
        %1337 = vmatpush2.xpose.msra.mxu0 0.0
        %1338 = vmatprep.subr.mxu0 0.0
        %1339 = vmatpush2.xpose.msra.mxu0 0.0
        %1340 = vmatprep.subr.mxu0 0.0
        %1341 = vmatpush2.xpose.msra.mxu0 0.0
        %1342 = vmatprep.mubr.f32.mxu0 0.0
        %1343 = vmatmul.mubr.f32.gmra.mxu0 %v1270
        %v1344 = vpop.f32.mrf.mxu0
        %v1345 = vadd.f32 0.0, %v1344
        %v1346 = vpop.f32.mrf.mxu0
        %1347 = vdwg.mxu0
        %v1349 = vsel %vm952, %v803, 0
        %v1352 = vsel %vm952, %v289, 0
        %v1355 = vsel %vm952, %v290, 0
        %1357 = vmatprep.subr.mxu0 0.0
        %1358 = vmatpush1.xpose.msra.mxu0 0.0
        %1359 = vmatprep.subr.mxu0 0.0
        %1360 = vmatpush1.xpose.msra.mxu0 0.0
        %1361 = vmatprep.subr.mxu0 0.0
        %1362 = vmatpush1.xpose.msra.mxu0 0.0
        %1363 = vmatprep.subr.mxu0 0.0
        %1364 = vmatpush1.xpose.msra.mxu0 0.0
        %1365 = vmatprep.subr.mxu0 0.0
        %1366 = vmatpush1.xpose.msra.mxu0 0.0
        %1367 = vmatprep.subr.mxu0 0.0
        %1368 = vmatpush1.xpose.msra.mxu0 0.0
        %1369 = vmatprep.subr.mxu0 0.0
        %1370 = vmatpush1.xpose.msra.mxu0 0.0
        %1371 = vmatprep.subr.mxu0 0.0
        %1372 = vmatpush1.xpose.msra.mxu0 0.0
        %1373 = vmatprep.subr.mxu0 0.0
        %1374 = vmatpush1.xpose.msra.mxu0 0.0
        %1375 = vmatprep.subr.mxu0 0.0
        %1376 = vmatpush1.xpose.msra.mxu0 0.0
        %1377 = vmatprep.subr.mxu0 0.0
        %1378 = vmatpush1.xpose.msra.mxu0 0.0
        %1379 = vmatprep.subr.mxu0 0.0
        %1380 = vmatpush1.xpose.msra.mxu0 0.0
        %1381 = vmatprep.subr.mxu0 0.0
        %1382 = vmatpush1.xpose.msra.mxu0 0.0
        %1383 = vmatprep.subr.mxu0 0.0
        %1384 = vmatpush1.xpose.msra.mxu0 0.0
        %1385 = vmatprep.subr.mxu0 0.0
        %1386 = vmatpush1.xpose.msra.mxu0 %v1355
        %1387 = vmatprep.subr.mxu0 0.0
        %1388 = vmatpush1.xpose.msra.mxu0 %v1352
        %1389 = vmatprep.subr.mxu0 0.0
        %1390 = vmatpush2.xpose.msra.mxu0 0.0
        %1391 = vmatprep.subr.mxu0 0.0
        %1392 = vmatpush2.xpose.msra.mxu0 0.0
        %1393 = vmatprep.subr.mxu0 0.0
        %1394 = vmatpush2.xpose.msra.mxu0 0.0
        %1395 = vmatprep.subr.mxu0 0.0
        %1396 = vmatpush2.xpose.msra.mxu0 0.0
        %1397 = vmatprep.subr.mxu0 0.0
        %1398 = vmatpush2.xpose.msra.mxu0 0.0
        %1399 = vmatprep.subr.mxu0 0.0
        %1400 = vmatpush2.xpose.msra.mxu0 0.0
        %1401 = vmatprep.subr.mxu0 0.0
        %1402 = vmatpush2.xpose.msra.mxu0 0.0
        %1403 = vmatprep.subr.mxu0 0.0
        %1404 = vmatpush2.xpose.msra.mxu0 0.0
        %1405 = vmatprep.subr.mxu0 0.0
        %1406 = vmatpush2.xpose.msra.mxu0 0.0
        %1407 = vmatprep.subr.mxu0 0.0
        %1408 = vmatpush2.xpose.msra.mxu0 0.0
        %1409 = vmatprep.subr.mxu0 0.0
        %1410 = vmatpush2.xpose.msra.mxu0 0.0
        %1411 = vmatprep.subr.mxu0 0.0
        %1412 = vmatpush2.xpose.msra.mxu0 0.0
        %1413 = vmatprep.subr.mxu0 0.0
        %1414 = vmatpush2.xpose.msra.mxu0 0.0
        %1415 = vmatprep.subr.mxu0 0.0
        %1416 = vmatpush2.xpose.msra.mxu0 0.0
        %1417 = vmatprep.subr.mxu0 0.0
        %1418 = vmatpush2.xpose.msra.mxu0 0.0
        %1419 = vmatprep.subr.mxu0 0.0
        %1420 = vmatpush2.xpose.msra.mxu0 0.0
        %1421 = vmatprep.mubr.f32.mxu0 0.0
        %1422 = vmatmul.mubr.f32.gmra.mxu0 %v1349
        %v1423 = vpop.f32.mrf.mxu0
        %v1424 = vadd.f32 0.0, %v1423
        %v1425 = vpop.f32.mrf.mxu0
        %1426 = vdwg.mxu0
        %v1428 = vsel %vm952, %v876, 0
        %v1431 = vsel %vm952, %v291, 0
        %v1434 = vsel %vm952, %v292, 0
        %1436 = vmatprep.subr.mxu0 0.0
        %1437 = vmatpush1.xpose.msra.mxu0 0.0
        %1438 = vmatprep.subr.mxu0 0.0
        %1439 = vmatpush1.xpose.msra.mxu0 0.0
        %1440 = vmatprep.subr.mxu0 0.0
        %1441 = vmatpush1.xpose.msra.mxu0 0.0
        %1442 = vmatprep.subr.mxu0 0.0
        %1443 = vmatpush1.xpose.msra.mxu0 0.0
        %1444 = vmatprep.subr.mxu0 0.0
        %1445 = vmatpush1.xpose.msra.mxu0 0.0
        %1446 = vmatprep.subr.mxu0 0.0
        %1447 = vmatpush1.xpose.msra.mxu0 0.0
        %1448 = vmatprep.subr.mxu0 0.0
        %1449 = vmatpush1.xpose.msra.mxu0 0.0
        %1450 = vmatprep.subr.mxu0 0.0
        %1451 = vmatpush1.xpose.msra.mxu0 0.0
        %1452 = vmatprep.subr.mxu0 0.0
        %1453 = vmatpush1.xpose.msra.mxu0 0.0
        %1454 = vmatprep.subr.mxu0 0.0
        %1455 = vmatpush1.xpose.msra.mxu0 0.0
        %1456 = vmatprep.subr.mxu0 0.0
        %1457 = vmatpush1.xpose.msra.mxu0 0.0
        %1458 = vmatprep.subr.mxu0 0.0
        %1459 = vmatpush1.xpose.msra.mxu0 0.0
        %1460 = vmatprep.subr.mxu0 0.0
        %1461 = vmatpush1.xpose.msra.mxu0 0.0
        %1462 = vmatprep.subr.mxu0 0.0
        %1463 = vmatpush1.xpose.msra.mxu0 0.0
        %1464 = vmatprep.subr.mxu0 0.0
        %1465 = vmatpush1.xpose.msra.mxu0 %v1434
        %1466 = vmatprep.subr.mxu0 0.0
        %1467 = vmatpush1.xpose.msra.mxu0 %v1431
        %1468 = vmatprep.subr.mxu0 0.0
        %1469 = vmatpush2.xpose.msra.mxu0 0.0
        %1470 = vmatprep.subr.mxu0 0.0
        %1471 = vmatpush2.xpose.msra.mxu0 0.0
        %1472 = vmatprep.subr.mxu0 0.0
        %1473 = vmatpush2.xpose.msra.mxu0 0.0
        %1474 = vmatprep.subr.mxu0 0.0
        %1475 = vmatpush2.xpose.msra.mxu0 0.0
        %1476 = vmatprep.subr.mxu0 0.0
        %1477 = vmatpush2.xpose.msra.mxu0 0.0
        %1478 = vmatprep.subr.mxu0 0.0
        %1479 = vmatpush2.xpose.msra.mxu0 0.0
        %1480 = vmatprep.subr.mxu0 0.0
        %1481 = vmatpush2.xpose.msra.mxu0 0.0
        %1482 = vmatprep.subr.mxu0 0.0
        %1483 = vmatpush2.xpose.msra.mxu0 0.0
        %1484 = vmatprep.subr.mxu0 0.0
        %1485 = vmatpush2.xpose.msra.mxu0 0.0
        %1486 = vmatprep.subr.mxu0 0.0
        %1487 = vmatpush2.xpose.msra.mxu0 0.0
        %1488 = vmatprep.subr.mxu0 0.0
        %1489 = vmatpush2.xpose.msra.mxu0 0.0
        %1490 = vmatprep.subr.mxu0 0.0
        %1491 = vmatpush2.xpose.msra.mxu0 0.0
        %1492 = vmatprep.subr.mxu0 0.0
        %1493 = vmatpush2.xpose.msra.mxu0 0.0
        %1494 = vmatprep.subr.mxu0 0.0
        %1495 = vmatpush2.xpose.msra.mxu0 0.0
        %1496 = vmatprep.subr.mxu0 0.0
        %1497 = vmatpush2.xpose.msra.mxu0 0.0
        %1498 = vmatprep.subr.mxu0 0.0
        %1499 = vmatpush2.xpose.msra.mxu0 0.0
        %1500 = vmatprep.mubr.f32.mxu0 0.0
        %1501 = vmatmul.mubr.f32.gmra.mxu0 %v1428
        %v1502 = vpop.f32.mrf.mxu0
        %v1503 = vadd.f32 0.0, %v1502
        %v1504 = vpop.f32.mrf.mxu0
        %1505 = vdwg.mxu0
        %v1507 = vsel %vm952, %v949, 0
        %v1510 = vsel %vm952, %v293, 0
        %v1513 = vsel %vm952, %v294, 0
        %1515 = vmatprep.subr.mxu0 0.0
        %1516 = vmatpush1.xpose.msra.mxu0 0.0
        %1517 = vmatprep.subr.mxu0 0.0
        %1518 = vmatpush1.xpose.msra.mxu0 0.0
        %1519 = vmatprep.subr.mxu0 0.0
        %1520 = vmatpush1.xpose.msra.mxu0 0.0
        %1521 = vmatprep.subr.mxu0 0.0
        %1522 = vmatpush1.xpose.msra.mxu0 0.0
        %1523 = vmatprep.subr.mxu0 0.0
        %1524 = vmatpush1.xpose.msra.mxu0 0.0
        %1525 = vmatprep.subr.mxu0 0.0
        %1526 = vmatpush1.xpose.msra.mxu0 0.0
        %1527 = vmatprep.subr.mxu0 0.0
        %1528 = vmatpush1.xpose.msra.mxu0 0.0
        %1529 = vmatprep.subr.mxu0 0.0
        %1530 = vmatpush1.xpose.msra.mxu0 0.0
        %1531 = vmatprep.subr.mxu0 0.0
        %1532 = vmatpush1.xpose.msra.mxu0 0.0
        %1533 = vmatprep.subr.mxu0 0.0
        %1534 = vmatpush1.xpose.msra.mxu0 0.0
        %1535 = vmatprep.subr.mxu0 0.0
        %1536 = vmatpush1.xpose.msra.mxu0 0.0
        %1537 = vmatprep.subr.mxu0 0.0
        %1538 = vmatpush1.xpose.msra.mxu0 0.0
        %1539 = vmatprep.subr.mxu0 0.0
        %1540 = vmatpush1.xpose.msra.mxu0 0.0
        %1541 = vmatprep.subr.mxu0 0.0
        %1542 = vmatpush1.xpose.msra.mxu0 0.0
        %1543 = vmatprep.subr.mxu0 0.0
        %1544 = vmatpush1.xpose.msra.mxu0 %v1513
        %1545 = vmatprep.subr.mxu0 0.0
        %1546 = vmatpush1.xpose.msra.mxu0 %v1510
        %1547 = vmatprep.subr.mxu0 0.0
        %1548 = vmatpush2.xpose.msra.mxu0 0.0
        %1549 = vmatprep.subr.mxu0 0.0
        %1550 = vmatpush2.xpose.msra.mxu0 0.0
        %1551 = vmatprep.subr.mxu0 0.0
        %1552 = vmatpush2.xpose.msra.mxu0 0.0
        %1553 = vmatprep.subr.mxu0 0.0
        %1554 = vmatpush2.xpose.msra.mxu0 0.0
        %1555 = vmatprep.subr.mxu0 0.0
        %1556 = vmatpush2.xpose.msra.mxu0 0.0
        %1557 = vmatprep.subr.mxu0 0.0
        %1558 = vmatpush2.xpose.msra.mxu0 0.0
        %1559 = vmatprep.subr.mxu0 0.0
        %1560 = vmatpush2.xpose.msra.mxu0 0.0
        %1561 = vmatprep.subr.mxu0 0.0
        %1562 = vmatpush2.xpose.msra.mxu0 0.0
        %1563 = vmatprep.subr.mxu0 0.0
        %1564 = vmatpush2.xpose.msra.mxu0 0.0
        %1565 = vmatprep.subr.mxu0 0.0
        %1566 = vmatpush2.xpose.msra.mxu0 0.0
        %1567 = vmatprep.subr.mxu0 0.0
        %1568 = vmatpush2.xpose.msra.mxu0 0.0
        %1569 = vmatprep.subr.mxu0 0.0
        %1570 = vmatpush2.xpose.msra.mxu0 0.0
        %1571 = vmatprep.subr.mxu0 0.0
        %1572 = vmatpush2.xpose.msra.mxu0 0.0
        %1573 = vmatprep.subr.mxu0 0.0
        %1574 = vmatpush2.xpose.msra.mxu0 0.0
        %1575 = vmatprep.subr.mxu0 0.0
        %1576 = vmatpush2.xpose.msra.mxu0 0.0
        %1577 = vmatprep.subr.mxu0 0.0
        %1578 = vmatpush2.xpose.msra.mxu0 0.0
        %1579 = vmatprep.mubr.f32.mxu0 0.0
        %1580 = vmatmul.mubr.f32.gmra.mxu0 %v1507
        %v1581 = vpop.f32.mrf.mxu0
        %v1582 = vadd.f32 0.0, %v1581
        %v1583 = vpop.f32.mrf.mxu0
        %1584 = vdwg.mxu0
        %v1585 = vmul.f32 %v1029, 0.25
        %v1586 = vmul.f32 %v1108, 0.25
        %v1587 = vmul.f32 %v1187, 0.25
        %v1588 = vmul.f32 %v1266, 0.25
        %v1589 = vmul.f32 %v1345, 0.25
        %v1590 = vmul.f32 %v1424, 0.25
        %v1591 = vmul.f32 %v1503, 0.25
        %v1592 = vmul.f32 %v1582, 0.25
        %v1593 = vlaneseq
        %v1594 = vshrl.u32 %v1593, 7
        %v1595 = vsub.s32 0, %v1594
        %v1596 = vrot.slane %v1585, %v1595
        %1598 = vbcast.lane.b32.xlu0 %v1596, 256
        %v1599 = vpop.permute.xlu0 %1598
        %s1601 = sor.u32 256, 8
        %1602 = vbcast.lane.b32.xlu0 %v1596, %s1601
        %v1603 = vpop.permute.xlu0 %1602
        %v1604 = vlaneseq
        %v1605 = vshrl.u32 %v1604, 7
        %v1606 = vsub.s32 1, %v1605
        %v1607 = vrot.slane %v1585, %v1606
        %1609 = vbcast.lane.b32.xlu0 %v1607, 256
        %v1610 = vpop.permute.xlu0 %1609
        %s1612 = sor.u32 256, 8
        %1613 = vbcast.lane.b32.xlu0 %v1607, %s1612
        %v1614 = vpop.permute.xlu0 %1613
        %v1615 = vlaneseq
        %v1616 = vshrl.u32 %v1615, 7
        %v1617 = vsub.s32 2, %v1616
        %v1618 = vrot.slane %v1585, %v1617
        %1620 = vbcast.lane.b32.xlu0 %v1618, 256
        %v1621 = vpop.permute.xlu0 %1620
        %s1623 = sor.u32 256, 8
        %1624 = vbcast.lane.b32.xlu0 %v1618, %s1623
        %v1625 = vpop.permute.xlu0 %1624
        %v1626 = vlaneseq
        %v1627 = vshrl.u32 %v1626, 7
        %v1628 = vsub.s32 3, %v1627
        %v1629 = vrot.slane %v1585, %v1628
        %1631 = vbcast.lane.b32.xlu0 %v1629, 256
        %v1632 = vpop.permute.xlu0 %1631
        %s1634 = sor.u32 256, 8
        %1635 = vbcast.lane.b32.xlu0 %v1629, %s1634
        %v1636 = vpop.permute.xlu0 %1635
        %v1637 = vlaneseq
        %v1638 = vshrl.u32 %v1637, 7
        %v1639 = vsub.s32 0, %v1638
        %v1640 = vrot.slane %v1586, %v1639
        %1642 = vbcast.lane.b32.xlu0 %v1640, 256
        %v1643 = vpop.permute.xlu0 %1642
        %s1645 = sor.u32 256, 8
        %1646 = vbcast.lane.b32.xlu0 %v1640, %s1645
        %v1647 = vpop.permute.xlu0 %1646
        %v1648 = vlaneseq
        %v1649 = vshrl.u32 %v1648, 7
        %v1650 = vsub.s32 1, %v1649
        %v1651 = vrot.slane %v1586, %v1650
        %1653 = vbcast.lane.b32.xlu0 %v1651, 256
        %v1654 = vpop.permute.xlu0 %1653
        %s1656 = sor.u32 256, 8
        %1657 = vbcast.lane.b32.xlu0 %v1651, %s1656
        %v1658 = vpop.permute.xlu0 %1657
        %v1659 = vlaneseq
        %v1660 = vshrl.u32 %v1659, 7
        %v1661 = vsub.s32 2, %v1660
        %v1662 = vrot.slane %v1586, %v1661
        %1664 = vbcast.lane.b32.xlu0 %v1662, 256
        %v1665 = vpop.permute.xlu0 %1664
        %s1667 = sor.u32 256, 8
        %1668 = vbcast.lane.b32.xlu0 %v1662, %s1667
        %v1669 = vpop.permute.xlu0 %1668
        %v1670 = vlaneseq
        %v1671 = vshrl.u32 %v1670, 7
        %v1672 = vsub.s32 3, %v1671
        %v1673 = vrot.slane %v1586, %v1672
        %1675 = vbcast.lane.b32.xlu0 %v1673, 256
        %v1676 = vpop.permute.xlu0 %1675
        %s1678 = sor.u32 256, 8
        %1679 = vbcast.lane.b32.xlu0 %v1673, %s1678
        %v1680 = vpop.permute.xlu0 %1679
        %v1681 = vlaneseq
        %v1682 = vshrl.u32 %v1681, 7
        %v1683 = vsub.s32 0, %v1682
        %v1684 = vrot.slane %v1587, %v1683
        %1686 = vbcast.lane.b32.xlu0 %v1684, 256
        %v1687 = vpop.permute.xlu0 %1686
        %s1689 = sor.u32 256, 8
        %1690 = vbcast.lane.b32.xlu0 %v1684, %s1689
        %v1691 = vpop.permute.xlu0 %1690
        %v1692 = vlaneseq
        %v1693 = vshrl.u32 %v1692, 7
        %v1694 = vsub.s32 1, %v1693
        %v1695 = vrot.slane %v1587, %v1694
        %1697 = vbcast.lane.b32.xlu0 %v1695, 256
        %v1698 = vpop.permute.xlu0 %1697
        %s1700 = sor.u32 256, 8
        %1701 = vbcast.lane.b32.xlu0 %v1695, %s1700
        %v1702 = vpop.permute.xlu0 %1701
        %v1703 = vlaneseq
        %v1704 = vshrl.u32 %v1703, 7
        %v1705 = vsub.s32 2, %v1704
        %v1706 = vrot.slane %v1587, %v1705
        %1708 = vbcast.lane.b32.xlu0 %v1706, 256
        %v1709 = vpop.permute.xlu0 %1708
        %s1711 = sor.u32 256, 8
        %1712 = vbcast.lane.b32.xlu0 %v1706, %s1711
        %v1713 = vpop.permute.xlu0 %1712
        %v1714 = vlaneseq
        %v1715 = vshrl.u32 %v1714, 7
        %v1716 = vsub.s32 3, %v1715
        %v1717 = vrot.slane %v1587, %v1716
        %1719 = vbcast.lane.b32.xlu0 %v1717, 256
        %v1720 = vpop.permute.xlu0 %1719
        %s1722 = sor.u32 256, 8
        %1723 = vbcast.lane.b32.xlu0 %v1717, %s1722
        %v1724 = vpop.permute.xlu0 %1723
        %v1725 = vlaneseq
        %v1726 = vshrl.u32 %v1725, 7
        %v1727 = vsub.s32 0, %v1726
        %v1728 = vrot.slane %v1588, %v1727
        %1730 = vbcast.lane.b32.xlu0 %v1728, 256
        %v1731 = vpop.permute.xlu0 %1730
        %s1733 = sor.u32 256, 8
        %1734 = vbcast.lane.b32.xlu0 %v1728, %s1733
        %v1735 = vpop.permute.xlu0 %1734
        %v1736 = vlaneseq
        %v1737 = vshrl.u32 %v1736, 7
        %v1738 = vsub.s32 1, %v1737
        %v1739 = vrot.slane %v1588, %v1738
        %1741 = vbcast.lane.b32.xlu0 %v1739, 256
        %v1742 = vpop.permute.xlu0 %1741
        %s1744 = sor.u32 256, 8
        %1745 = vbcast.lane.b32.xlu0 %v1739, %s1744
        %v1746 = vpop.permute.xlu0 %1745
        %v1747 = vlaneseq
        %v1748 = vshrl.u32 %v1747, 7
        %v1749 = vsub.s32 2, %v1748
        %v1750 = vrot.slane %v1588, %v1749
        %1752 = vbcast.lane.b32.xlu0 %v1750, 256
        %v1753 = vpop.permute.xlu0 %1752
        %s1755 = sor.u32 256, 8
        %1756 = vbcast.lane.b32.xlu0 %v1750, %s1755
        %v1757 = vpop.permute.xlu0 %1756
        %v1758 = vlaneseq
        %v1759 = vshrl.u32 %v1758, 7
        %v1760 = vsub.s32 3, %v1759
        %v1761 = vrot.slane %v1588, %v1760
        %1763 = vbcast.lane.b32.xlu0 %v1761, 256
        %v1764 = vpop.permute.xlu0 %1763
        %s1766 = sor.u32 256, 8
        %1767 = vbcast.lane.b32.xlu0 %v1761, %s1766
        %v1768 = vpop.permute.xlu0 %1767
        %v1769 = vlaneseq
        %v1770 = vshrl.u32 %v1769, 7
        %v1771 = vsub.s32 0, %v1770
        %v1772 = vrot.slane %v1589, %v1771
        %1774 = vbcast.lane.b32.xlu0 %v1772, 256
        %v1775 = vpop.permute.xlu0 %1774
        %s1777 = sor.u32 256, 8
        %1778 = vbcast.lane.b32.xlu0 %v1772, %s1777
        %v1779 = vpop.permute.xlu0 %1778
        %v1780 = vlaneseq
        %v1781 = vshrl.u32 %v1780, 7
        %v1782 = vsub.s32 1, %v1781
        %v1783 = vrot.slane %v1589, %v1782
        %1785 = vbcast.lane.b32.xlu0 %v1783, 256
        %v1786 = vpop.permute.xlu0 %1785
        %s1788 = sor.u32 256, 8
        %1789 = vbcast.lane.b32.xlu0 %v1783, %s1788
        %v1790 = vpop.permute.xlu0 %1789
        %v1791 = vlaneseq
        %v1792 = vshrl.u32 %v1791, 7
        %v1793 = vsub.s32 2, %v1792
        %v1794 = vrot.slane %v1589, %v1793
        %1796 = vbcast.lane.b32.xlu0 %v1794, 256
        %v1797 = vpop.permute.xlu0 %1796
        %s1799 = sor.u32 256, 8
        %1800 = vbcast.lane.b32.xlu0 %v1794, %s1799
        %v1801 = vpop.permute.xlu0 %1800
        %v1802 = vlaneseq
        %v1803 = vshrl.u32 %v1802, 7
        %v1804 = vsub.s32 3, %v1803
        %v1805 = vrot.slane %v1589, %v1804
        %1807 = vbcast.lane.b32.xlu0 %v1805, 256
        %v1808 = vpop.permute.xlu0 %1807
        %s1810 = sor.u32 256, 8
        %1811 = vbcast.lane.b32.xlu0 %v1805, %s1810
        %v1812 = vpop.permute.xlu0 %1811
        %v1813 = vlaneseq
        %v1814 = vshrl.u32 %v1813, 7
        %v1815 = vsub.s32 0, %v1814
        %v1816 = vrot.slane %v1590, %v1815
        %1818 = vbcast.lane.b32.xlu0 %v1816, 256
        %v1819 = vpop.permute.xlu0 %1818
        %s1821 = sor.u32 256, 8
        %1822 = vbcast.lane.b32.xlu0 %v1816, %s1821
        %v1823 = vpop.permute.xlu0 %1822
        %v1824 = vlaneseq
        %v1825 = vshrl.u32 %v1824, 7
        %v1826 = vsub.s32 1, %v1825
        %v1827 = vrot.slane %v1590, %v1826
        %1829 = vbcast.lane.b32.xlu0 %v1827, 256
        %v1830 = vpop.permute.xlu0 %1829
        %s1832 = sor.u32 256, 8
        %1833 = vbcast.lane.b32.xlu0 %v1827, %s1832
        %v1834 = vpop.permute.xlu0 %1833
        %v1835 = vlaneseq
        %v1836 = vshrl.u32 %v1835, 7
        %v1837 = vsub.s32 2, %v1836
        %v1838 = vrot.slane %v1590, %v1837
        %1840 = vbcast.lane.b32.xlu0 %v1838, 256
        %v1841 = vpop.permute.xlu0 %1840
        %s1843 = sor.u32 256, 8
        %1844 = vbcast.lane.b32.xlu0 %v1838, %s1843
        %v1845 = vpop.permute.xlu0 %1844
        %v1846 = vlaneseq
        %v1847 = vshrl.u32 %v1846, 7
        %v1848 = vsub.s32 3, %v1847
        %v1849 = vrot.slane %v1590, %v1848
        %1851 = vbcast.lane.b32.xlu0 %v1849, 256
        %v1852 = vpop.permute.xlu0 %1851
        %s1854 = sor.u32 256, 8
        %1855 = vbcast.lane.b32.xlu0 %v1849, %s1854
        %v1856 = vpop.permute.xlu0 %1855
        %v1857 = vlaneseq
        %v1858 = vshrl.u32 %v1857, 7
        %v1859 = vsub.s32 0, %v1858
        %v1860 = vrot.slane %v1591, %v1859
        %1862 = vbcast.lane.b32.xlu0 %v1860, 256
        %v1863 = vpop.permute.xlu0 %1862
        %s1865 = sor.u32 256, 8
        %1866 = vbcast.lane.b32.xlu0 %v1860, %s1865
        %v1867 = vpop.permute.xlu0 %1866
        %v1868 = vlaneseq
        %v1869 = vshrl.u32 %v1868, 7
        %v1870 = vsub.s32 1, %v1869
        %v1871 = vrot.slane %v1591, %v1870
        %1873 = vbcast.lane.b32.xlu0 %v1871, 256
        %v1874 = vpop.permute.xlu0 %1873
        %s1876 = sor.u32 256, 8
        %1877 = vbcast.lane.b32.xlu0 %v1871, %s1876
        %v1878 = vpop.permute.xlu0 %1877
        %v1879 = vlaneseq
        %v1880 = vshrl.u32 %v1879, 7
        %v1881 = vsub.s32 2, %v1880
        %v1882 = vrot.slane %v1591, %v1881
        %1884 = vbcast.lane.b32.xlu0 %v1882, 256
        %v1885 = vpop.permute.xlu0 %1884
        %s1887 = sor.u32 256, 8
        %1888 = vbcast.lane.b32.xlu0 %v1882, %s1887
        %v1889 = vpop.permute.xlu0 %1888
        %v1890 = vlaneseq
        %v1891 = vshrl.u32 %v1890, 7
        %v1892 = vsub.s32 3, %v1891
        %v1893 = vrot.slane %v1591, %v1892
        %1895 = vbcast.lane.b32.xlu0 %v1893, 256
        %v1896 = vpop.permute.xlu0 %1895
        %s1898 = sor.u32 256, 8
        %1899 = vbcast.lane.b32.xlu0 %v1893, %s1898
        %v1900 = vpop.permute.xlu0 %1899
        %v1901 = vlaneseq
        %v1902 = vshrl.u32 %v1901, 7
        %v1903 = vsub.s32 0, %v1902
        %v1904 = vrot.slane %v1592, %v1903
        %1906 = vbcast.lane.b32.xlu0 %v1904, 256
        %v1907 = vpop.permute.xlu0 %1906
        %s1909 = sor.u32 256, 8
        %1910 = vbcast.lane.b32.xlu0 %v1904, %s1909
        %v1911 = vpop.permute.xlu0 %1910
        %v1912 = vlaneseq
        %v1913 = vshrl.u32 %v1912, 7
        %v1914 = vsub.s32 1, %v1913
        %v1915 = vrot.slane %v1592, %v1914
        %1917 = vbcast.lane.b32.xlu0 %v1915, 256
        %v1918 = vpop.permute.xlu0 %1917
        %s1920 = sor.u32 256, 8
        %1921 = vbcast.lane.b32.xlu0 %v1915, %s1920
        %v1922 = vpop.permute.xlu0 %1921
        %v1923 = vlaneseq
        %v1924 = vshrl.u32 %v1923, 7
        %v1925 = vsub.s32 2, %v1924
        %v1926 = vrot.slane %v1592, %v1925
        %1928 = vbcast.lane.b32.xlu0 %v1926, 256
        %v1929 = vpop.permute.xlu0 %1928
        %s1931 = sor.u32 256, 8
        %1932 = vbcast.lane.b32.xlu0 %v1926, %s1931
        %v1933 = vpop.permute.xlu0 %1932
        %v1934 = vlaneseq
        %v1935 = vshrl.u32 %v1934, 7
        %v1936 = vsub.s32 3, %v1935
        %v1937 = vrot.slane %v1592, %v1936
        %1939 = vbcast.lane.b32.xlu0 %v1937, 256
        %v1940 = vpop.permute.xlu0 %1939
        %s1942 = sor.u32 256, 8
        %1943 = vbcast.lane.b32.xlu0 %v1937, %s1942
        %v1944 = vpop.permute.xlu0 %1943
        %v1954 = vunpack.c.l.s4 1966171168
        %v1955 = vunpack.c.0.s8 %v1954
        %v1956 = vlaneseq
        %v1957 = vshrl.u32 %v1956, 7
        %v1958 = vsub.s32 %v1955, %v1957
        %v1959 = vrot.slane %v1585, %v1958
        %v1960 = vcombine.high %v1959, %v1959
        %v1962 = vunpack.c.l.s4 1966171168
        %v1963 = vunpack.c.0.s8 %v1962
        %v1964 = vlaneseq
        %v1965 = vshrl.u32 %v1964, 7
        %v1966 = vsub.s32 %v1963, %v1965
        %v1967 = vrot.slane %v1959, %v1966
        %v1969 = vunpack.c.l.s4 1966171168
        %v1970 = vunpack.c.0.s8 %v1969
        %v1971 = vlaneseq
        %v1972 = vshrl.u32 %v1971, 7
        %v1973 = vsub.s32 %v1970, %v1972
        %v1974 = vrot.slane %v1960, %v1973
        %v1975 = vcombine.high %v1967, %v1967
        %v1976 = vcombine.high %v1974, %v1974
        %v1978 = vunpack.c.l.s4 1966171168
        %v1979 = vunpack.c.0.s8 %v1978
        %v1980 = vlaneseq
        %v1981 = vshrl.u32 %v1980, 7
        %v1982 = vsub.s32 %v1979, %v1981
        %v1983 = vrot.slane %v1586, %v1982
        %v1984 = vcombine.high %v1983, %v1983
        %v1986 = vunpack.c.l.s4 1966171168
        %v1987 = vunpack.c.0.s8 %v1986
        %v1988 = vlaneseq
        %v1989 = vshrl.u32 %v1988, 7
        %v1990 = vsub.s32 %v1987, %v1989
        %v1991 = vrot.slane %v1983, %v1990
        %v1993 = vunpack.c.l.s4 1966171168
        %v1994 = vunpack.c.0.s8 %v1993
        %v1995 = vlaneseq
        %v1996 = vshrl.u32 %v1995, 7
        %v1997 = vsub.s32 %v1994, %v1996
        %v1998 = vrot.slane %v1984, %v1997
        %v1999 = vcombine.high %v1991, %v1991
        %v2000 = vcombine.high %v1998, %v1998
        %v2002 = vunpack.c.l.s4 1966171168
        %v2003 = vunpack.c.0.s8 %v2002
        %v2004 = vlaneseq
        %v2005 = vshrl.u32 %v2004, 7
        %v2006 = vsub.s32 %v2003, %v2005
        %v2007 = vrot.slane %v1587, %v2006
        %v2008 = vcombine.high %v2007, %v2007
        %v2010 = vunpack.c.l.s4 1966171168
        %v2011 = vunpack.c.0.s8 %v2010
        %v2012 = vlaneseq
        %v2013 = vshrl.u32 %v2012, 7
        %v2014 = vsub.s32 %v2011, %v2013
        %v2015 = vrot.slane %v2007, %v2014
        %v2017 = vunpack.c.l.s4 1966171168
        %v2018 = vunpack.c.0.s8 %v2017
        %v2019 = vlaneseq
        %v2020 = vshrl.u32 %v2019, 7
        %v2021 = vsub.s32 %v2018, %v2020
        %v2022 = vrot.slane %v2008, %v2021
        %v2023 = vcombine.high %v2015, %v2015
        %v2024 = vcombine.high %v2022, %v2022
        %v2026 = vunpack.c.l.s4 1966171168
        %v2027 = vunpack.c.0.s8 %v2026
        %v2028 = vlaneseq
        %v2029 = vshrl.u32 %v2028, 7
        %v2030 = vsub.s32 %v2027, %v2029
        %v2031 = vrot.slane %v1588, %v2030
        %v2032 = vcombine.high %v2031, %v2031
        %v2034 = vunpack.c.l.s4 1966171168
        %v2035 = vunpack.c.0.s8 %v2034
        %v2036 = vlaneseq
        %v2037 = vshrl.u32 %v2036, 7
        %v2038 = vsub.s32 %v2035, %v2037
        %v2039 = vrot.slane %v2031, %v2038
        %v2041 = vunpack.c.l.s4 1966171168
        %v2042 = vunpack.c.0.s8 %v2041
        %v2043 = vlaneseq
        %v2044 = vshrl.u32 %v2043, 7
        %v2045 = vsub.s32 %v2042, %v2044
        %v2046 = vrot.slane %v2032, %v2045
        %v2047 = vcombine.high %v2039, %v2039
        %v2048 = vcombine.high %v2046, %v2046
        %v2050 = vunpack.c.l.s4 1966171168
        %v2051 = vunpack.c.0.s8 %v2050
        %v2052 = vlaneseq
        %v2053 = vshrl.u32 %v2052, 7
        %v2054 = vsub.s32 %v2051, %v2053
        %v2055 = vrot.slane %v1589, %v2054
        %v2056 = vcombine.high %v2055, %v2055
        %v2058 = vunpack.c.l.s4 1966171168
        %v2059 = vunpack.c.0.s8 %v2058
        %v2060 = vlaneseq
        %v2061 = vshrl.u32 %v2060, 7
        %v2062 = vsub.s32 %v2059, %v2061
        %v2063 = vrot.slane %v2055, %v2062
        %v2065 = vunpack.c.l.s4 1966171168
        %v2066 = vunpack.c.0.s8 %v2065
        %v2067 = vlaneseq
        %v2068 = vshrl.u32 %v2067, 7
        %v2069 = vsub.s32 %v2066, %v2068
        %v2070 = vrot.slane %v2056, %v2069
        %v2071 = vcombine.high %v2063, %v2063
        %v2072 = vcombine.high %v2070, %v2070
        %v2074 = vunpack.c.l.s4 1966171168
        %v2075 = vunpack.c.0.s8 %v2074
        %v2076 = vlaneseq
        %v2077 = vshrl.u32 %v2076, 7
        %v2078 = vsub.s32 %v2075, %v2077
        %v2079 = vrot.slane %v1590, %v2078
        %v2080 = vcombine.high %v2079, %v2079
        %v2082 = vunpack.c.l.s4 1966171168
        %v2083 = vunpack.c.0.s8 %v2082
        %v2084 = vlaneseq
        %v2085 = vshrl.u32 %v2084, 7
        %v2086 = vsub.s32 %v2083, %v2085
        %v2087 = vrot.slane %v2079, %v2086
        %v2089 = vunpack.c.l.s4 1966171168
        %v2090 = vunpack.c.0.s8 %v2089
        %v2091 = vlaneseq
        %v2092 = vshrl.u32 %v2091, 7
        %v2093 = vsub.s32 %v2090, %v2092
        %v2094 = vrot.slane %v2080, %v2093
        %v2095 = vcombine.high %v2087, %v2087
        %v2096 = vcombine.high %v2094, %v2094
        %v2098 = vunpack.c.l.s4 1966171168
        %v2099 = vunpack.c.0.s8 %v2098
        %v2100 = vlaneseq
        %v2101 = vshrl.u32 %v2100, 7
        %v2102 = vsub.s32 %v2099, %v2101
        %v2103 = vrot.slane %v1591, %v2102
        %v2104 = vcombine.high %v2103, %v2103
        %v2106 = vunpack.c.l.s4 1966171168
        %v2107 = vunpack.c.0.s8 %v2106
        %v2108 = vlaneseq
        %v2109 = vshrl.u32 %v2108, 7
        %v2110 = vsub.s32 %v2107, %v2109
        %v2111 = vrot.slane %v2103, %v2110
        %v2113 = vunpack.c.l.s4 1966171168
        %v2114 = vunpack.c.0.s8 %v2113
        %v2115 = vlaneseq
        %v2116 = vshrl.u32 %v2115, 7
        %v2117 = vsub.s32 %v2114, %v2116
        %v2118 = vrot.slane %v2104, %v2117
        %v2119 = vcombine.high %v2111, %v2111
        %v2120 = vcombine.high %v2118, %v2118
        %v2122 = vunpack.c.l.s4 1966171168
        %v2123 = vunpack.c.0.s8 %v2122
        %v2124 = vlaneseq
        %v2125 = vshrl.u32 %v2124, 7
        %v2126 = vsub.s32 %v2123, %v2125
        %v2127 = vrot.slane %v1592, %v2126
        %v2128 = vcombine.high %v2127, %v2127
        %v2130 = vunpack.c.l.s4 1966171168
        %v2131 = vunpack.c.0.s8 %v2130
        %v2132 = vlaneseq
        %v2133 = vshrl.u32 %v2132, 7
        %v2134 = vsub.s32 %v2131, %v2133
        %v2135 = vrot.slane %v2127, %v2134
        %v2137 = vunpack.c.l.s4 1966171168
        %v2138 = vunpack.c.0.s8 %v2137
        %v2139 = vlaneseq
        %v2140 = vshrl.u32 %v2139, 7
        %v2141 = vsub.s32 %v2138, %v2140
        %v2142 = vrot.slane %v2128, %v2141
        %v2143 = vcombine.high %v2135, %v2135
        %v2144 = vcombine.high %v2142, %v2142
        %v2145 = vlaneseq
        %v2146 = vshrl.u32 %v2145, 7
        %v2147 = vsub.s32 0, %v2146
        %v2148 = vrot.slane %v1967, %v2147
        %v2149 = vlaneseq
        %v2150 = vshrl.u32 %v2149, 7
        %v2151 = vsub.s32 0, %v2150
        %v2152 = vrot.slane %v1974, %v2151
        %v2153 = vlaneseq
        %v2154 = vshrl.u32 %v2153, 7
        %v2155 = vsub.s32 0, %v2154
        %v2156 = vrot.slane %v1975, %v2155
        %v2157 = vlaneseq
        %v2158 = vshrl.u32 %v2157, 7
        %v2159 = vsub.s32 0, %v2158
        %v2160 = vrot.slane %v1976, %v2159
        %v2161 = vlaneseq
        %v2162 = vshrl.u32 %v2161, 7
        %v2163 = vsub.s32 0, %v2162
        %v2164 = vrot.slane %v1991, %v2163
        %v2165 = vlaneseq
        %v2166 = vshrl.u32 %v2165, 7
        %v2167 = vsub.s32 0, %v2166
        %v2168 = vrot.slane %v1998, %v2167
        %v2169 = vlaneseq
        %v2170 = vshrl.u32 %v2169, 7
        %v2171 = vsub.s32 0, %v2170
        %v2172 = vrot.slane %v1999, %v2171
        %v2173 = vlaneseq
        %v2174 = vshrl.u32 %v2173, 7
        %v2175 = vsub.s32 0, %v2174
        %v2176 = vrot.slane %v2000, %v2175
        %v2177 = vlaneseq
        %v2178 = vshrl.u32 %v2177, 7
        %v2179 = vsub.s32 0, %v2178
        %v2180 = vrot.slane %v2015, %v2179
        %v2181 = vlaneseq
        %v2182 = vshrl.u32 %v2181, 7
        %v2183 = vsub.s32 0, %v2182
        %v2184 = vrot.slane %v2022, %v2183
        %v2185 = vlaneseq
        %v2186 = vshrl.u32 %v2185, 7
        %v2187 = vsub.s32 0, %v2186
        %v2188 = vrot.slane %v2023, %v2187
        %v2189 = vlaneseq
        %v2190 = vshrl.u32 %v2189, 7
        %v2191 = vsub.s32 0, %v2190
        %v2192 = vrot.slane %v2024, %v2191
        %v2193 = vlaneseq
        %v2194 = vshrl.u32 %v2193, 7
        %v2195 = vsub.s32 0, %v2194
        %v2196 = vrot.slane %v2039, %v2195
        %v2197 = vlaneseq
        %v2198 = vshrl.u32 %v2197, 7
        %v2199 = vsub.s32 0, %v2198
        %v2200 = vrot.slane %v2046, %v2199
        %v2201 = vlaneseq
        %v2202 = vshrl.u32 %v2201, 7
        %v2203 = vsub.s32 0, %v2202
        %v2204 = vrot.slane %v2047, %v2203
        %v2205 = vlaneseq
        %v2206 = vshrl.u32 %v2205, 7
        %v2207 = vsub.s32 0, %v2206
        %v2208 = vrot.slane %v2048, %v2207
        %v2209 = vlaneseq
        %v2210 = vshrl.u32 %v2209, 7
        %v2211 = vsub.s32 0, %v2210
        %v2212 = vrot.slane %v2063, %v2211
        %v2213 = vlaneseq
        %v2214 = vshrl.u32 %v2213, 7
        %v2215 = vsub.s32 0, %v2214
        %v2216 = vrot.slane %v2070, %v2215
        %v2217 = vlaneseq
        %v2218 = vshrl.u32 %v2217, 7
        %v2219 = vsub.s32 0, %v2218
        %v2220 = vrot.slane %v2071, %v2219
        %v2221 = vlaneseq
        %v2222 = vshrl.u32 %v2221, 7
        %v2223 = vsub.s32 0, %v2222
        %v2224 = vrot.slane %v2072, %v2223
        %v2225 = vlaneseq
        %v2226 = vshrl.u32 %v2225, 7
        %v2227 = vsub.s32 0, %v2226
        %v2228 = vrot.slane %v2087, %v2227
        %v2229 = vlaneseq
        %v2230 = vshrl.u32 %v2229, 7
        %v2231 = vsub.s32 0, %v2230
        %v2232 = vrot.slane %v2094, %v2231
        %v2233 = vlaneseq
        %v2234 = vshrl.u32 %v2233, 7
        %v2235 = vsub.s32 0, %v2234
        %v2236 = vrot.slane %v2095, %v2235
        %v2237 = vlaneseq
        %v2238 = vshrl.u32 %v2237, 7
        %v2239 = vsub.s32 0, %v2238
        %v2240 = vrot.slane %v2096, %v2239
        %v2241 = vlaneseq
        %v2242 = vshrl.u32 %v2241, 7
        %v2243 = vsub.s32 0, %v2242
        %v2244 = vrot.slane %v2111, %v2243
        %v2245 = vlaneseq
        %v2246 = vshrl.u32 %v2245, 7
        %v2247 = vsub.s32 0, %v2246
        %v2248 = vrot.slane %v2118, %v2247
        %v2249 = vlaneseq
        %v2250 = vshrl.u32 %v2249, 7
        %v2251 = vsub.s32 0, %v2250
        %v2252 = vrot.slane %v2119, %v2251
        %v2253 = vlaneseq
        %v2254 = vshrl.u32 %v2253, 7
        %v2255 = vsub.s32 0, %v2254
        %v2256 = vrot.slane %v2120, %v2255
        %v2257 = vlaneseq
        %v2258 = vshrl.u32 %v2257, 7
        %v2259 = vsub.s32 0, %v2258
        %v2260 = vrot.slane %v2135, %v2259
        %v2261 = vlaneseq
        %v2262 = vshrl.u32 %v2261, 7
        %v2263 = vsub.s32 0, %v2262
        %v2264 = vrot.slane %v2142, %v2263
        %v2265 = vlaneseq
        %v2266 = vshrl.u32 %v2265, 7
        %v2267 = vsub.s32 0, %v2266
        %v2268 = vrot.slane %v2143, %v2267
        %v2269 = vlaneseq
        %v2270 = vshrl.u32 %v2269, 7
        %v2271 = vsub.s32 0, %v2270
        %v2272 = vrot.slane %v2144, %v2271
        %vm2305 = vcmp.gt.f32.partialorder %v1599, %v2148
        %vm2306 = vcmp.gt.f32.partialorder %v1603, %v2148
        %vm2307 = vcmp.gt.f32.partialorder %v1610, %v2152
        %vm2308 = vcmp.gt.f32.partialorder %v1614, %v2152
        %vm2309 = vcmp.gt.f32.partialorder %v1621, %v2156
        %vm2310 = vcmp.gt.f32.partialorder %v1625, %v2156
        %vm2311 = vcmp.gt.f32.partialorder %v1632, %v2160
        %vm2312 = vcmp.gt.f32.partialorder %v1636, %v2160
        %vm2313 = vcmp.gt.f32.partialorder %v1643, %v2164
        %vm2314 = vcmp.gt.f32.partialorder %v1647, %v2164
        %vm2315 = vcmp.gt.f32.partialorder %v1654, %v2168
        %vm2316 = vcmp.gt.f32.partialorder %v1658, %v2168
        %vm2317 = vcmp.gt.f32.partialorder %v1665, %v2172
        %vm2318 = vcmp.gt.f32.partialorder %v1669, %v2172
        %vm2319 = vcmp.gt.f32.partialorder %v1676, %v2176
        %vm2320 = vcmp.gt.f32.partialorder %v1680, %v2176
        %vm2321 = vcmp.gt.f32.partialorder %v1687, %v2180
        %vm2322 = vcmp.gt.f32.partialorder %v1691, %v2180
        %vm2323 = vcmp.gt.f32.partialorder %v1698, %v2184
        %vm2324 = vcmp.gt.f32.partialorder %v1702, %v2184
        %vm2325 = vcmp.gt.f32.partialorder %v1709, %v2188
        %vm2326 = vcmp.gt.f32.partialorder %v1713, %v2188
        %vm2327 = vcmp.gt.f32.partialorder %v1720, %v2192
        %vm2328 = vcmp.gt.f32.partialorder %v1724, %v2192
        %vm2329 = vcmp.gt.f32.partialorder %v1731, %v2196
        %vm2330 = vcmp.gt.f32.partialorder %v1735, %v2196
        %vm2331 = vcmp.gt.f32.partialorder %v1742, %v2200
        %vm2332 = vcmp.gt.f32.partialorder %v1746, %v2200
        %vm2333 = vcmp.gt.f32.partialorder %v1753, %v2204
        %vm2334 = vcmp.gt.f32.partialorder %v1757, %v2204
        %vm2335 = vcmp.gt.f32.partialorder %v1764, %v2208
        %vm2336 = vcmp.gt.f32.partialorder %v1768, %v2208
        %vm2337 = vcmp.gt.f32.partialorder %v1775, %v2212
        %vm2338 = vcmp.gt.f32.partialorder %v1779, %v2212
        %vm2339 = vcmp.gt.f32.partialorder %v1786, %v2216
        %vm2340 = vcmp.gt.f32.partialorder %v1790, %v2216
        %vm2341 = vcmp.gt.f32.partialorder %v1797, %v2220
        %vm2342 = vcmp.gt.f32.partialorder %v1801, %v2220
        %vm2343 = vcmp.gt.f32.partialorder %v1808, %v2224
        %vm2344 = vcmp.gt.f32.partialorder %v1812, %v2224
        %vm2345 = vcmp.gt.f32.partialorder %v1819, %v2228
        %vm2346 = vcmp.gt.f32.partialorder %v1823, %v2228
        %vm2347 = vcmp.gt.f32.partialorder %v1830, %v2232
        %vm2348 = vcmp.gt.f32.partialorder %v1834, %v2232
        %vm2349 = vcmp.gt.f32.partialorder %v1841, %v2236
        %vm2350 = vcmp.gt.f32.partialorder %v1845, %v2236
        %vm2351 = vcmp.gt.f32.partialorder %v1852, %v2240
        %vm2352 = vcmp.gt.f32.partialorder %v1856, %v2240
        %vm2353 = vcmp.gt.f32.partialorder %v1863, %v2244
        %vm2354 = vcmp.gt.f32.partialorder %v1867, %v2244
        %vm2355 = vcmp.gt.f32.partialorder %v1874, %v2248
        %vm2356 = vcmp.gt.f32.partialorder %v1878, %v2248
        %vm2357 = vcmp.gt.f32.partialorder %v1885, %v2252
        %vm2358 = vcmp.gt.f32.partialorder %v1889, %v2252
        %vm2359 = vcmp.gt.f32.partialorder %v1896, %v2256
        %vm2360 = vcmp.gt.f32.partialorder %v1900, %v2256
        %vm2361 = vcmp.gt.f32.partialorder %v1907, %v2260
        %vm2362 = vcmp.gt.f32.partialorder %v1911, %v2260
        %vm2363 = vcmp.gt.f32.partialorder %v1918, %v2264
        %vm2364 = vcmp.gt.f32.partialorder %v1922, %v2264
        %vm2365 = vcmp.gt.f32.partialorder %v1929, %v2268
        %vm2366 = vcmp.gt.f32.partialorder %v1933, %v2268
        %vm2367 = vcmp.gt.f32.partialorder %v1940, %v2272
        %vm2368 = vcmp.gt.f32.partialorder %v1944, %v2272
        %v2369 = vsel %vm2305, 1, 0
        %v2370 = vsel %vm2306, 1, 0
        %v2371 = vsel %vm2307, 1, 0
        %v2372 = vsel %vm2308, 1, 0
        %v2373 = vsel %vm2309, 1, 0
        %v2374 = vsel %vm2310, 1, 0
        %v2375 = vsel %vm2311, 1, 0
        %v2376 = vsel %vm2312, 1, 0
        %v2377 = vsel %vm2313, 1, 0
        %v2378 = vsel %vm2314, 1, 0
        %v2379 = vsel %vm2315, 1, 0
        %v2380 = vsel %vm2316, 1, 0
        %v2381 = vsel %vm2317, 1, 0
        %v2382 = vsel %vm2318, 1, 0
        %v2383 = vsel %vm2319, 1, 0
        %v2384 = vsel %vm2320, 1, 0
        %v2385 = vsel %vm2321, 1, 0
        %v2386 = vsel %vm2322, 1, 0
        %v2387 = vsel %vm2323, 1, 0
        %v2388 = vsel %vm2324, 1, 0
        %v2389 = vsel %vm2325, 1, 0
        %v2390 = vsel %vm2326, 1, 0
        %v2391 = vsel %vm2327, 1, 0
        %v2392 = vsel %vm2328, 1, 0
        %v2393 = vsel %vm2329, 1, 0
        %v2394 = vsel %vm2330, 1, 0
        %v2395 = vsel %vm2331, 1, 0
        %v2396 = vsel %vm2332, 1, 0
        %v2397 = vsel %vm2333, 1, 0
        %v2398 = vsel %vm2334, 1, 0
        %v2399 = vsel %vm2335, 1, 0
        %v2400 = vsel %vm2336, 1, 0
        %v2401 = vsel %vm2337, 1, 0
        %v2402 = vsel %vm2338, 1, 0
        %v2403 = vsel %vm2339, 1, 0
        %v2404 = vsel %vm2340, 1, 0
        %v2405 = vsel %vm2341, 1, 0
        %v2406 = vsel %vm2342, 1, 0
        %v2407 = vsel %vm2343, 1, 0
        %v2408 = vsel %vm2344, 1, 0
        %v2409 = vsel %vm2345, 1, 0
        %v2410 = vsel %vm2346, 1, 0
        %v2411 = vsel %vm2347, 1, 0
        %v2412 = vsel %vm2348, 1, 0
        %v2413 = vsel %vm2349, 1, 0
        %v2414 = vsel %vm2350, 1, 0
        %v2415 = vsel %vm2351, 1, 0
        %v2416 = vsel %vm2352, 1, 0
        %v2417 = vsel %vm2353, 1, 0
        %v2418 = vsel %vm2354, 1, 0
        %v2419 = vsel %vm2355, 1, 0
        %v2420 = vsel %vm2356, 1, 0
        %v2421 = vsel %vm2357, 1, 0
        %v2422 = vsel %vm2358, 1, 0
        %v2423 = vsel %vm2359, 1, 0
        %v2424 = vsel %vm2360, 1, 0
        %v2425 = vsel %vm2361, 1, 0
        %v2426 = vsel %vm2362, 1, 0
        %v2427 = vsel %vm2363, 1, 0
        %v2428 = vsel %vm2364, 1, 0
        %v2429 = vsel %vm2365, 1, 0
        %v2430 = vsel %vm2366, 1, 0
        %v2431 = vsel %vm2367, 1, 0
        %v2432 = vsel %vm2368, 1, 0
        %v2433 = vcvt.s32.f32 %v2369
        %v2434 = vcvt.s32.f32 %v2370
        %v2435 = vcvt.s32.f32 %v2371
        %v2436 = vcvt.s32.f32 %v2372
        %v2437 = vcvt.s32.f32 %v2373
        %v2438 = vcvt.s32.f32 %v2374
        %v2439 = vcvt.s32.f32 %v2375
        %v2440 = vcvt.s32.f32 %v2376
        %v2441 = vcvt.s32.f32 %v2377
        %v2442 = vcvt.s32.f32 %v2378
        %v2443 = vcvt.s32.f32 %v2379
        %v2444 = vcvt.s32.f32 %v2380
        %v2445 = vcvt.s32.f32 %v2381
        %v2446 = vcvt.s32.f32 %v2382
        %v2447 = vcvt.s32.f32 %v2383
        %v2448 = vcvt.s32.f32 %v2384
        %v2449 = vcvt.s32.f32 %v2385
        %v2450 = vcvt.s32.f32 %v2386
        %v2451 = vcvt.s32.f32 %v2387
        %v2452 = vcvt.s32.f32 %v2388
        %v2453 = vcvt.s32.f32 %v2389
        %v2454 = vcvt.s32.f32 %v2390
        %v2455 = vcvt.s32.f32 %v2391
        %v2456 = vcvt.s32.f32 %v2392
        %v2457 = vcvt.s32.f32 %v2393
        %v2458 = vcvt.s32.f32 %v2394
        %v2459 = vcvt.s32.f32 %v2395
        %v2460 = vcvt.s32.f32 %v2396
        %v2461 = vcvt.s32.f32 %v2397
        %v2462 = vcvt.s32.f32 %v2398
        %v2463 = vcvt.s32.f32 %v2399
        %v2464 = vcvt.s32.f32 %v2400
        %v2465 = vcvt.s32.f32 %v2401
        %v2466 = vcvt.s32.f32 %v2402
        %v2467 = vcvt.s32.f32 %v2403
        %v2468 = vcvt.s32.f32 %v2404
        %v2469 = vcvt.s32.f32 %v2405
        %v2470 = vcvt.s32.f32 %v2406
        %v2471 = vcvt.s32.f32 %v2407
        %v2472 = vcvt.s32.f32 %v2408
        %v2473 = vcvt.s32.f32 %v2409
        %v2474 = vcvt.s32.f32 %v2410
        %v2475 = vcvt.s32.f32 %v2411
        %v2476 = vcvt.s32.f32 %v2412
        %v2477 = vcvt.s32.f32 %v2413
        %v2478 = vcvt.s32.f32 %v2414
        %v2479 = vcvt.s32.f32 %v2415
        %v2480 = vcvt.s32.f32 %v2416
        %v2481 = vcvt.s32.f32 %v2417
        %v2482 = vcvt.s32.f32 %v2418
        %v2483 = vcvt.s32.f32 %v2419
        %v2484 = vcvt.s32.f32 %v2420
        %v2485 = vcvt.s32.f32 %v2421
        %v2486 = vcvt.s32.f32 %v2422
        %v2487 = vcvt.s32.f32 %v2423
        %v2488 = vcvt.s32.f32 %v2424
        %v2489 = vcvt.s32.f32 %v2425
        %v2490 = vcvt.s32.f32 %v2426
        %v2491 = vcvt.s32.f32 %v2427
        %v2492 = vcvt.s32.f32 %v2428
        %v2493 = vcvt.s32.f32 %v2429
        %v2494 = vcvt.s32.f32 %v2430
        %v2495 = vcvt.s32.f32 %v2431
        %v2496 = vcvt.s32.f32 %v2432
        %v2497 = vsel %vm367, %v2433, 0.0
        %v2498 = vsel %vm367, %v2434, 0.0
        %v2499 = vadd.f32 %v2497, %v2498
        %v2500 = vrot.slane %v2499, 4
        %v2501 = vadd.f32 %v2499, %v2500
        %v2502 = vrot.slane %v2501, 2
        %v2503 = vadd.f32 %v2501, %v2502
        %v2504 = vrot.slane %v2503, 1
        %v2505 = vadd.f32 %v2503, %v2504
        %v2506 = vsel %vm367, %v2435, 0.0
        %v2507 = vsel %vm367, %v2436, 0.0
        %v2508 = vadd.f32 %v2506, %v2507
        %v2509 = vrot.slane %v2508, 4
        %v2510 = vadd.f32 %v2508, %v2509
        %v2511 = vrot.slane %v2510, 2
        %v2512 = vadd.f32 %v2510, %v2511
        %v2513 = vrot.slane %v2512, 1
        %v2514 = vadd.f32 %v2512, %v2513
        %v2515 = vsel %vm367, %v2437, 0.0
        %v2516 = vsel %vm367, %v2438, 0.0
        %v2517 = vadd.f32 %v2515, %v2516
        %v2518 = vrot.slane %v2517, 4
        %v2519 = vadd.f32 %v2517, %v2518
        %v2520 = vrot.slane %v2519, 2
        %v2521 = vadd.f32 %v2519, %v2520
        %v2522 = vrot.slane %v2521, 1
        %v2523 = vadd.f32 %v2521, %v2522
        %v2524 = vsel %vm367, %v2439, 0.0
        %v2525 = vsel %vm367, %v2440, 0.0
        %v2526 = vadd.f32 %v2524, %v2525
        %v2527 = vrot.slane %v2526, 4
        %v2528 = vadd.f32 %v2526, %v2527
        %v2529 = vrot.slane %v2528, 2
        %v2530 = vadd.f32 %v2528, %v2529
        %v2531 = vrot.slane %v2530, 1
        %v2532 = vadd.f32 %v2530, %v2531
        %v2533 = vsel %vm367, %v2441, 0.0
        %v2534 = vsel %vm367, %v2442, 0.0
        %v2535 = vadd.f32 %v2533, %v2534
        %v2536 = vrot.slane %v2535, 4
        %v2537 = vadd.f32 %v2535, %v2536
        %v2538 = vrot.slane %v2537, 2
        %v2539 = vadd.f32 %v2537, %v2538
        %v2540 = vrot.slane %v2539, 1
        %v2541 = vadd.f32 %v2539, %v2540
        %v2542 = vsel %vm367, %v2443, 0.0
        %v2543 = vsel %vm367, %v2444, 0.0
        %v2544 = vadd.f32 %v2542, %v2543
        %v2545 = vrot.slane %v2544, 4
        %v2546 = vadd.f32 %v2544, %v2545
        %v2547 = vrot.slane %v2546, 2
        %v2548 = vadd.f32 %v2546, %v2547
        %v2549 = vrot.slane %v2548, 1
        %v2550 = vadd.f32 %v2548, %v2549
        %v2551 = vsel %vm367, %v2445, 0.0
        %v2552 = vsel %vm367, %v2446, 0.0
        %v2553 = vadd.f32 %v2551, %v2552
        %v2554 = vrot.slane %v2553, 4
        %v2555 = vadd.f32 %v2553, %v2554
        %v2556 = vrot.slane %v2555, 2
        %v2557 = vadd.f32 %v2555, %v2556
        %v2558 = vrot.slane %v2557, 1
        %v2559 = vadd.f32 %v2557, %v2558
        %v2560 = vsel %vm367, %v2447, 0.0
        %v2561 = vsel %vm367, %v2448, 0.0
        %v2562 = vadd.f32 %v2560, %v2561
        %v2563 = vrot.slane %v2562, 4
        %v2564 = vadd.f32 %v2562, %v2563
        %v2565 = vrot.slane %v2564, 2
        %v2566 = vadd.f32 %v2564, %v2565
        %v2567 = vrot.slane %v2566, 1
        %v2568 = vadd.f32 %v2566, %v2567
        %v2569 = vsel %vm367, %v2449, 0.0
        %v2570 = vsel %vm367, %v2450, 0.0
        %v2571 = vadd.f32 %v2569, %v2570
        %v2572 = vrot.slane %v2571, 4
        %v2573 = vadd.f32 %v2571, %v2572
        %v2574 = vrot.slane %v2573, 2
        %v2575 = vadd.f32 %v2573, %v2574
        %v2576 = vrot.slane %v2575, 1
        %v2577 = vadd.f32 %v2575, %v2576
        %v2578 = vsel %vm367, %v2451, 0.0
        %v2579 = vsel %vm367, %v2452, 0.0
        %v2580 = vadd.f32 %v2578, %v2579
        %v2581 = vrot.slane %v2580, 4
        %v2582 = vadd.f32 %v2580, %v2581
        %v2583 = vrot.slane %v2582, 2
        %v2584 = vadd.f32 %v2582, %v2583
        %v2585 = vrot.slane %v2584, 1
        %v2586 = vadd.f32 %v2584, %v2585
        %v2587 = vsel %vm367, %v2453, 0.0
        %v2588 = vsel %vm367, %v2454, 0.0
        %v2589 = vadd.f32 %v2587, %v2588
        %v2590 = vrot.slane %v2589, 4
        %v2591 = vadd.f32 %v2589, %v2590
        %v2592 = vrot.slane %v2591, 2
        %v2593 = vadd.f32 %v2591, %v2592
        %v2594 = vrot.slane %v2593, 1
        %v2595 = vadd.f32 %v2593, %v2594
        %v2596 = vsel %vm367, %v2455, 0.0
        %v2597 = vsel %vm367, %v2456, 0.0
        %v2598 = vadd.f32 %v2596, %v2597
        %v2599 = vrot.slane %v2598, 4
        %v2600 = vadd.f32 %v2598, %v2599
        %v2601 = vrot.slane %v2600, 2
        %v2602 = vadd.f32 %v2600, %v2601
        %v2603 = vrot.slane %v2602, 1
        %v2604 = vadd.f32 %v2602, %v2603
        %v2605 = vsel %vm367, %v2457, 0.0
        %v2606 = vsel %vm367, %v2458, 0.0
        %v2607 = vadd.f32 %v2605, %v2606
        %v2608 = vrot.slane %v2607, 4
        %v2609 = vadd.f32 %v2607, %v2608
        %v2610 = vrot.slane %v2609, 2
        %v2611 = vadd.f32 %v2609, %v2610
        %v2612 = vrot.slane %v2611, 1
        %v2613 = vadd.f32 %v2611, %v2612
        %v2614 = vsel %vm367, %v2459, 0.0
        %v2615 = vsel %vm367, %v2460, 0.0
        %v2616 = vadd.f32 %v2614, %v2615
        %v2617 = vrot.slane %v2616, 4
        %v2618 = vadd.f32 %v2616, %v2617
        %v2619 = vrot.slane %v2618, 2
        %v2620 = vadd.f32 %v2618, %v2619
        %v2621 = vrot.slane %v2620, 1
        %v2622 = vadd.f32 %v2620, %v2621
        %v2623 = vsel %vm367, %v2461, 0.0
        %v2624 = vsel %vm367, %v2462, 0.0
        %v2625 = vadd.f32 %v2623, %v2624
        %v2626 = vrot.slane %v2625, 4
        %v2627 = vadd.f32 %v2625, %v2626
        %v2628 = vrot.slane %v2627, 2
        %v2629 = vadd.f32 %v2627, %v2628
        %v2630 = vrot.slane %v2629, 1
        %v2631 = vadd.f32 %v2629, %v2630
        %v2632 = vsel %vm367, %v2463, 0.0
        %v2633 = vsel %vm367, %v2464, 0.0
        %v2634 = vadd.f32 %v2632, %v2633
        %v2635 = vrot.slane %v2634, 4
        %v2636 = vadd.f32 %v2634, %v2635
        %v2637 = vrot.slane %v2636, 2
        %v2638 = vadd.f32 %v2636, %v2637
        %v2639 = vrot.slane %v2638, 1
        %v2640 = vadd.f32 %v2638, %v2639
        %v2641 = vsel %vm367, %v2465, 0.0
        %v2642 = vsel %vm367, %v2466, 0.0
        %v2643 = vadd.f32 %v2641, %v2642
        %v2644 = vrot.slane %v2643, 4
        %v2645 = vadd.f32 %v2643, %v2644
        %v2646 = vrot.slane %v2645, 2
        %v2647 = vadd.f32 %v2645, %v2646
        %v2648 = vrot.slane %v2647, 1
        %v2649 = vadd.f32 %v2647, %v2648
        %v2650 = vsel %vm367, %v2467, 0.0
        %v2651 = vsel %vm367, %v2468, 0.0
        %v2652 = vadd.f32 %v2650, %v2651
        %v2653 = vrot.slane %v2652, 4
        %v2654 = vadd.f32 %v2652, %v2653
        %v2655 = vrot.slane %v2654, 2
        %v2656 = vadd.f32 %v2654, %v2655
        %v2657 = vrot.slane %v2656, 1
        %v2658 = vadd.f32 %v2656, %v2657
        %v2659 = vsel %vm367, %v2469, 0.0
        %v2660 = vsel %vm367, %v2470, 0.0
        %v2661 = vadd.f32 %v2659, %v2660
        %v2662 = vrot.slane %v2661, 4
        %v2663 = vadd.f32 %v2661, %v2662
        %v2664 = vrot.slane %v2663, 2
        %v2665 = vadd.f32 %v2663, %v2664
        %v2666 = vrot.slane %v2665, 1
        %v2667 = vadd.f32 %v2665, %v2666
        %v2668 = vsel %vm367, %v2471, 0.0
        %v2669 = vsel %vm367, %v2472, 0.0
        %v2670 = vadd.f32 %v2668, %v2669
        %v2671 = vrot.slane %v2670, 4
        %v2672 = vadd.f32 %v2670, %v2671
        %v2673 = vrot.slane %v2672, 2
        %v2674 = vadd.f32 %v2672, %v2673
        %v2675 = vrot.slane %v2674, 1
        %v2676 = vadd.f32 %v2674, %v2675
        %v2677 = vsel %vm367, %v2473, 0.0
        %v2678 = vsel %vm367, %v2474, 0.0
        %v2679 = vadd.f32 %v2677, %v2678
        %v2680 = vrot.slane %v2679, 4
        %v2681 = vadd.f32 %v2679, %v2680
        %v2682 = vrot.slane %v2681, 2
        %v2683 = vadd.f32 %v2681, %v2682
        %v2684 = vrot.slane %v2683, 1
        %v2685 = vadd.f32 %v2683, %v2684
        %v2686 = vsel %vm367, %v2475, 0.0
        %v2687 = vsel %vm367, %v2476, 0.0
        %v2688 = vadd.f32 %v2686, %v2687
        %v2689 = vrot.slane %v2688, 4
        %v2690 = vadd.f32 %v2688, %v2689
        %v2691 = vrot.slane %v2690, 2
        %v2692 = vadd.f32 %v2690, %v2691
        %v2693 = vrot.slane %v2692, 1
        %v2694 = vadd.f32 %v2692, %v2693
        %v2695 = vsel %vm367, %v2477, 0.0
        %v2696 = vsel %vm367, %v2478, 0.0
        %v2697 = vadd.f32 %v2695, %v2696
        %v2698 = vrot.slane %v2697, 4
        %v2699 = vadd.f32 %v2697, %v2698
        %v2700 = vrot.slane %v2699, 2
        %v2701 = vadd.f32 %v2699, %v2700
        %v2702 = vrot.slane %v2701, 1
        %v2703 = vadd.f32 %v2701, %v2702
        %v2704 = vsel %vm367, %v2479, 0.0
        %v2705 = vsel %vm367, %v2480, 0.0
        %v2706 = vadd.f32 %v2704, %v2705
        %v2707 = vrot.slane %v2706, 4
        %v2708 = vadd.f32 %v2706, %v2707
        %v2709 = vrot.slane %v2708, 2
        %v2710 = vadd.f32 %v2708, %v2709
        %v2711 = vrot.slane %v2710, 1
        %v2712 = vadd.f32 %v2710, %v2711
        %v2713 = vsel %vm367, %v2481, 0.0
        %v2714 = vsel %vm367, %v2482, 0.0
        %v2715 = vadd.f32 %v2713, %v2714
        %v2716 = vrot.slane %v2715, 4
        %v2717 = vadd.f32 %v2715, %v2716
        %v2718 = vrot.slane %v2717, 2
        %v2719 = vadd.f32 %v2717, %v2718
        %v2720 = vrot.slane %v2719, 1
        %v2721 = vadd.f32 %v2719, %v2720
        %v2722 = vsel %vm367, %v2483, 0.0
        %v2723 = vsel %vm367, %v2484, 0.0
        %v2724 = vadd.f32 %v2722, %v2723
        %v2725 = vrot.slane %v2724, 4
        %v2726 = vadd.f32 %v2724, %v2725
        %v2727 = vrot.slane %v2726, 2
        %v2728 = vadd.f32 %v2726, %v2727
        %v2729 = vrot.slane %v2728, 1
        %v2730 = vadd.f32 %v2728, %v2729
        %v2731 = vsel %vm367, %v2485, 0.0
        %v2732 = vsel %vm367, %v2486, 0.0
        %v2733 = vadd.f32 %v2731, %v2732
        %v2734 = vrot.slane %v2733, 4
        %v2735 = vadd.f32 %v2733, %v2734
        %v2736 = vrot.slane %v2735, 2
        %v2737 = vadd.f32 %v2735, %v2736
        %v2738 = vrot.slane %v2737, 1
        %v2739 = vadd.f32 %v2737, %v2738
        %v2740 = vsel %vm367, %v2487, 0.0
        %v2741 = vsel %vm367, %v2488, 0.0
        %v2742 = vadd.f32 %v2740, %v2741
        %v2743 = vrot.slane %v2742, 4
        %v2744 = vadd.f32 %v2742, %v2743
        %v2745 = vrot.slane %v2744, 2
        %v2746 = vadd.f32 %v2744, %v2745
        %v2747 = vrot.slane %v2746, 1
        %v2748 = vadd.f32 %v2746, %v2747
        %v2749 = vsel %vm367, %v2489, 0.0
        %v2750 = vsel %vm367, %v2490, 0.0
        %v2751 = vadd.f32 %v2749, %v2750
        %v2752 = vrot.slane %v2751, 4
        %v2753 = vadd.f32 %v2751, %v2752
        %v2754 = vrot.slane %v2753, 2
        %v2755 = vadd.f32 %v2753, %v2754
        %v2756 = vrot.slane %v2755, 1
        %v2757 = vadd.f32 %v2755, %v2756
        %v2758 = vsel %vm367, %v2491, 0.0
        %v2759 = vsel %vm367, %v2492, 0.0
        %v2760 = vadd.f32 %v2758, %v2759
        %v2761 = vrot.slane %v2760, 4
        %v2762 = vadd.f32 %v2760, %v2761
        %v2763 = vrot.slane %v2762, 2
        %v2764 = vadd.f32 %v2762, %v2763
        %v2765 = vrot.slane %v2764, 1
        %v2766 = vadd.f32 %v2764, %v2765
        %v2767 = vsel %vm367, %v2493, 0.0
        %v2768 = vsel %vm367, %v2494, 0.0
        %v2769 = vadd.f32 %v2767, %v2768
        %v2770 = vrot.slane %v2769, 4
        %v2771 = vadd.f32 %v2769, %v2770
        %v2772 = vrot.slane %v2771, 2
        %v2773 = vadd.f32 %v2771, %v2772
        %v2774 = vrot.slane %v2773, 1
        %v2775 = vadd.f32 %v2773, %v2774
        %v2776 = vsel %vm367, %v2495, 0.0
        %v2777 = vsel %vm367, %v2496, 0.0
        %v2778 = vadd.f32 %v2776, %v2777
        %v2779 = vrot.slane %v2778, 4
        %v2780 = vadd.f32 %v2778, %v2779
        %v2781 = vrot.slane %v2780, 2
        %v2782 = vadd.f32 %v2780, %v2781
        %v2783 = vrot.slane %v2782, 1
        %v2784 = vadd.f32 %v2782, %v2783
        %vm2785 = vcmp.lt.f32.partialorder %v2505, 8.0
        %vm2786 = vcmp.lt.f32.partialorder %v2514, 8.0
        %vm2787 = vcmp.lt.f32.partialorder %v2523, 8.0
        %vm2788 = vcmp.lt.f32.partialorder %v2532, 8.0
        %vm2789 = vcmp.lt.f32.partialorder %v2541, 8.0
        %vm2790 = vcmp.lt.f32.partialorder %v2550, 8.0
        %vm2791 = vcmp.lt.f32.partialorder %v2559, 8.0
        %vm2792 = vcmp.lt.f32.partialorder %v2568, 8.0
        %vm2793 = vcmp.lt.f32.partialorder %v2577, 8.0
        %vm2794 = vcmp.lt.f32.partialorder %v2586, 8.0
        %vm2795 = vcmp.lt.f32.partialorder %v2595, 8.0
        %vm2796 = vcmp.lt.f32.partialorder %v2604, 8.0
        %vm2797 = vcmp.lt.f32.partialorder %v2613, 8.0
        %vm2798 = vcmp.lt.f32.partialorder %v2622, 8.0
        %vm2799 = vcmp.lt.f32.partialorder %v2631, 8.0
        %vm2800 = vcmp.lt.f32.partialorder %v2640, 8.0
        %vm2801 = vcmp.lt.f32.partialorder %v2649, 8.0
        %vm2802 = vcmp.lt.f32.partialorder %v2658, 8.0
        %vm2803 = vcmp.lt.f32.partialorder %v2667, 8.0
        %vm2804 = vcmp.lt.f32.partialorder %v2676, 8.0
        %vm2805 = vcmp.lt.f32.partialorder %v2685, 8.0
        %vm2806 = vcmp.lt.f32.partialorder %v2694, 8.0
        %vm2807 = vcmp.lt.f32.partialorder %v2703, 8.0
        %vm2808 = vcmp.lt.f32.partialorder %v2712, 8.0
        %vm2809 = vcmp.lt.f32.partialorder %v2721, 8.0
        %vm2810 = vcmp.lt.f32.partialorder %v2730, 8.0
        %vm2811 = vcmp.lt.f32.partialorder %v2739, 8.0
        %vm2812 = vcmp.lt.f32.partialorder %v2748, 8.0
        %vm2813 = vcmp.lt.f32.partialorder %v2757, 8.0
        %vm2814 = vcmp.lt.f32.partialorder %v2766, 8.0
        %vm2815 = vcmp.lt.f32.partialorder %v2775, 8.0
        %vm2816 = vcmp.lt.f32.partialorder %v2784, 8.0
        %v2817 = vrot.slane %v1585, 1
        %v2818 = vrot.slane %v1585, 2
        %v2819 = vrot.slane %v1585, 3
        %v2820 = vrot.slane %v1586, 1
        %v2821 = vrot.slane %v1586, 2
        %v2822 = vrot.slane %v1586, 3
        %v2823 = vrot.slane %v1587, 1
        %v2824 = vrot.slane %v1587, 2
        %v2825 = vrot.slane %v1587, 3
        %v2826 = vrot.slane %v1588, 1
        %v2827 = vrot.slane %v1588, 2
        %v2828 = vrot.slane %v1588, 3
        %v2829 = vrot.slane %v1589, 1
        %v2830 = vrot.slane %v1589, 2
        %v2831 = vrot.slane %v1589, 3
        %v2832 = vrot.slane %v1590, 1
        %v2833 = vrot.slane %v1590, 2
        %v2834 = vrot.slane %v1590, 3
        %v2835 = vrot.slane %v1591, 1
        %v2836 = vrot.slane %v1591, 2
        %v2837 = vrot.slane %v1591, 3
        %v2838 = vrot.slane %v1592, 1
        %v2839 = vrot.slane %v1592, 2
        %v2840 = vrot.slane %v1592, 3
        %v2873 = vsel %vm2785, %v1585, -3.4028235e+38
        %v2874 = vsel %vm2786, %v2817, -3.4028235e+38
        %v2875 = vsel %vm2787, %v2818, -3.4028235e+38
        %v2876 = vsel %vm2788, %v2819, -3.4028235e+38
        %v2877 = vsel %vm2789, %v1586, -3.4028235e+38
        %v2878 = vsel %vm2790, %v2820, -3.4028235e+38
        %v2879 = vsel %vm2791, %v2821, -3.4028235e+38
        %v2880 = vsel %vm2792, %v2822, -3.4028235e+38
        %v2881 = vsel %vm2793, %v1587, -3.4028235e+38
        %v2882 = vsel %vm2794, %v2823, -3.4028235e+38
        %v2883 = vsel %vm2795, %v2824, -3.4028235e+38
        %v2884 = vsel %vm2796, %v2825, -3.4028235e+38
        %v2885 = vsel %vm2797, %v1588, -3.4028235e+38
        %v2886 = vsel %vm2798, %v2826, -3.4028235e+38
        %v2887 = vsel %vm2799, %v2827, -3.4028235e+38
        %v2888 = vsel %vm2800, %v2828, -3.4028235e+38
        %v2889 = vsel %vm2801, %v1589, -3.4028235e+38
        %v2890 = vsel %vm2802, %v2829, -3.4028235e+38
        %v2891 = vsel %vm2803, %v2830, -3.4028235e+38
        %v2892 = vsel %vm2804, %v2831, -3.4028235e+38
        %v2893 = vsel %vm2805, %v1590, -3.4028235e+38
        %v2894 = vsel %vm2806, %v2832, -3.4028235e+38
        %v2895 = vsel %vm2807, %v2833, -3.4028235e+38
        %v2896 = vsel %vm2808, %v2834, -3.4028235e+38
        %v2897 = vsel %vm2809, %v1591, -3.4028235e+38
        %v2898 = vsel %vm2810, %v2835, -3.4028235e+38
        %v2899 = vsel %vm2811, %v2836, -3.4028235e+38
        %v2900 = vsel %vm2812, %v2837, -3.4028235e+38
        %v2901 = vsel %vm2813, %v1592, -3.4028235e+38
        %v2902 = vsel %vm2814, %v2838, -3.4028235e+38
        %v2903 = vsel %vm2815, %v2839, -3.4028235e+38
        %v2904 = vsel %vm2816, %v2840, -3.4028235e+38
        %v2937 = vrot.slane %v2874, 7
        %vm2938 = vcmask 1041409
        %v2939 = vsel %vm2938, %v2937, %v2873
        %v2940 = vrot.slane %v2875, 6
        %vm2941 = vcmask 1042434
        %v2942 = vsel %vm2941, %v2940, %v2939
        %v2943 = vrot.slane %v2876, 5
        %vm2944 = vcmask 1043459
        %v2945 = vsel %vm2944, %v2943, %v2942
        %v2946 = vrot.slane %v2878, 7
        %v2947 = vsel %vm2938, %v2946, %v2877
        %v2948 = vrot.slane %v2879, 6
        %v2949 = vsel %vm2941, %v2948, %v2947
        %v2950 = vrot.slane %v2880, 5
        %v2951 = vsel %vm2944, %v2950, %v2949
        %v2952 = vrot.slane %v2882, 7
        %v2953 = vsel %vm2938, %v2952, %v2881
        %v2954 = vrot.slane %v2883, 6
        %v2955 = vsel %vm2941, %v2954, %v2953
        %v2956 = vrot.slane %v2884, 5
        %v2957 = vsel %vm2944, %v2956, %v2955
        %v2958 = vrot.slane %v2886, 7
        %v2959 = vsel %vm2938, %v2958, %v2885
        %v2960 = vrot.slane %v2887, 6
        %v2961 = vsel %vm2941, %v2960, %v2959
        %v2962 = vrot.slane %v2888, 5
        %v2963 = vsel %vm2944, %v2962, %v2961
        %v2964 = vrot.slane %v2890, 7
        %v2965 = vsel %vm2938, %v2964, %v2889
        %v2966 = vrot.slane %v2891, 6
        %v2967 = vsel %vm2941, %v2966, %v2965
        %v2968 = vrot.slane %v2892, 5
        %v2969 = vsel %vm2944, %v2968, %v2967
        %v2970 = vrot.slane %v2894, 7
        %v2971 = vsel %vm2938, %v2970, %v2893
        %v2972 = vrot.slane %v2895, 6
        %v2973 = vsel %vm2941, %v2972, %v2971
        %v2974 = vrot.slane %v2896, 5
        %v2975 = vsel %vm2944, %v2974, %v2973
        %v2976 = vrot.slane %v2898, 7
        %v2977 = vsel %vm2938, %v2976, %v2897
        %v2978 = vrot.slane %v2899, 6
        %v2979 = vsel %vm2941, %v2978, %v2977
        %v2980 = vrot.slane %v2900, 5
        %v2981 = vsel %vm2944, %v2980, %v2979
        %v2982 = vrot.slane %v2902, 7
        %v2983 = vsel %vm2938, %v2982, %v2901
        %v2984 = vrot.slane %v2903, 6
        %v2985 = vsel %vm2941, %v2984, %v2983
        %v2986 = vrot.slane %v2904, 5
        %v2987 = vsel %vm2944, %v2986, %v2985
        %vm2996 = vcmask 125952
        %v2997 = vsel %vm2996, %v2945, -inf
        %2998 = vmax.xlane.f32.xlu0 %v2997
        %v2999 = vpop.xlane.xlu0 %2998
        %v3000 = vsel %vm2996, %v2951, -inf
        %3001 = vmax.xlane.f32.xlu0 %v3000
        %v3002 = vpop.xlane.xlu0 %3001
        %v3003 = vsel %vm2996, %v2957, -inf
        %3004 = vmax.xlane.f32.xlu0 %v3003
        %v3005 = vpop.xlane.xlu0 %3004
        %v3006 = vsel %vm2996, %v2963, -inf
        %3007 = vmax.xlane.f32.xlu0 %v3006
        %v3008 = vpop.xlane.xlu0 %3007
        %v3009 = vsel %vm2996, %v2969, -inf
        %3010 = vmax.xlane.f32.xlu0 %v3009
        %v3011 = vpop.xlane.xlu0 %3010
        %v3012 = vsel %vm2996, %v2975, -inf
        %3013 = vmax.xlane.f32.xlu0 %v3012
        %v3014 = vpop.xlane.xlu0 %3013
        %v3015 = vsel %vm2996, %v2981, -inf
        %3016 = vmax.xlane.f32.xlu0 %v3015
        %v3017 = vpop.xlane.xlu0 %3016
        %v3018 = vsel %vm2996, %v2987, -inf
        %3019 = vmax.xlane.f32.xlu0 %v3018
        %v3020 = vpop.xlane.xlu0 %3019
        %v3029 = vrot.slane %v2999, 1
        %v3030 = vrot.slane %v2999, 2
        %v3031 = vrot.slane %v2999, 3
        %v3032 = vrot.slane %v3002, 1
        %v3033 = vrot.slane %v3002, 2
        %v3034 = vrot.slane %v3002, 3
        %v3035 = vrot.slane %v3005, 1
        %v3036 = vrot.slane %v3005, 2
        %v3037 = vrot.slane %v3005, 3
        %v3038 = vrot.slane %v3008, 1
        %v3039 = vrot.slane %v3008, 2
        %v3040 = vrot.slane %v3008, 3
        %v3041 = vrot.slane %v3011, 1
        %v3042 = vrot.slane %v3011, 2
        %v3043 = vrot.slane %v3011, 3
        %v3044 = vrot.slane %v3014, 1
        %v3045 = vrot.slane %v3014, 2
        %v3046 = vrot.slane %v3014, 3
        %v3047 = vrot.slane %v3017, 1
        %v3048 = vrot.slane %v3017, 2
        %v3049 = vrot.slane %v3017, 3
        %v3050 = vrot.slane %v3020, 1
        %v3051 = vrot.slane %v3020, 2
        %v3052 = vrot.slane %v3020, 3
        %v3085 = vsub.f32 %v2873, %v2999
        %v3086 = vsub.f32 %v2874, %v3029
        %v3087 = vsub.f32 %v2875, %v3030
        %v3088 = vsub.f32 %v2876, %v3031
        %v3089 = vsub.f32 %v2877, %v3002
        %v3090 = vsub.f32 %v2878, %v3032
        %v3091 = vsub.f32 %v2879, %v3033
        %v3092 = vsub.f32 %v2880, %v3034
        %v3093 = vsub.f32 %v2881, %v3005
        %v3094 = vsub.f32 %v2882, %v3035
        %v3095 = vsub.f32 %v2883, %v3036
        %v3096 = vsub.f32 %v2884, %v3037
        %v3097 = vsub.f32 %v2885, %v3008
        %v3098 = vsub.f32 %v2886, %v3038
        %v3099 = vsub.f32 %v2887, %v3039
        %v3100 = vsub.f32 %v2888, %v3040
        %v3101 = vsub.f32 %v2889, %v3011
        %v3102 = vsub.f32 %v2890, %v3041
        %v3103 = vsub.f32 %v2891, %v3042
        %v3104 = vsub.f32 %v2892, %v3043
        %v3105 = vsub.f32 %v2893, %v3014
        %v3106 = vsub.f32 %v2894, %v3044
        %v3107 = vsub.f32 %v2895, %v3045
        %v3108 = vsub.f32 %v2896, %v3046
        %v3109 = vsub.f32 %v2897, %v3017
        %v3110 = vsub.f32 %v2898, %v3047
        %v3111 = vsub.f32 %v2899, %v3048
        %v3112 = vsub.f32 %v2900, %v3049
        %v3113 = vsub.f32 %v2901, %v3020
        %v3114 = vsub.f32 %v2902, %v3050
        %v3115 = vsub.f32 %v2903, %v3051
        %v3116 = vsub.f32 %v2904, %v3052
        %v3117 = vmul.f32 %v3085, 1.442695
        %v3118 = vpow.pop %v3117
        %v3119 = vmul.f32 %v3086, 1.442695
        %v3120 = vpow.pop %v3119
        %v3121 = vmul.f32 %v3087, 1.442695
        %v3122 = vpow.pop %v3121
        %v3123 = vmul.f32 %v3088, 1.442695
        %v3124 = vpow.pop %v3123
        %v3125 = vmul.f32 %v3089, 1.442695
        %v3126 = vpow.pop %v3125
        %v3127 = vmul.f32 %v3090, 1.442695
        %v3128 = vpow.pop %v3127
        %v3129 = vmul.f32 %v3091, 1.442695
        %v3130 = vpow.pop %v3129
        %v3131 = vmul.f32 %v3092, 1.442695
        %v3132 = vpow.pop %v3131
        %v3133 = vmul.f32 %v3093, 1.442695
        %v3134 = vpow.pop %v3133
        %v3135 = vmul.f32 %v3094, 1.442695
        %v3136 = vpow.pop %v3135
        %v3137 = vmul.f32 %v3095, 1.442695
        %v3138 = vpow.pop %v3137
        %v3139 = vmul.f32 %v3096, 1.442695
        %v3140 = vpow.pop %v3139
        %v3141 = vmul.f32 %v3097, 1.442695
        %v3142 = vpow.pop %v3141
        %v3143 = vmul.f32 %v3098, 1.442695
        %v3144 = vpow.pop %v3143
        %v3145 = vmul.f32 %v3099, 1.442695
        %v3146 = vpow.pop %v3145
        %v3147 = vmul.f32 %v3100, 1.442695
        %v3148 = vpow.pop %v3147
        %v3149 = vmul.f32 %v3101, 1.442695
        %v3150 = vpow.pop %v3149
        %v3151 = vmul.f32 %v3102, 1.442695
        %v3152 = vpow.pop %v3151
        %v3153 = vmul.f32 %v3103, 1.442695
        %v3154 = vpow.pop %v3153
        %v3155 = vmul.f32 %v3104, 1.442695
        %v3156 = vpow.pop %v3155
        %v3157 = vmul.f32 %v3105, 1.442695
        %v3158 = vpow.pop %v3157
        %v3159 = vmul.f32 %v3106, 1.442695
        %v3160 = vpow.pop %v3159
        %v3161 = vmul.f32 %v3107, 1.442695
        %v3162 = vpow.pop %v3161
        %v3163 = vmul.f32 %v3108, 1.442695
        %v3164 = vpow.pop %v3163
        %v3165 = vmul.f32 %v3109, 1.442695
        %v3166 = vpow.pop %v3165
        %v3167 = vmul.f32 %v3110, 1.442695
        %v3168 = vpow.pop %v3167
        %v3169 = vmul.f32 %v3111, 1.442695
        %v3170 = vpow.pop %v3169
        %v3171 = vmul.f32 %v3112, 1.442695
        %v3172 = vpow.pop %v3171
        %v3173 = vmul.f32 %v3113, 1.442695
        %v3174 = vpow.pop %v3173
        %v3175 = vmul.f32 %v3114, 1.442695
        %v3176 = vpow.pop %v3175
        %v3177 = vmul.f32 %v3115, 1.442695
        %v3178 = vpow.pop %v3177
        %v3179 = vmul.f32 %v3116, 1.442695
        %v3180 = vpow.pop %v3179
        %v3213 = vrot.slane %v3120, 7
        %v3214 = vsel %vm2938, %v3213, %v3118
        %v3215 = vrot.slane %v3122, 6
        %v3216 = vsel %vm2941, %v3215, %v3214
        %v3217 = vrot.slane %v3124, 5
        %v3218 = vsel %vm2944, %v3217, %v3216
        %v3219 = vrot.slane %v3128, 7
        %v3220 = vsel %vm2938, %v3219, %v3126
        %v3221 = vrot.slane %v3130, 6
        %v3222 = vsel %vm2941, %v3221, %v3220
        %v3223 = vrot.slane %v3132, 5
        %v3224 = vsel %vm2944, %v3223, %v3222
        %v3225 = vrot.slane %v3136, 7
        %v3226 = vsel %vm2938, %v3225, %v3134
        %v3227 = vrot.slane %v3138, 6
        %v3228 = vsel %vm2941, %v3227, %v3226
        %v3229 = vrot.slane %v3140, 5
        %v3230 = vsel %vm2944, %v3229, %v3228
        %v3231 = vrot.slane %v3144, 7
        %v3232 = vsel %vm2938, %v3231, %v3142
        %v3233 = vrot.slane %v3146, 6
        %v3234 = vsel %vm2941, %v3233, %v3232
        %v3235 = vrot.slane %v3148, 5
        %v3236 = vsel %vm2944, %v3235, %v3234
        %v3237 = vrot.slane %v3152, 7
        %v3238 = vsel %vm2938, %v3237, %v3150
        %v3239 = vrot.slane %v3154, 6
        %v3240 = vsel %vm2941, %v3239, %v3238
        %v3241 = vrot.slane %v3156, 5
        %v3242 = vsel %vm2944, %v3241, %v3240
        %v3243 = vrot.slane %v3160, 7
        %v3244 = vsel %vm2938, %v3243, %v3158
        %v3245 = vrot.slane %v3162, 6
        %v3246 = vsel %vm2941, %v3245, %v3244
        %v3247 = vrot.slane %v3164, 5
        %v3248 = vsel %vm2944, %v3247, %v3246
        %v3249 = vrot.slane %v3168, 7
        %v3250 = vsel %vm2938, %v3249, %v3166
        %v3251 = vrot.slane %v3170, 6
        %v3252 = vsel %vm2941, %v3251, %v3250
        %v3253 = vrot.slane %v3172, 5
        %v3254 = vsel %vm2944, %v3253, %v3252
        %v3255 = vrot.slane %v3176, 7
        %v3256 = vsel %vm2938, %v3255, %v3174
        %v3257 = vrot.slane %v3178, 6
        %v3258 = vsel %vm2941, %v3257, %v3256
        %v3259 = vrot.slane %v3180, 5
        %v3260 = vsel %vm2944, %v3259, %v3258
        %v3269 = vsel %vm2996, %v3218, 0.0
        %3270 = vadd.xlane.f32.xlu0 %v3269
        %v3271 = vpop.xlane.xlu0 %3270
        %v3272 = vsel %vm2996, %v3224, 0.0
        %3273 = vadd.xlane.f32.xlu0 %v3272
        %v3274 = vpop.xlane.xlu0 %3273
        %v3275 = vsel %vm2996, %v3230, 0.0
        %3276 = vadd.xlane.f32.xlu0 %v3275
        %v3277 = vpop.xlane.xlu0 %3276
        %v3278 = vsel %vm2996, %v3236, 0.0
        %3279 = vadd.xlane.f32.xlu0 %v3278
        %v3280 = vpop.xlane.xlu0 %3279
        %v3281 = vsel %vm2996, %v3242, 0.0
        %3282 = vadd.xlane.f32.xlu0 %v3281
        %v3283 = vpop.xlane.xlu0 %3282
        %v3284 = vsel %vm2996, %v3248, 0.0
        %3285 = vadd.xlane.f32.xlu0 %v3284
        %v3286 = vpop.xlane.xlu0 %3285
        %v3287 = vsel %vm2996, %v3254, 0.0
        %3288 = vadd.xlane.f32.xlu0 %v3287
        %v3289 = vpop.xlane.xlu0 %3288
        %v3290 = vsel %vm2996, %v3260, 0.0
        %3291 = vadd.xlane.f32.xlu0 %v3290
        %v3292 = vpop.xlane.xlu0 %3291
        %v3293 = vrcp.pop %v3271
        %v3294 = vrcp.pop %v3274
        %v3295 = vrcp.pop %v3277
        %v3296 = vrcp.pop %v3280
        %v3297 = vrcp.pop %v3283
        %v3298 = vrcp.pop %v3286
        %v3299 = vrcp.pop %v3289
        %v3300 = vrcp.pop %v3292
        %v3301 = vsel %vm367, %v3218, 0
        %3303 = vmatprep.subr.mxu0 0.0
        %3304 = vmatpush1.msra.mxu0 0.0
        %3305 = vmatprep.subr.mxu0 0.0
        %3306 = vmatpush1.msra.mxu0 0.0
        %3307 = vmatprep.subr.mxu0 0.0
        %3308 = vmatpush1.msra.mxu0 0.0
        %3309 = vmatprep.subr.mxu0 0.0
        %3310 = vmatpush1.msra.mxu0 0.0
        %3311 = vmatprep.subr.mxu0 0.0
        %3312 = vmatpush1.msra.mxu0 0.0
        %3313 = vmatprep.subr.mxu0 0.0
        %3314 = vmatpush1.msra.mxu0 0.0
        %3315 = vmatprep.subr.mxu0 0.0
        %3316 = vmatpush1.msra.mxu0 0.0
        %3317 = vmatprep.subr.mxu0 0.0
        %3318 = vmatpush1.msra.mxu0 0.0
        %3319 = vmatprep.subr.mxu0 0.0
        %3320 = vmatpush1.msra.mxu0 0.0
        %3321 = vmatprep.subr.mxu0 0.0
        %3322 = vmatpush1.msra.mxu0 0.0
        %3323 = vmatprep.subr.mxu0 0.0
        %3324 = vmatpush1.msra.mxu0 0.0
        %3325 = vmatprep.subr.mxu0 0.0
        %3326 = vmatpush1.msra.mxu0 0.0
        %3327 = vmatprep.subr.mxu0 0.0
        %3328 = vmatpush1.msra.mxu0 0.0
        %3329 = vmatprep.subr.mxu0 0.0
        %3330 = vmatpush1.msra.mxu0 0.0
        %3331 = vmatprep.subr.mxu0 0.0
        %3332 = vmatpush1.msra.mxu0 %v296
        %3333 = vmatprep.subr.mxu0 0.0
        %3334 = vmatpush1.msra.mxu0 %v295
        %3335 = vmatprep.subr.mxu0 0.0
        %3336 = vmatpush2.msra.mxu0 0.0
        %3337 = vmatprep.subr.mxu0 0.0
        %3338 = vmatpush2.msra.mxu0 0.0
        %3339 = vmatprep.subr.mxu0 0.0
        %3340 = vmatpush2.msra.mxu0 0.0
        %3341 = vmatprep.subr.mxu0 0.0
        %3342 = vmatpush2.msra.mxu0 0.0
        %3343 = vmatprep.subr.mxu0 0.0
        %3344 = vmatpush2.msra.mxu0 0.0
        %3345 = vmatprep.subr.mxu0 0.0
        %3346 = vmatpush2.msra.mxu0 0.0
        %3347 = vmatprep.subr.mxu0 0.0
        %3348 = vmatpush2.msra.mxu0 0.0
        %3349 = vmatprep.subr.mxu0 0.0
        %3350 = vmatpush2.msra.mxu0 0.0
        %3351 = vmatprep.subr.mxu0 0.0
        %3352 = vmatpush2.msra.mxu0 0.0
        %3353 = vmatprep.subr.mxu0 0.0
        %3354 = vmatpush2.msra.mxu0 0.0
        %3355 = vmatprep.subr.mxu0 0.0
        %3356 = vmatpush2.msra.mxu0 0.0
        %3357 = vmatprep.subr.mxu0 0.0
        %3358 = vmatpush2.msra.mxu0 0.0
        %3359 = vmatprep.subr.mxu0 0.0
        %3360 = vmatpush2.msra.mxu0 0.0
        %3361 = vmatprep.subr.mxu0 0.0
        %3362 = vmatpush2.msra.mxu0 0.0
        %3363 = vmatprep.subr.mxu0 0.0
        %3364 = vmatpush2.msra.mxu0 0.0
        %3365 = vmatprep.subr.mxu0 0.0
        %3366 = vmatpush2.msra.mxu0 0.0
        %3367 = vmatprep.mubr.f32.mxu0 0.0
        %3368 = vmatmul.mubr.f32.gmra.mxu0 %v3301
        %v3369 = vpop.f32.mrf.mxu0
        %v3370 = vadd.f32 0.0, %v3369
        %v3371 = vpop.f32.mrf.mxu0
        %3372 = vdwg.mxu0
        %v3373 = vsel %vm367, %v3224, 0
        %3375 = vmatprep.subr.mxu0 0.0
        %3376 = vmatpush1.msra.mxu0 0.0
        %3377 = vmatprep.subr.mxu0 0.0
        %3378 = vmatpush1.msra.mxu0 0.0
        %3379 = vmatprep.subr.mxu0 0.0
        %3380 = vmatpush1.msra.mxu0 0.0
        %3381 = vmatprep.subr.mxu0 0.0
        %3382 = vmatpush1.msra.mxu0 0.0
        %3383 = vmatprep.subr.mxu0 0.0
        %3384 = vmatpush1.msra.mxu0 0.0
        %3385 = vmatprep.subr.mxu0 0.0
        %3386 = vmatpush1.msra.mxu0 0.0
        %3387 = vmatprep.subr.mxu0 0.0
        %3388 = vmatpush1.msra.mxu0 0.0
        %3389 = vmatprep.subr.mxu0 0.0
        %3390 = vmatpush1.msra.mxu0 0.0
        %3391 = vmatprep.subr.mxu0 0.0
        %3392 = vmatpush1.msra.mxu0 0.0
        %3393 = vmatprep.subr.mxu0 0.0
        %3394 = vmatpush1.msra.mxu0 0.0
        %3395 = vmatprep.subr.mxu0 0.0
        %3396 = vmatpush1.msra.mxu0 0.0
        %3397 = vmatprep.subr.mxu0 0.0
        %3398 = vmatpush1.msra.mxu0 0.0
        %3399 = vmatprep.subr.mxu0 0.0
        %3400 = vmatpush1.msra.mxu0 0.0
        %3401 = vmatprep.subr.mxu0 0.0
        %3402 = vmatpush1.msra.mxu0 0.0
        %3403 = vmatprep.subr.mxu0 0.0
        %3404 = vmatpush1.msra.mxu0 %v298
        %3405 = vmatprep.subr.mxu0 0.0
        %3406 = vmatpush1.msra.mxu0 %v297
        %3407 = vmatprep.subr.mxu0 0.0
        %3408 = vmatpush2.msra.mxu0 0.0
        %3409 = vmatprep.subr.mxu0 0.0
        %3410 = vmatpush2.msra.mxu0 0.0
        %3411 = vmatprep.subr.mxu0 0.0
        %3412 = vmatpush2.msra.mxu0 0.0
        %3413 = vmatprep.subr.mxu0 0.0
        %3414 = vmatpush2.msra.mxu0 0.0
        %3415 = vmatprep.subr.mxu0 0.0
        %3416 = vmatpush2.msra.mxu0 0.0
        %3417 = vmatprep.subr.mxu0 0.0
        %3418 = vmatpush2.msra.mxu0 0.0
        %3419 = vmatprep.subr.mxu0 0.0
        %3420 = vmatpush2.msra.mxu0 0.0
        %3421 = vmatprep.subr.mxu0 0.0
        %3422 = vmatpush2.msra.mxu0 0.0
        %3423 = vmatprep.subr.mxu0 0.0
        %3424 = vmatpush2.msra.mxu0 0.0
        %3425 = vmatprep.subr.mxu0 0.0
        %3426 = vmatpush2.msra.mxu0 0.0
        %3427 = vmatprep.subr.mxu0 0.0
        %3428 = vmatpush2.msra.mxu0 0.0
        %3429 = vmatprep.subr.mxu0 0.0
        %3430 = vmatpush2.msra.mxu0 0.0
        %3431 = vmatprep.subr.mxu0 0.0
        %3432 = vmatpush2.msra.mxu0 0.0
        %3433 = vmatprep.subr.mxu0 0.0
        %3434 = vmatpush2.msra.mxu0 0.0
        %3435 = vmatprep.subr.mxu0 0.0
        %3436 = vmatpush2.msra.mxu0 0.0
        %3437 = vmatprep.subr.mxu0 0.0
        %3438 = vmatpush2.msra.mxu0 0.0
        %3439 = vmatprep.mubr.f32.mxu0 0.0
        %3440 = vmatmul.mubr.f32.gmra.mxu0 %v3373
        %v3441 = vpop.f32.mrf.mxu0
        %v3442 = vadd.f32 0.0, %v3441
        %v3443 = vpop.f32.mrf.mxu0
        %3444 = vdwg.mxu0
        %v3445 = vsel %vm367, %v3230, 0
        %3447 = vmatprep.subr.mxu0 0.0
        %3448 = vmatpush1.msra.mxu0 0.0
        %3449 = vmatprep.subr.mxu0 0.0
        %3450 = vmatpush1.msra.mxu0 0.0
        %3451 = vmatprep.subr.mxu0 0.0
        %3452 = vmatpush1.msra.mxu0 0.0
        %3453 = vmatprep.subr.mxu0 0.0
        %3454 = vmatpush1.msra.mxu0 0.0
        %3455 = vmatprep.subr.mxu0 0.0
        %3456 = vmatpush1.msra.mxu0 0.0
        %3457 = vmatprep.subr.mxu0 0.0
        %3458 = vmatpush1.msra.mxu0 0.0
        %3459 = vmatprep.subr.mxu0 0.0
        %3460 = vmatpush1.msra.mxu0 0.0
        %3461 = vmatprep.subr.mxu0 0.0
        %3462 = vmatpush1.msra.mxu0 0.0
        %3463 = vmatprep.subr.mxu0 0.0
        %3464 = vmatpush1.msra.mxu0 0.0
        %3465 = vmatprep.subr.mxu0 0.0
        %3466 = vmatpush1.msra.mxu0 0.0
        %3467 = vmatprep.subr.mxu0 0.0
        %3468 = vmatpush1.msra.mxu0 0.0
        %3469 = vmatprep.subr.mxu0 0.0
        %3470 = vmatpush1.msra.mxu0 0.0
        %3471 = vmatprep.subr.mxu0 0.0
        %3472 = vmatpush1.msra.mxu0 0.0
        %3473 = vmatprep.subr.mxu0 0.0
        %3474 = vmatpush1.msra.mxu0 0.0
        %3475 = vmatprep.subr.mxu0 0.0
        %3476 = vmatpush1.msra.mxu0 %v300
        %3477 = vmatprep.subr.mxu0 0.0
        %3478 = vmatpush1.msra.mxu0 %v299
        %3479 = vmatprep.subr.mxu0 0.0
        %3480 = vmatpush2.msra.mxu0 0.0
        %3481 = vmatprep.subr.mxu0 0.0
        %3482 = vmatpush2.msra.mxu0 0.0
        %3483 = vmatprep.subr.mxu0 0.0
        %3484 = vmatpush2.msra.mxu0 0.0
        %3485 = vmatprep.subr.mxu0 0.0
        %3486 = vmatpush2.msra.mxu0 0.0
        %3487 = vmatprep.subr.mxu0 0.0
        %3488 = vmatpush2.msra.mxu0 0.0
        %3489 = vmatprep.subr.mxu0 0.0
        %3490 = vmatpush2.msra.mxu0 0.0
        %3491 = vmatprep.subr.mxu0 0.0
        %3492 = vmatpush2.msra.mxu0 0.0
        %3493 = vmatprep.subr.mxu0 0.0
        %3494 = vmatpush2.msra.mxu0 0.0
        %3495 = vmatprep.subr.mxu0 0.0
        %3496 = vmatpush2.msra.mxu0 0.0
        %3497 = vmatprep.subr.mxu0 0.0
        %3498 = vmatpush2.msra.mxu0 0.0
        %3499 = vmatprep.subr.mxu0 0.0
        %3500 = vmatpush2.msra.mxu0 0.0
        %3501 = vmatprep.subr.mxu0 0.0
        %3502 = vmatpush2.msra.mxu0 0.0
        %3503 = vmatprep.subr.mxu0 0.0
        %3504 = vmatpush2.msra.mxu0 0.0
        %3505 = vmatprep.subr.mxu0 0.0
        %3506 = vmatpush2.msra.mxu0 0.0
        %3507 = vmatprep.subr.mxu0 0.0
        %3508 = vmatpush2.msra.mxu0 0.0
        %3509 = vmatprep.subr.mxu0 0.0
        %3510 = vmatpush2.msra.mxu0 0.0
        %3511 = vmatprep.mubr.f32.mxu0 0.0
        %3512 = vmatmul.mubr.f32.gmra.mxu0 %v3445
        %v3513 = vpop.f32.mrf.mxu0
        %v3514 = vadd.f32 0.0, %v3513
        %v3515 = vpop.f32.mrf.mxu0
        %3516 = vdwg.mxu0
        %v3517 = vsel %vm367, %v3236, 0
        %3519 = vmatprep.subr.mxu0 0.0
        %3520 = vmatpush1.msra.mxu0 0.0
        %3521 = vmatprep.subr.mxu0 0.0
        %3522 = vmatpush1.msra.mxu0 0.0
        %3523 = vmatprep.subr.mxu0 0.0
        %3524 = vmatpush1.msra.mxu0 0.0
        %3525 = vmatprep.subr.mxu0 0.0
        %3526 = vmatpush1.msra.mxu0 0.0
        %3527 = vmatprep.subr.mxu0 0.0
        %3528 = vmatpush1.msra.mxu0 0.0
        %3529 = vmatprep.subr.mxu0 0.0
        %3530 = vmatpush1.msra.mxu0 0.0
        %3531 = vmatprep.subr.mxu0 0.0
        %3532 = vmatpush1.msra.mxu0 0.0
        %3533 = vmatprep.subr.mxu0 0.0
        %3534 = vmatpush1.msra.mxu0 0.0
        %3535 = vmatprep.subr.mxu0 0.0
        %3536 = vmatpush1.msra.mxu0 0.0
        %3537 = vmatprep.subr.mxu0 0.0
        %3538 = vmatpush1.msra.mxu0 0.0
        %3539 = vmatprep.subr.mxu0 0.0
        %3540 = vmatpush1.msra.mxu0 0.0
        %3541 = vmatprep.subr.mxu0 0.0
        %3542 = vmatpush1.msra.mxu0 0.0
        %3543 = vmatprep.subr.mxu0 0.0
        %3544 = vmatpush1.msra.mxu0 0.0
        %3545 = vmatprep.subr.mxu0 0.0
        %3546 = vmatpush1.msra.mxu0 0.0
        %3547 = vmatprep.subr.mxu0 0.0
        %3548 = vmatpush1.msra.mxu0 %v302
        %3549 = vmatprep.subr.mxu0 0.0
        %3550 = vmatpush1.msra.mxu0 %v301
        %3551 = vmatprep.subr.mxu0 0.0
        %3552 = vmatpush2.msra.mxu0 0.0
        %3553 = vmatprep.subr.mxu0 0.0
        %3554 = vmatpush2.msra.mxu0 0.0
        %3555 = vmatprep.subr.mxu0 0.0
        %3556 = vmatpush2.msra.mxu0 0.0
        %3557 = vmatprep.subr.mxu0 0.0
        %3558 = vmatpush2.msra.mxu0 0.0
        %3559 = vmatprep.subr.mxu0 0.0
        %3560 = vmatpush2.msra.mxu0 0.0
        %3561 = vmatprep.subr.mxu0 0.0
        %3562 = vmatpush2.msra.mxu0 0.0
        %3563 = vmatprep.subr.mxu0 0.0
        %3564 = vmatpush2.msra.mxu0 0.0
        %3565 = vmatprep.subr.mxu0 0.0
        %3566 = vmatpush2.msra.mxu0 0.0
        %3567 = vmatprep.subr.mxu0 0.0
        %3568 = vmatpush2.msra.mxu0 0.0
        %3569 = vmatprep.subr.mxu0 0.0
        %3570 = vmatpush2.msra.mxu0 0.0
        %3571 = vmatprep.subr.mxu0 0.0
        %3572 = vmatpush2.msra.mxu0 0.0
        %3573 = vmatprep.subr.mxu0 0.0
        %3574 = vmatpush2.msra.mxu0 0.0
        %3575 = vmatprep.subr.mxu0 0.0
        %3576 = vmatpush2.msra.mxu0 0.0
        %3577 = vmatprep.subr.mxu0 0.0
        %3578 = vmatpush2.msra.mxu0 0.0
        %3579 = vmatprep.subr.mxu0 0.0
        %3580 = vmatpush2.msra.mxu0 0.0
        %3581 = vmatprep.subr.mxu0 0.0
        %3582 = vmatpush2.msra.mxu0 0.0
        %3583 = vmatprep.mubr.f32.mxu0 0.0
        %3584 = vmatmul.mubr.f32.gmra.mxu0 %v3517
        %v3585 = vpop.f32.mrf.mxu0
        %v3586 = vadd.f32 0.0, %v3585
        %v3587 = vpop.f32.mrf.mxu0
        %3588 = vdwg.mxu0
        %v3589 = vsel %vm367, %v3242, 0
        %3591 = vmatprep.subr.mxu0 0.0
        %3592 = vmatpush1.msra.mxu0 0.0
        %3593 = vmatprep.subr.mxu0 0.0
        %3594 = vmatpush1.msra.mxu0 0.0
        %3595 = vmatprep.subr.mxu0 0.0
        %3596 = vmatpush1.msra.mxu0 0.0
        %3597 = vmatprep.subr.mxu0 0.0
        %3598 = vmatpush1.msra.mxu0 0.0
        %3599 = vmatprep.subr.mxu0 0.0
        %3600 = vmatpush1.msra.mxu0 0.0
        %3601 = vmatprep.subr.mxu0 0.0
        %3602 = vmatpush1.msra.mxu0 0.0
        %3603 = vmatprep.subr.mxu0 0.0
        %3604 = vmatpush1.msra.mxu0 0.0
        %3605 = vmatprep.subr.mxu0 0.0
        %3606 = vmatpush1.msra.mxu0 0.0
        %3607 = vmatprep.subr.mxu0 0.0
        %3608 = vmatpush1.msra.mxu0 0.0
        %3609 = vmatprep.subr.mxu0 0.0
        %3610 = vmatpush1.msra.mxu0 0.0
        %3611 = vmatprep.subr.mxu0 0.0
        %3612 = vmatpush1.msra.mxu0 0.0
        %3613 = vmatprep.subr.mxu0 0.0
        %3614 = vmatpush1.msra.mxu0 0.0
        %3615 = vmatprep.subr.mxu0 0.0
        %3616 = vmatpush1.msra.mxu0 0.0
        %3617 = vmatprep.subr.mxu0 0.0
        %3618 = vmatpush1.msra.mxu0 0.0
        %3619 = vmatprep.subr.mxu0 0.0
        %3620 = vmatpush1.msra.mxu0 %v304
        %3621 = vmatprep.subr.mxu0 0.0
        %3622 = vmatpush1.msra.mxu0 %v303
        %3623 = vmatprep.subr.mxu0 0.0
        %3624 = vmatpush2.msra.mxu0 0.0
        %3625 = vmatprep.subr.mxu0 0.0
        %3626 = vmatpush2.msra.mxu0 0.0
        %3627 = vmatprep.subr.mxu0 0.0
        %3628 = vmatpush2.msra.mxu0 0.0
        %3629 = vmatprep.subr.mxu0 0.0
        %3630 = vmatpush2.msra.mxu0 0.0
        %3631 = vmatprep.subr.mxu0 0.0
        %3632 = vmatpush2.msra.mxu0 0.0
        %3633 = vmatprep.subr.mxu0 0.0
        %3634 = vmatpush2.msra.mxu0 0.0
        %3635 = vmatprep.subr.mxu0 0.0
        %3636 = vmatpush2.msra.mxu0 0.0
        %3637 = vmatprep.subr.mxu0 0.0
        %3638 = vmatpush2.msra.mxu0 0.0
        %3639 = vmatprep.subr.mxu0 0.0
        %3640 = vmatpush2.msra.mxu0 0.0
        %3641 = vmatprep.subr.mxu0 0.0
        %3642 = vmatpush2.msra.mxu0 0.0
        %3643 = vmatprep.subr.mxu0 0.0
        %3644 = vmatpush2.msra.mxu0 0.0
        %3645 = vmatprep.subr.mxu0 0.0
        %3646 = vmatpush2.msra.mxu0 0.0
        %3647 = vmatprep.subr.mxu0 0.0
        %3648 = vmatpush2.msra.mxu0 0.0
        %3649 = vmatprep.subr.mxu0 0.0
        %3650 = vmatpush2.msra.mxu0 0.0
        %3651 = vmatprep.subr.mxu0 0.0
        %3652 = vmatpush2.msra.mxu0 0.0
        %3653 = vmatprep.subr.mxu0 0.0
        %3654 = vmatpush2.msra.mxu0 0.0
        %3655 = vmatprep.mubr.f32.mxu0 0.0
        %3656 = vmatmul.mubr.f32.gmra.mxu0 %v3589
        %v3657 = vpop.f32.mrf.mxu0
        %v3658 = vadd.f32 0.0, %v3657
        %v3659 = vpop.f32.mrf.mxu0
        %3660 = vdwg.mxu0
        %v3661 = vsel %vm367, %v3248, 0
        %3663 = vmatprep.subr.mxu0 0.0
        %3664 = vmatpush1.msra.mxu0 0.0
        %3665 = vmatprep.subr.mxu0 0.0
        %3666 = vmatpush1.msra.mxu0 0.0
        %3667 = vmatprep.subr.mxu0 0.0
        %3668 = vmatpush1.msra.mxu0 0.0
        %3669 = vmatprep.subr.mxu0 0.0
        %3670 = vmatpush1.msra.mxu0 0.0
        %3671 = vmatprep.subr.mxu0 0.0
        %3672 = vmatpush1.msra.mxu0 0.0
        %3673 = vmatprep.subr.mxu0 0.0
        %3674 = vmatpush1.msra.mxu0 0.0
        %3675 = vmatprep.subr.mxu0 0.0
        %3676 = vmatpush1.msra.mxu0 0.0
        %3677 = vmatprep.subr.mxu0 0.0
        %3678 = vmatpush1.msra.mxu0 0.0
        %3679 = vmatprep.subr.mxu0 0.0
        %3680 = vmatpush1.msra.mxu0 0.0
        %3681 = vmatprep.subr.mxu0 0.0
        %3682 = vmatpush1.msra.mxu0 0.0
        %3683 = vmatprep.subr.mxu0 0.0
        %3684 = vmatpush1.msra.mxu0 0.0
        %3685 = vmatprep.subr.mxu0 0.0
        %3686 = vmatpush1.msra.mxu0 0.0
        %3687 = vmatprep.subr.mxu0 0.0
        %3688 = vmatpush1.msra.mxu0 0.0
        %3689 = vmatprep.subr.mxu0 0.0
        %3690 = vmatpush1.msra.mxu0 0.0
        %3691 = vmatprep.subr.mxu0 0.0
        %3692 = vmatpush1.msra.mxu0 %v306
        %3693 = vmatprep.subr.mxu0 0.0
        %3694 = vmatpush1.msra.mxu0 %v305
        %3695 = vmatprep.subr.mxu0 0.0
        %3696 = vmatpush2.msra.mxu0 0.0
        %3697 = vmatprep.subr.mxu0 0.0
        %3698 = vmatpush2.msra.mxu0 0.0
        %3699 = vmatprep.subr.mxu0 0.0
        %3700 = vmatpush2.msra.mxu0 0.0
        %3701 = vmatprep.subr.mxu0 0.0
        %3702 = vmatpush2.msra.mxu0 0.0
        %3703 = vmatprep.subr.mxu0 0.0
        %3704 = vmatpush2.msra.mxu0 0.0
        %3705 = vmatprep.subr.mxu0 0.0
        %3706 = vmatpush2.msra.mxu0 0.0
        %3707 = vmatprep.subr.mxu0 0.0
        %3708 = vmatpush2.msra.mxu0 0.0
        %3709 = vmatprep.subr.mxu0 0.0
        %3710 = vmatpush2.msra.mxu0 0.0
        %3711 = vmatprep.subr.mxu0 0.0
        %3712 = vmatpush2.msra.mxu0 0.0
        %3713 = vmatprep.subr.mxu0 0.0
        %3714 = vmatpush2.msra.mxu0 0.0
        %3715 = vmatprep.subr.mxu0 0.0
        %3716 = vmatpush2.msra.mxu0 0.0
        %3717 = vmatprep.subr.mxu0 0.0
        %3718 = vmatpush2.msra.mxu0 0.0
        %3719 = vmatprep.subr.mxu0 0.0
        %3720 = vmatpush2.msra.mxu0 0.0
        %3721 = vmatprep.subr.mxu0 0.0
        %3722 = vmatpush2.msra.mxu0 0.0
        %3723 = vmatprep.subr.mxu0 0.0
        %3724 = vmatpush2.msra.mxu0 0.0
        %3725 = vmatprep.subr.mxu0 0.0
        %3726 = vmatpush2.msra.mxu0 0.0
        %3727 = vmatprep.mubr.f32.mxu0 0.0
        %3728 = vmatmul.mubr.f32.gmra.mxu0 %v3661
        %v3729 = vpop.f32.mrf.mxu0
        %v3730 = vadd.f32 0.0, %v3729
        %v3731 = vpop.f32.mrf.mxu0
        %3732 = vdwg.mxu0
        %v3733 = vsel %vm367, %v3254, 0
        %3735 = vmatprep.subr.mxu0 0.0
        %3736 = vmatpush1.msra.mxu0 0.0
        %3737 = vmatprep.subr.mxu0 0.0
        %3738 = vmatpush1.msra.mxu0 0.0
        %3739 = vmatprep.subr.mxu0 0.0
        %3740 = vmatpush1.msra.mxu0 0.0
        %3741 = vmatprep.subr.mxu0 0.0
        %3742 = vmatpush1.msra.mxu0 0.0
        %3743 = vmatprep.subr.mxu0 0.0
        %3744 = vmatpush1.msra.mxu0 0.0
        %3745 = vmatprep.subr.mxu0 0.0
        %3746 = vmatpush1.msra.mxu0 0.0
        %3747 = vmatprep.subr.mxu0 0.0
        %3748 = vmatpush1.msra.mxu0 0.0
        %3749 = vmatprep.subr.mxu0 0.0
        %3750 = vmatpush1.msra.mxu0 0.0
        %3751 = vmatprep.subr.mxu0 0.0
        %3752 = vmatpush1.msra.mxu0 0.0
        %3753 = vmatprep.subr.mxu0 0.0
        %3754 = vmatpush1.msra.mxu0 0.0
        %3755 = vmatprep.subr.mxu0 0.0
        %3756 = vmatpush1.msra.mxu0 0.0
        %3757 = vmatprep.subr.mxu0 0.0
        %3758 = vmatpush1.msra.mxu0 0.0
        %3759 = vmatprep.subr.mxu0 0.0
        %3760 = vmatpush1.msra.mxu0 0.0
        %3761 = vmatprep.subr.mxu0 0.0
        %3762 = vmatpush1.msra.mxu0 0.0
        %3763 = vmatprep.subr.mxu0 0.0
        %3764 = vmatpush1.msra.mxu0 %v308
        %3765 = vmatprep.subr.mxu0 0.0
        %3766 = vmatpush1.msra.mxu0 %v307
        %3767 = vmatprep.subr.mxu0 0.0
        %3768 = vmatpush2.msra.mxu0 0.0
        %3769 = vmatprep.subr.mxu0 0.0
        %3770 = vmatpush2.msra.mxu0 0.0
        %3771 = vmatprep.subr.mxu0 0.0
        %3772 = vmatpush2.msra.mxu0 0.0
        %3773 = vmatprep.subr.mxu0 0.0
        %3774 = vmatpush2.msra.mxu0 0.0
        %3775 = vmatprep.subr.mxu0 0.0
        %3776 = vmatpush2.msra.mxu0 0.0
        %3777 = vmatprep.subr.mxu0 0.0
        %3778 = vmatpush2.msra.mxu0 0.0
        %3779 = vmatprep.subr.mxu0 0.0
        %3780 = vmatpush2.msra.mxu0 0.0
        %3781 = vmatprep.subr.mxu0 0.0
        %3782 = vmatpush2.msra.mxu0 0.0
        %3783 = vmatprep.subr.mxu0 0.0
        %3784 = vmatpush2.msra.mxu0 0.0
        %3785 = vmatprep.subr.mxu0 0.0
        %3786 = vmatpush2.msra.mxu0 0.0
        %3787 = vmatprep.subr.mxu0 0.0
        %3788 = vmatpush2.msra.mxu0 0.0
        %3789 = vmatprep.subr.mxu0 0.0
        %3790 = vmatpush2.msra.mxu0 0.0
        %3791 = vmatprep.subr.mxu0 0.0
        %3792 = vmatpush2.msra.mxu0 0.0
        %3793 = vmatprep.subr.mxu0 0.0
        %3794 = vmatpush2.msra.mxu0 0.0
        %3795 = vmatprep.subr.mxu0 0.0
        %3796 = vmatpush2.msra.mxu0 0.0
        %3797 = vmatprep.subr.mxu0 0.0
        %3798 = vmatpush2.msra.mxu0 0.0
        %3799 = vmatprep.mubr.f32.mxu0 0.0
        %3800 = vmatmul.mubr.f32.gmra.mxu0 %v3733
        %v3801 = vpop.f32.mrf.mxu0
        %v3802 = vadd.f32 0.0, %v3801
        %v3803 = vpop.f32.mrf.mxu0
        %3804 = vdwg.mxu0
        %v3805 = vsel %vm367, %v3260, 0
        %3807 = vmatprep.subr.mxu0 0.0
        %3808 = vmatpush1.msra.mxu0 0.0
        %3809 = vmatprep.subr.mxu0 0.0
        %3810 = vmatpush1.msra.mxu0 0.0
        %3811 = vmatprep.subr.mxu0 0.0
        %3812 = vmatpush1.msra.mxu0 0.0
        %3813 = vmatprep.subr.mxu0 0.0
        %3814 = vmatpush1.msra.mxu0 0.0
        %3815 = vmatprep.subr.mxu0 0.0
        %3816 = vmatpush1.msra.mxu0 0.0
        %3817 = vmatprep.subr.mxu0 0.0
        %3818 = vmatpush1.msra.mxu0 0.0
        %3819 = vmatprep.subr.mxu0 0.0
        %3820 = vmatpush1.msra.mxu0 0.0
        %3821 = vmatprep.subr.mxu0 0.0
        %3822 = vmatpush1.msra.mxu0 0.0
        %3823 = vmatprep.subr.mxu0 0.0
        %3824 = vmatpush1.msra.mxu0 0.0
        %3825 = vmatprep.subr.mxu0 0.0
        %3826 = vmatpush1.msra.mxu0 0.0
        %3827 = vmatprep.subr.mxu0 0.0
        %3828 = vmatpush1.msra.mxu0 0.0
        %3829 = vmatprep.subr.mxu0 0.0
        %3830 = vmatpush1.msra.mxu0 0.0
        %3831 = vmatprep.subr.mxu0 0.0
        %3832 = vmatpush1.msra.mxu0 0.0
        %3833 = vmatprep.subr.mxu0 0.0
        %3834 = vmatpush1.msra.mxu0 0.0
        %3835 = vmatprep.subr.mxu0 0.0
        %3836 = vmatpush1.msra.mxu0 %v310
        %3837 = vmatprep.subr.mxu0 0.0
        %3838 = vmatpush1.msra.mxu0 %v309
        %3839 = vmatprep.subr.mxu0 0.0
        %3840 = vmatpush2.msra.mxu0 0.0
        %3841 = vmatprep.subr.mxu0 0.0
        %3842 = vmatpush2.msra.mxu0 0.0
        %3843 = vmatprep.subr.mxu0 0.0
        %3844 = vmatpush2.msra.mxu0 0.0
        %3845 = vmatprep.subr.mxu0 0.0
        %3846 = vmatpush2.msra.mxu0 0.0
        %3847 = vmatprep.subr.mxu0 0.0
        %3848 = vmatpush2.msra.mxu0 0.0
        %3849 = vmatprep.subr.mxu0 0.0
        %3850 = vmatpush2.msra.mxu0 0.0
        %3851 = vmatprep.subr.mxu0 0.0
        %3852 = vmatpush2.msra.mxu0 0.0
        %3853 = vmatprep.subr.mxu0 0.0
        %3854 = vmatpush2.msra.mxu0 0.0
        %3855 = vmatprep.subr.mxu0 0.0
        %3856 = vmatpush2.msra.mxu0 0.0
        %3857 = vmatprep.subr.mxu0 0.0
        %3858 = vmatpush2.msra.mxu0 0.0
        %3859 = vmatprep.subr.mxu0 0.0
        %3860 = vmatpush2.msra.mxu0 0.0
        %3861 = vmatprep.subr.mxu0 0.0
        %3862 = vmatpush2.msra.mxu0 0.0
        %3863 = vmatprep.subr.mxu0 0.0
        %3864 = vmatpush2.msra.mxu0 0.0
        %3865 = vmatprep.subr.mxu0 0.0
        %3866 = vmatpush2.msra.mxu0 0.0
        %3867 = vmatprep.subr.mxu0 0.0
        %3868 = vmatpush2.msra.mxu0 0.0
        %3869 = vmatprep.subr.mxu0 0.0
        %3870 = vmatpush2.msra.mxu0 0.0
        %3871 = vmatprep.mubr.f32.mxu0 0.0
        %3872 = vmatmul.mubr.f32.gmra.mxu0 %v3805
        %v3873 = vpop.f32.mrf.mxu0
        %v3874 = vadd.f32 0.0, %v3873
        %v3875 = vpop.f32.mrf.mxu0
        %3876 = vdwg.mxu0
        %v3877 = vmul.f32 %v3370, %v3293
        %v3878 = vmul.f32 %v3442, %v3294
        %v3879 = vmul.f32 %v3514, %v3295
        %v3880 = vmul.f32 %v3586, %v3296
        %v3881 = vmul.f32 %v3658, %v3297
        %v3882 = vmul.f32 %v3730, %v3298
        %v3883 = vmul.f32 %v3802, %v3299
        %v3884 = vmul.f32 %v3874, %v3300
        %v3885 = vadd.f32 %v3877, %v438
        %v3886 = vadd.f32 %v3878, %v511
        %v3887 = vadd.f32 %v3879, %v584
        %v3888 = vadd.f32 %v3880, %v657
        %v3889 = vadd.f32 %v3881, %v730
        %v3890 = vadd.f32 %v3882, %v803
        %v3891 = vadd.f32 %v3883, %v876
        %v3892 = vadd.f32 %v3884, %v949
        %v3893 = vcombine.low %v3885, %v3887
        %v3895 = vunpack.c.l.s4 1983009808
        %v3896 = vunpack.c.0.s8 %v3895
        %v3897 = vlaneseq
        %v3898 = vshrl.u32 %v3897, 7
        %v3899 = vsub.s32 %v3896, %v3898
        %v3900 = vrot.slane %v3893, %v3899
        %v3901 = vcombine.low %v3886, %v3888
        %v3903 = vunpack.c.l.s4 1983009808
        %v3904 = vunpack.c.0.s8 %v3903
        %v3905 = vlaneseq
        %v3906 = vshrl.u32 %v3905, 7
        %v3907 = vsub.s32 %v3904, %v3906
        %v3908 = vrot.slane %v3901, %v3907
        %v3909 = vcombine.low %v3889, %v3891
        %v3911 = vunpack.c.l.s4 1983009808
        %v3912 = vunpack.c.0.s8 %v3911
        %v3913 = vlaneseq
        %v3914 = vshrl.u32 %v3913, 7
        %v3915 = vsub.s32 %v3912, %v3914
        %v3916 = vrot.slane %v3909, %v3915
        %v3917 = vcombine.low %v3890, %v3892
        %v3919 = vunpack.c.l.s4 1983009808
        %v3920 = vunpack.c.0.s8 %v3919
        %v3921 = vlaneseq
        %v3922 = vshrl.u32 %v3921, 7
        %v3923 = vsub.s32 %v3920, %v3922
        %v3924 = vrot.slane %v3917, %v3923
        %v3925 = vcombine.low %v3900, %v3908
        %v3926 = vcombine.high %v3900, %v3908
        %v3928 = vunpack.c.l.s4 1934713408
        %v3929 = vunpack.c.0.s8 %v3928
        %v3930 = vlaneseq
        %v3931 = vshrl.u32 %v3930, 7
        %v3932 = vsub.s32 %v3929, %v3931
        %v3933 = vrot.slane %v3925, %v3932
        %v3935 = vunpack.c.l.s4 1934713408
        %v3936 = vunpack.c.0.s8 %v3935
        %v3937 = vlaneseq
        %v3938 = vshrl.u32 %v3937, 7
        %v3939 = vsub.s32 %v3936, %v3938
        %v3940 = vrot.slane %v3926, %v3939
        %v3941 = vcombine.low %v3916, %v3924
        %v3942 = vcombine.high %v3916, %v3924
        %v3944 = vunpack.c.l.s4 1934713408
        %v3945 = vunpack.c.0.s8 %v3944
        %v3946 = vlaneseq
        %v3947 = vshrl.u32 %v3946, 7
        %v3948 = vsub.s32 %v3945, %v3947
        %v3949 = vrot.slane %v3941, %v3948
        %v3951 = vunpack.c.l.s4 1934713408
        %v3952 = vunpack.c.0.s8 %v3951
        %v3953 = vlaneseq
        %v3954 = vshrl.u32 %v3953, 7
        %v3955 = vsub.s32 %v3952, %v3954
        %v3956 = vrot.slane %v3942, %v3955
        %v3957 = vcombine.low %v3933, %v3949
        %v3958 = vcombine.high %v3933, %v3949
        %v3959 = vcombine.low %v3940, %v3956
        %v3960 = vcombine.high %v3940, %v3956
        %v3961 = vcombine.low %v3957, %v3959
        %v3962 = vcombine.high %v3957, %v3959
        %v3964 = vunpack.c.l.s4 1983009808
        %v3965 = vunpack.c.0.s8 %v3964
        %v3966 = vlaneseq
        %v3967 = vshrl.u32 %v3966, 7
        %v3968 = vsub.s32 %v3965, %v3967
        %v3969 = vrot.slane %v3961, %v3968
        %v3971 = vunpack.c.l.s4 1983009808
        %v3972 = vunpack.c.0.s8 %v3971
        %v3973 = vlaneseq
        %v3974 = vshrl.u32 %v3973, 7
        %v3975 = vsub.s32 %v3972, %v3974
        %v3976 = vrot.slane %v3962, %v3975
        %v3977 = vcombine.low %v3958, %v3960
        %v3978 = vcombine.high %v3958, %v3960
        %v3980 = vunpack.c.l.s4 1983009808
        %v3981 = vunpack.c.0.s8 %v3980
        %v3982 = vlaneseq
        %v3983 = vshrl.u32 %v3982, 7
        %v3984 = vsub.s32 %v3981, %v3983
        %v3985 = vrot.slane %v3977, %v3984
        %v3987 = vunpack.c.l.s4 1983009808
        %v3988 = vunpack.c.0.s8 %v3987
        %v3989 = vlaneseq
        %v3990 = vshrl.u32 %v3989, 7
        %v3991 = vsub.s32 %v3988, %v3990
        %v3992 = vrot.slane %v3978, %v3991
        %v3993 = vcombine.low %v3969, %v3985
        %v3994 = vcombine.high %v3969, %v3985
        %v3996 = vunpack.c.l.s4 1934713408
        %v3997 = vunpack.c.0.s8 %v3996
        %v3998 = vlaneseq
        %v3999 = vshrl.u32 %v3998, 7
        %v4000 = vsub.s32 %v3997, %v3999
        %v4001 = vrot.slane %v3993, %v4000
        %v4003 = vunpack.c.l.s4 1934713408
        %v4004 = vunpack.c.0.s8 %v4003
        %v4005 = vlaneseq
        %v4006 = vshrl.u32 %v4005, 7
        %v4007 = vsub.s32 %v4004, %v4006
        %v4008 = vrot.slane %v3994, %v4007
        %v4009 = vcombine.low %v3976, %v3992
        %v4010 = vcombine.high %v3976, %v3992
        %v4012 = vunpack.c.l.s4 1934713408
        %v4013 = vunpack.c.0.s8 %v4012
        %v4014 = vlaneseq
        %v4015 = vshrl.u32 %v4014, 7
        %v4016 = vsub.s32 %v4013, %v4015
        %v4017 = vrot.slane %v4009, %v4016
        %v4019 = vunpack.c.l.s4 1934713408
        %v4020 = vunpack.c.0.s8 %v4019
        %v4021 = vlaneseq
        %v4022 = vshrl.u32 %v4021, 7
        %v4023 = vsub.s32 %v4020, %v4022
        %v4024 = vrot.slane %v4010, %v4023
        %v4025 = vcombine.high %v4001, 0.0
        %v4026 = vcombine.high %v4008, 0.0
        %v4027 = vcombine.high %v4017, 0.0
        %v4028 = vcombine.high %v4024, 0.0
        %4030 = vrot.lane.b32.xlu0 %v4025, 8
        %v4031 = vpop.permute.xlu0 %4030
        %4034 = vrot.lane.b32.xlu0 %v4008, 16
        %v4035 = vpop.permute.xlu0 %4034
        %4038 = vrot.lane.b32.xlu0 %v4026, 24
        %v4039 = vpop.permute.xlu0 %4038
        %4042 = vrot.lane.b32.xlu0 %v4017, 32
        %v4043 = vpop.permute.xlu0 %4042
        %4046 = vrot.lane.b32.xlu0 %v4027, 40
        %v4047 = vpop.permute.xlu0 %4046
        %4050 = vrot.lane.b32.xlu0 %v4024, 48
        %v4051 = vpop.permute.xlu0 %4050
        %4054 = vrot.lane.b32.xlu0 %v4028, 56
        %v4055 = vpop.permute.xlu0 %4054
        %v4057 = vsel %vm952, %v4001, %v4031
        %v4058 = vsel %vm367, %v4057, %v4035
        %vm4059 = vcmask 195584
        %v4060 = vsel %vm4059, %v4058, %v4039
        %vm4061 = vcmask 261120
        %v4062 = vsel %vm4061, %v4060, %v4043
        %vm4063 = vcmask 326656
        %v4064 = vsel %vm4063, %v4062, %v4047
        %vm4065 = vcmask 392192
        %v4066 = vsel %vm4065, %v4064, %v4051
        %vm4067 = vcmask 457728
        %v4068 = vsel %vm4067, %v4066, %v4055
        %vm4069 = vcmask 519168
        %4070 = vst.msk [vmem:[%s247] sm:$0xf] %vm4069, %v4068
        %s4071 = sand.u32 %s147, 1
        %s4072 = scalar_lea.sflag [#allocation3], %s4071
        %s4073 = sand.u32 %s147, 1
        %s4074 = smul.addr %s4073, 4
        %s4075 = scalar_lea.vmem [#allocation2], %s4074
        // Predicated region
        $region41: #{tpu_custom_call.1} parent=39 // pred_check
          %p4076 = pneg %p157
        $region42: #{tpu_custom_call.1} parent=39 // pred_check_branch
          %4078 = sbr.rel (%p4076) target = $region44
        $region43: #{tpu_custom_call.1} parent=39 // pred_region
          %s4080 = ssub.s32 64, 64
          %4081 = vsyncadd %s4072, %s4080
          %s4082 = smul.addr %s19, 64
          %s4083 = scalar_lea.hbm %s5, %s4082
          %s4085 = sshll.u32 %s4075, 4
          %s4086 = int_to_ptr.vmem [resolvable:$true] %s4085
          %4088 = dma.vmem_to_hbm [thread:$0]  %s4086, 64, %s4083, %s4072
        $region44: #{tpu_custom_call.1} parent=39 // pred_fallthru
          _
      $region40: #{tpu_custom_call.1} parent=5 // pred_fallthru
        _
      %p4089 = scmp.le.s32.totalorder 2, %s14
      // Predicated region
      $region45: #{tpu_custom_call.1} parent=5 // pred_check
        %p4090 = pneg %p4089
      $region46: #{tpu_custom_call.1} parent=5 // pred_check_branch
        %4092 = sbr.rel (%p4090) target = $region48
      $region47: #{tpu_custom_call.1} parent=5 // pred_region
        %s4093 = ssub.s32 %s14, 2
        // Predicated region
        $region49: #{tpu_custom_call.1} parent=47 // pred_check
          %p4094 = pneg %p163
        $region50: #{tpu_custom_call.1} parent=47 // pred_check_branch
          %4096 = sbr.rel (%p4094) target = $region52
        $region51: #{tpu_custom_call.1} parent=47 // pred_region
          %s4097 = sand.u32 %s148, 1
          %s4098 = scalar_lea.sflag [#allocation3], %s4097
          %s4099 = sand.u32 %s148, 1
          %s4100 = smul.addr %s4099, 4
          %s4101 = scalar_lea.vmem [#allocation2], %s4100
          %4102 = dma.done %s4098, 64
        $region52: #{tpu_custom_call.1} parent=47 // pred_fallthru
          _
      $region48: #{tpu_custom_call.1} parent=5 // pred_fallthru
        _
    $region6: #{tpu_custom_call.1} parent=1 // loop_footer
      %s18 = sadd.s32 1, %s14
    $region7: #{tpu_custom_call.1} parent=1 // loop_footer_branch
      %13 = sbr.rel target = $region3
    $region8: #{tpu_custom_call.1} parent=1 // loop_exit
      _
    %4103 = vsyncpa [#allocation3], 1
    %s4104 = scalar_lea.sflag [#allocation3], 1
    %4105 = vsyncpa %s4104, 1

</llo_original>
